<compile_context>
chip_gen: v5e
topology: v5e:2x2
jax: 0.10.0
libtpu: 0.0.40
codegen_flags: <defaults>
</compile_context>

<pallas_src>
import math
from functools import partial

import jax
import jax.numpy as jnp
from jax import lax
from jax.experimental import pallas as pl
from jax.experimental.pallas import tpu as pltpu

_BN_EPS = 1e-5


def _cdiv(a, b):
    return -(-a // b)


def _round_up(x, m):
    return ((x + m - 1) // m) * m


def _vmem_caps():
    """(per-step VMEM budget, compiler vmem limit) derived from the chip's VMEM."""
    try:
        cap = int(pltpu.get_tpu_info().vmem_capacity_bytes)
    except Exception:
        cap = 64 * 1024 * 1024          # conservative default (v7x has 64 MiB / TC)
    return min(cap // 4, 32 * 1024 * 1024), min(cap // 2, 64 * 1024 * 1024)


def _pick_rows(total_rows, unit, bytes_per_row, vmem_budget, target_rows, min_blocks):
    """Largest row tile that is a multiple of `unit`, fits the VMEM budget, stays
    near `target_rows`, and leaves >= `min_blocks` grid steps when possible (so the
    two v7x TensorCores each get pipelined work)."""
    cap = max(1, vmem_budget // max(1, bytes_per_row * unit))
    tgt = max(1, target_rows // unit)
    par = max(1, (total_rows // max(1, min_blocks)) // unit)
    return max(1, min(cap, tgt, par)) * unit


# ---------------------------------------------------------------------------
# Kernel A: conv1 (1x1x1) + BN1 + ReLU + conv2 (1,3,3) + BN2 + ReLU, fused.
# Flattened channel-last rows; main (TM, Cin) block + thin HALO rows; conv2 is one
# MXU GEMM with tap-stacked K = 9 * C1.
# ---------------------------------------------------------------------------
def _conv12_kernel(xm_ref, xh_ref, mm_ref, mh_ref, w1_ref, b1_ref, w2_ref, b2_ref,
                   o_ref, *, tm, offsets):
    # Main block + thin halo, kept in bf16 (no f32 concat / per-tap re-casts).
    x = jnp.concatenate([xm_ref[...], xh_ref[...]], axis=0)        # (tm+halo, Cin)
    msk = jnp.concatenate([mm_ref[...], mh_ref[...]], axis=0)      # (tm+halo, 1) f32

    # conv1 (pointwise) with BN1 scale folded into the bf16 weights; f32 MXU acc.
    h1 = jnp.dot(x, w1_ref[...], preferred_element_type=jnp.float32) + b1_ref[...]
    # SAME padding belongs to conv2's *input* (i.e. after conv1/BN1/ReLU), so rows
    # that are spatial-pad positions are forced back to exactly 0 with the mask
    # (otherwise they would hold relu(b1)).
    h1 = (jnp.maximum(h1, 0.0) * msk).astype(jnp.bfloat16)         # (tm+halo, C1)

    # conv2 (1,3,3): tap-stacked K -> ONE GEMM with K = 9 * C1.
    p = jnp.concatenate(
        [lax.slice_in_dim(h1, off, off + tm, axis=0) for off in offsets], axis=1)
    y = jnp.dot(p, w2_ref[...], preferred_element_type=jnp.float32) + b2_ref[...]
    o_ref[...] = jnp.maximum(y, 0.0).astype(o_ref.dtype)


def fused_conv1_bn_relu_conv2_bn_relu(x, w1, s1, b1, w2, s2, b2):
    """x: (N, D, H, W, Cin) bf16 channel-last.
    w1: (C1, Cin, 1, 1, 1); w2: (C2, C1, 1, 3, 3) (PyTorch OIDHW).
    s*, b*: folded BN-eval scale/shift per output channel (f32).
    Returns (N, D, H, W, C2) bf16."""
    N, D, H, W, Cin = x.shape
    C1 = w1.shape[0]
    C2, _, KD, KH, KW = w2.shape
    assert w1.shape[2:] == (1, 1, 1) and KD == 1

    ph, pw = KH - 1, KW - 1
    h_lo, w_lo = ph // 2, pw // 2
    Hp, Wp = H + ph, W + pw
    assert Hp == H + KH - 1 and Wp == W + KW - 1

    # Spatial SAME pad of the conv2 geometry applied once to x; the pad rows are
    # masked back to zero after conv1 inside the kernel.
    xp = jnp.pad(x, ((0, 0), (0, 0), (h_lo, ph - h_lo), (w_lo, pw - w_lo), (0, 0)))
    m1 = N * D * Hp * Wp
    x2d = xp.reshape(m1, Cin)

    offsets = tuple(kh * Wp + kw for kh in range(KH) for kw in range(KW))
    max_off = offsets[-1]
    halo = max(_round_up(max_off, 8), 8)            # thin halo slab, multiple of 8

    budget, vmem_limit = _vmem_caps()
    bytes_per_row = (2 * Cin * 2                    # main input, double-buffered bf16
                     + 2 * C2 * 2                   # output, double-buffered bf16
                     + C1 * (4 + 2)                 # h1 f32 + bf16
                     + len(offsets) * C1 * 2        # tap-stacked P
                     + C2 * 4)                      # f32 GEMM result
    tm = _pick_rows(m1, halo, bytes_per_row, budget, target_rows=4096, min_blocks=4)
    assert tm % halo == 0 and halo >= max_off
    nb = _cdiv(m1, tm)
    rows = nb * tm + halo                           # halo of the last block stays in-bounds
    x2d = jnp.pad(x2d, ((0, rows - m1), (0, 0)))

    # Row-validity mask (1.0 inside the original H x W window, 0.0 at SAME-pad rows).
    hh = jnp.arange(Hp)
    ww = jnp.arange(Wp)
    mrow = (((hh >= h_lo) & (hh < h_lo + H))[:, None]
            & ((ww >= w_lo) & (ww < w_lo + W))[None, :])
    mask = jnp.broadcast_to(mrow[None, None], (N, D, Hp, Wp)).reshape(m1, 1)
    mask = jnp.pad(mask.astype(jnp.float32), ((0, rows - m1), (0, 0)))

    # Weights: BN scales folded per output channel; conv2 stacked tap-major along K.
    w1m = (w1[:, :, 0, 0, 0] * s1[:, None]).T.astype(jnp.bfloat16)          # (Cin, C1)
    w2m = jnp.transpose(w2[:, :, 0], (2, 3, 1, 0)).reshape(KH * KW * C1, C2)
    w2m = (w2m * s2[None, :]).astype(jnp.bfloat16)                          # (9*C1, C2)
    b1m = b1.astype(jnp.float32).reshape(1, C1)
    b2m = b2.astype(jnp.float32).reshape(1, C2)

    kern = partial(_conv12_kernel, tm=tm, offsets=offsets)
    hb = tm // halo
    out = pl.pallas_call(
        kern,
        out_shape=jax.ShapeDtypeStruct((nb * tm, C2), jnp.bfloat16),
        grid=(nb,),
        in_specs=[
            pl.BlockSpec((tm, Cin), lambda i: (i, 0)),
            pl.BlockSpec((halo, Cin), lambda i: ((i + 1) * hb, 0)),
            pl.BlockSpec((tm, 1), lambda i: (i, 0)),
            pl.BlockSpec((halo, 1), lambda i: ((i + 1) * hb, 0)),
            pl.BlockSpec((Cin, C1), lambda i: (0, 0), pipeline_mode=pl.Buffered(1)),
            pl.BlockSpec((1, C1), lambda i: (0, 0), pipeline_mode=pl.Buffered(1)),
            pl.BlockSpec((KH * KW * C1, C2), lambda i: (0, 0),
                         pipeline_mode=pl.Buffered(1)),
            pl.BlockSpec((1, C2), lambda i: (0, 0), pipeline_mode=pl.Buffered(1)),
        ],
        out_specs=pl.BlockSpec((tm, C2), lambda i: (i, 0)),
        compiler_params=pltpu.CompilerParams(
            dimension_semantics=("parallel",),
            vmem_limit_bytes=vmem_limit,
        ),
    )(x2d, x2d, mask, mask, w1m, b1m, w2m, b2m)

    out = out[:m1].reshape(N, D, Hp, Wp, C2)
    # Kept output rows (h<H, w<W) only read input rows < m1 (Hp = H+KH-1), so the
    # zero row padding and the halo never contaminate a kept output.
    return out[:, :, :H, :W, :]


# ---------------------------------------------------------------------------
# Kernel B: conv3 (3,1,1) + bias + ReLU.  Grid over (batch, hw-tile); the full depth
# extent lives in the block, so the depth stencil is pure VMEM slicing (no halo, no
# TM >= 2*Hp*Wp constraint).
# ---------------------------------------------------------------------------
def _conv3_kernel(x_ref, w_ref, b_ref, o_ref):
    x = x_ref[0]                                     # (D, THW, C2) bf16
    d, thw, c2 = x.shape
    z = jnp.zeros((1, thw, c2), x.dtype)
    xp = jnp.concatenate([z, x, z], axis=0)          # SAME pad in depth (1, 1)
    p = jnp.concatenate([xp[0:d], xp[1:d + 1], xp[2:d + 2]], axis=-1)  # (D, THW, 3*C2)
    p = p.reshape(d * thw, 3 * c2)
    y = jnp.dot(p, w_ref[...], preferred_element_type=jnp.float32) + b_ref[...]
    o_ref[0] = jnp.maximum(y, 0.0).reshape(d, thw, c2).astype(o_ref.dtype)


def conv3_bias_relu(h, w3, b3):
    """h: (N, D, H, W, C2) bf16; w3: (C2, C2, 3, 1, 1); b3: (C2,).  Returns bf16."""
    N, D, H, W, C2 = h.shape
    KD = w3.shape[2]
    assert KD == 3 and w3.shape[3] == 1 and w3.shape[4] == 1
    HW = H * W
    h4 = h.reshape(N, D, HW, C2)

    budget, vmem_limit = _vmem_caps()
    bytes_per_row = D * (2 * C2 * 2 + 2 * C2 * 2     # in / out, double-buffered bf16
                         + C2 * 2                    # depth-padded copy
                         + 3 * C2 * 2                # tap-stacked P
                         + C2 * 4)                   # f32 GEMM result
    # TODO(synk): for very large D the whole-depth-resident block would need an
    # additional depth tiling; not needed for UVQ-style frame counts.
    min_hw_blocks = max(1, _cdiv(4, N))
    thw = _pick_rows(HW, 8, bytes_per_row, budget, target_rows=2048,
                     min_blocks=min_hw_blocks)
    if thw >= HW:
        thw = HW
    nhw = _cdiv(HW, thw)

    w3m = jnp.transpose(w3[:, :, :, 0, 0], (2, 1, 0)).reshape(KD * C2, C2)
    w3m = w3m.astype(jnp.bfloat16)
    b3m = b3.astype(jnp.float32).reshape(1, C2)

    out = pl.pallas_call(
        _conv3_kernel,
        out_shape=jax.ShapeDtypeStruct((N, D, HW, C2), jnp.bfloat16),
        grid=(N, nhw),
        in_specs=[
            pl.BlockSpec((1, D, thw, C2), lambda n, j: (n, 0, j, 0)),
            pl.BlockSpec((KD * C2, C2), lambda n, j: (0, 0),
                         pipeline_mode=pl.Buffered(1)),
            pl.BlockSpec((1, C2), lambda n, j: (0, 0), pipeline_mode=pl.Buffered(1)),
        ],
        out_specs=pl.BlockSpec((1, D, thw, C2), lambda n, j: (n, 0, j, 0)),
        compiler_params=pltpu.CompilerParams(
            dimension_semantics=("parallel", "parallel"),
            vmem_limit_bytes=vmem_limit,
        ),
    )(h4, w3m, b3m)
    return out.reshape(N, D, H, W, C2)


# ---------------------------------------------------------------------------
# InceptionB1B2 forward (eval mode), channel-last internally.
# ---------------------------------------------------------------------------
def inception_b1b2_forward(x, params, pool_shape):
    """x: (N, conv1_in, D, H, W) f32 NCDHW -> (N, conv2_out, D, H, W) f32 NCDHW."""
    f32, bf16 = jnp.float32, jnp.bfloat16

    def bn_fold(g, b, m, v):
        s = g / jnp.sqrt(v + _BN_EPS)
        return s, b - m * s

    xl = jnp.transpose(x, (0, 2, 3, 4, 1)).astype(bf16)          # NCDHW -> NDHWC

    s1, b1 = bn_fold(params["bn1_gamma"], params["bn1_beta"],
                     params["bn1_mean"], params["bn1_var"])
    s2, b2 = bn_fold(params["bn2_gamma"], params["bn2_beta"],
                     params["bn2_mean"], params["bn2_var"])

    h2 = fused_conv1_bn_relu_conv2_bn_relu(xl, params["w1"], s1, b1,
                                           params["w2"], s2, b2)
    relu_out = conv3_bias_relu(h2, params["w3"], params["b3"])   # (N,D,H,W,C2) bf16

    N, D, H, W, _ = relu_out.shape
    pd, ph, pw = pool_shape
    if (pd, ph, pw) == (D, H, W):
        # Global squeeze/excite pool: f32 accumulation directly on the bf16 tensor
        # (no materialised f32 copy of relu_out).
        pooled = jnp.mean(relu_out, axis=(1, 2, 3), keepdims=True, dtype=f32)
    else:
        # TODO(synk): rare non-global pool path kept in plain JAX (reduce_window).
        pooled = lax.reduce_window(relu_out.astype(f32), 0.0, lax.add,
                                   (1, pd, ph, pw, 1), (1,) * 5,
                                   "VALID") / float(pd * ph * pw)

    # conv4 (1x1x1, no bias) on the tiny pooled tensor: plain JAX matmul.
    w4m = params["w4"][:, :, 0, 0, 0].T
    se = jnp.einsum("ndhwc,ce->ndhwe", pooled.astype(bf16), w4m.astype(bf16),
                    preferred_element_type=f32)
    if se.shape[1:4] != (1, 1, 1):
        se = jnp.tile(se, (1, pd, ph, pw, 1))                    # module's repeat()
    out = jax.nn.sigmoid(se) * relu_out.astype(f32)              # broadcast gate
    return jnp.transpose(out, (0, 4, 1, 2, 3))                   # back to NCDHW


# ---------------------------------------------------------------------------
# Pure-JAX reference (lax.conv), mirroring the module's eval-mode forward with the
# same bf16-GEMM-input / f32-accumulation precision policy.
# ---------------------------------------------------------------------------
def _reference(x, params, pool_shape):
    f32, bf16 = jnp.float32, jnp.bfloat16

    def conv(h, w, bias=None):
        k = w.shape[2:]
        pads = [((kk - 1) // 2, (kk - 1) - (kk - 1) // 2) for kk in k]
        y = lax.conv_general_dilated(h.astype(bf16), w.astype(bf16),
                                     window_strides=(1, 1, 1), padding=pads,
                                     dimension_numbers=("NCDHW", "OIDHW", "NCDHW"),
                                     preferred_element_type=f32)
        if bias is not None:
            y = y + bias.reshape(1, -1, 1, 1, 1)
        return y

    def bn(y, g, b, m, v):
        s = g / jnp.sqrt(v + _BN_EPS)
        return y * s.reshape(1, -1, 1, 1, 1) + (b - m * s).reshape(1, -1, 1, 1, 1)

    h = jnp.maximum(bn(conv(x, params["w1"]), params["bn1_gamma"], params["bn1_beta"],
                       params["bn1_mean"], params["bn1_var"]), 0.0)
    h = h.astype(bf16).astype(f32)
    h = jnp.maximum(bn(conv(h, params["w2"]), params["bn2_gamma"], params["bn2_beta"],
                       params["bn2_mean"], params["bn2_var"]), 0.0)
    h = h.astype(bf16).astype(f32)
    relu_out = jnp.maximum(conv(h, params["w3"], params["b3"]), 0.0)
    relu_out = relu_out.astype(bf16).astype(f32)

    pd, ph, pw = pool_shape
    pooled = lax.reduce_window(relu_out, 0.0, lax.add,
                               window_dimensions=(1, 1, pd, ph, pw),
                               window_strides=(1,) * 5,
                               padding="VALID") / float(pd * ph * pw)
    se = conv(pooled, params["w4"])
    se = jnp.tile(se, (1, 1, pd, ph, pw))
    return jax.nn.sigmoid(se) * relu_out


if __name__ == "__main__":
    key = jax.random.PRNGKey(0)
    ks = jax.random.split(key, 16)

    N, conv1_in, conv1_out, conv2_out = 2, 8, 16, 32
    D, H, W = 4, 16, 16
    pool_shape = (D, H, W)          # standard squeeze/excite usage: global spatial pool

    def u(k, shape, lo=-1.0, hi=1.0):
        return jax.random.uniform(k, shape, jnp.float32, lo, hi)

    fan1 = conv1_in
    fan2 = conv1_out * 3 * 3
    fan3 = conv2_out * 3
    fan4 = conv2_out
    params = {
        "w1": u(ks[0], (conv1_out, conv1_in, 1, 1, 1)) / math.sqrt(fan1),
        "bn1_gamma": u(ks[1], (conv1_out,), 0.5, 1.5),
        "bn1_beta": u(ks[2], (conv1_out,), -0.5, 0.5),
        "bn1_mean": u(ks[3], (conv1_out,), -0.5, 0.5),
        "bn1_var": u(ks[4], (conv1_out,), 0.5, 1.5),
        "w2": u(ks[5], (conv2_out, conv1_out, 1, 3, 3)) / math.sqrt(fan2),
        "bn2_gamma": u(ks[6], (conv2_out,), 0.5, 1.5),
        "bn2_beta": u(ks[7], (conv2_out,), -0.5, 0.5),
        "bn2_mean": u(ks[8], (conv2_out,), -0.5, 0.5),
        "bn2_var": u(ks[9], (conv2_out,), 0.5, 1.5),
        "w3": u(ks[10], (conv2_out, conv2_out, 3, 1, 1)) / math.sqrt(fan3),
        "b3": u(ks[11], (conv2_out,), -0.1, 0.1),
        "w4": u(ks[12], (conv2_out, conv2_out, 1, 1, 1)) / math.sqrt(fan4),
    }
    x = jax.random.normal(ks[13], (N, conv1_in, D, H, W), dtype=jnp.float32)

    fwd = jax.jit(lambda xx, pp: inception_b1b2_forward(xx, pp, pool_shape))
    y = jax.block_until_ready(fwd(x, params))

    y_ref = jax.block_until_ready(_reference(x, params, pool_shape))
    assert y.shape == y_ref.shape, (y.shape, y_ref.shape)
    max_err = float(jnp.max(jnp.abs(y - y_ref)))
    assert jnp.allclose(y, y_ref, rtol=2e-2, atol=2e-2), max_err

    print("KERNEL_OK")
</pallas_src>

<mosaic_0001>
module attributes {stable_mosaic.version = 11 : i64} {
  func.func @_conv12_kernel(%arg0: i32, %arg1: memref<640x8xbf16, #tpu.memory_space<vmem>>, %arg2: memref<40x8xbf16, #tpu.memory_space<vmem>>, %arg3: memref<640x1xf32, #tpu.memory_space<vmem>>, %arg4: memref<40x1xf32, #tpu.memory_space<vmem>>, %arg5: memref<8x16xbf16, #tpu.memory_space<vmem>>, %arg6: memref<1x16xf32, #tpu.memory_space<vmem>>, %arg7: memref<144x32xbf16, #tpu.memory_space<vmem>>, %arg8: memref<1x32xf32, #tpu.memory_space<vmem>>, %arg9: memref<640x32xbf16, #tpu.memory_space<vmem>>) attributes {dimension_semantics = [#tpu.dimension_semantics<parallel>], iteration_bounds = array<i64: 5>, scalar_prefetch = 0 : i64, scratch_operands = 0 : i64, tpu.core_type = #tpu.core_type<tc>, window_params = [{transform_indices = @transform_0, window_bounds = array<i64: 640, 8>}, {transform_indices = @transform_1, window_bounds = array<i64: 40, 8>}, {transform_indices = @transform_2, window_bounds = array<i64: 640, 1>}, {transform_indices = @transform_3, window_bounds = array<i64: 40, 1>}, {pipeline_mode = #tpu.pipeline_mode<synchronous>, transform_indices = @transform_4, window_bounds = array<i64: 8, 16>}, {pipeline_mode = #tpu.pipeline_mode<synchronous>, transform_indices = @transform_5, window_bounds = array<i64: 1, 16>}, {pipeline_mode = #tpu.pipeline_mode<synchronous>, transform_indices = @transform_6, window_bounds = array<i64: 144, 32>}, {pipeline_mode = #tpu.pipeline_mode<synchronous>, transform_indices = @transform_7, window_bounds = array<i64: 1, 32>}, {transform_indices = @transform_8, window_bounds = array<i64: 640, 32>}]} {
    %c0 = arith.constant 0 : index
    %c0_0 = arith.constant 0 : index
    %0 = vector.load %arg1[%c0, %c0_0] : memref<640x8xbf16, #tpu.memory_space<vmem>>, vector<640x8xbf16>
    %c0_1 = arith.constant 0 : index
    %c0_2 = arith.constant 0 : index
    %1 = vector.load %arg2[%c0_1, %c0_2] : memref<40x8xbf16, #tpu.memory_space<vmem>>, vector<40x8xbf16>
    %2 = tpu.concatenate %0, %1 in 0 : vector<640x8xbf16>, vector<40x8xbf16> -> vector<680x8xbf16>
    %c0_3 = arith.constant 0 : index
    %c0_4 = arith.constant 0 : index
    %3 = vector.load %arg3[%c0_3, %c0_4] : memref<640x1xf32, #tpu.memory_space<vmem>>, vector<640x1xf32>
    %c0_5 = arith.constant 0 : index
    %c0_6 = arith.constant 0 : index
    %4 = vector.load %arg4[%c0_5, %c0_6] : memref<40x1xf32, #tpu.memory_space<vmem>>, vector<40x1xf32>
    %5 = tpu.concatenate %3, %4 in 0 : vector<640x1xf32>, vector<40x1xf32> -> vector<680x1xf32>
    %c0_7 = arith.constant 0 : index
    %c0_8 = arith.constant 0 : index
    %6 = vector.load %arg5[%c0_7, %c0_8] : memref<8x16xbf16, #tpu.memory_space<vmem>>, vector<8x16xbf16>
    %cst = arith.constant dense<0.000000e+00> : vector<680x16xf32>
    %7 = tpu.matmul %2, %6, %cst {dimension_numbers = #tpu.dot_dimension_numbers<[1], [0], [0], [1], [0, 0, 1, 1], [], []>} : vector<680x8xbf16>, vector<8x16xbf16>, vector<680x16xf32> -> vector<680x16xf32>
    %c0_9 = arith.constant 0 : index
    %c0_10 = arith.constant 0 : index
    %8 = vector.load %arg6[%c0_9, %c0_10] : memref<1x16xf32, #tpu.memory_space<vmem>>, vector<1x16xf32>
    %9 = vector.broadcast %8 : vector<1x16xf32> to vector<680x16xf32>
    %10 = arith.addf %7, %9 : vector<680x16xf32>
    %cst_11 = arith.constant 0.000000e+00 : f32
    %11 = vector.broadcast %cst_11 : f32 to vector<680x16xf32>
    %12 = arith.maximumf %10, %11 : vector<680x16xf32>
    %13 = vector.broadcast %5 : vector<680x1xf32> to vector<680x16xf32>
    %14 = arith.mulf %12, %13 : vector<680x16xf32>
    %15 = arith.truncf %14 : vector<680x16xf32> to vector<680x16xbf16>
    %16 = vector.extract_strided_slice %15 {offsets = [0, 0], sizes = [640, 16], strides = [1, 1]} : vector<680x16xbf16> to vector<640x16xbf16>
    %17 = vector.extract_strided_slice %15 {offsets = [1, 0], sizes = [640, 16], strides = [1, 1]} : vector<680x16xbf16> to vector<640x16xbf16>
    %18 = vector.extract_strided_slice %15 {offsets = [2, 0], sizes = [640, 16], strides = [1, 1]} : vector<680x16xbf16> to vector<640x16xbf16>
    %19 = vector.extract_strided_slice %15 {offsets = [18, 0], sizes = [640, 16], strides = [1, 1]} : vector<680x16xbf16> to vector<640x16xbf16>
    %20 = vector.extract_strided_slice %15 {offsets = [19, 0], sizes = [640, 16], strides = [1, 1]} : vector<680x16xbf16> to vector<640x16xbf16>
    %21 = vector.extract_strided_slice %15 {offsets = [20, 0], sizes = [640, 16], strides = [1, 1]} : vector<680x16xbf16> to vector<640x16xbf16>
    %22 = vector.extract_strided_slice %15 {offsets = [36, 0], sizes = [640, 16], strides = [1, 1]} : vector<680x16xbf16> to vector<640x16xbf16>
    %23 = vector.extract_strided_slice %15 {offsets = [37, 0], sizes = [640, 16], strides = [1, 1]} : vector<680x16xbf16> to vector<640x16xbf16>
    %24 = vector.extract_strided_slice %15 {offsets = [38, 0], sizes = [640, 16], strides = [1, 1]} : vector<680x16xbf16> to vector<640x16xbf16>
    %25 = tpu.concatenate %16, %17, %18, %19, %20, %21, %22, %23, %24 in 1 : vector<640x16xbf16>, vector<640x16xbf16>, vector<640x16xbf16>, vector<640x16xbf16>, vector<640x16xbf16>, vector<640x16xbf16>, vector<640x16xbf16>, vector<640x16xbf16>, vector<640x16xbf16> -> vector<640x144xbf16>
    %c0_12 = arith.constant 0 : index
    %c0_13 = arith.constant 0 : index
    %26 = vector.load %arg7[%c0_12, %c0_13] : memref<144x32xbf16, #tpu.memory_space<vmem>>, vector<144x32xbf16>
    %cst_14 = arith.constant dense<0.000000e+00> : vector<640x32xf32>
    %27 = tpu.matmul %25, %26, %cst_14 {dimension_numbers = #tpu.dot_dimension_numbers<[1], [0], [0], [1], [0, 0, 1, 1], [], []>} : vector<640x144xbf16>, vector<144x32xbf16>, vector<640x32xf32> -> vector<640x32xf32>
    %c0_15 = arith.constant 0 : index
    %c0_16 = arith.constant 0 : index
    %28 = vector.load %arg8[%c0_15, %c0_16] : memref<1x32xf32, #tpu.memory_space<vmem>>, vector<1x32xf32>
    %29 = vector.broadcast %28 : vector<1x32xf32> to vector<640x32xf32>
    %30 = arith.addf %27, %29 : vector<640x32xf32>
    %cst_17 = arith.constant 0.000000e+00 : f32
    %31 = vector.broadcast %cst_17 : f32 to vector<640x32xf32>
    %32 = arith.maximumf %30, %31 : vector<640x32xf32>
    %33 = arith.truncf %32 : vector<640x32xf32> to vector<640x32xbf16>
    %c0_18 = arith.constant 0 : index
    %c0_19 = arith.constant 0 : index
    %34 = vector.load %arg9[%c0_18, %c0_19] : memref<640x32xbf16, #tpu.memory_space<vmem>>, vector<640x32xbf16>
    tpu.vector_store %arg9[%c0_18, %c0_19], %33 {strides = array<i32>} : memref<640x32xbf16, #tpu.memory_space<vmem>>, vector<640x32xbf16>,
    return
  }
  func.func @transform_0(%arg0: i32) -> (i32, i32) {
    %c0_i32 = arith.constant 0 : i32
    %c0_i32_0 = arith.constant 0 : i32
    return %arg0, %c0_i32 : i32, i32
  }
  func.func @transform_1(%arg0: i32) -> (i32, i32) {
    %c1_i32 = arith.constant 1 : i32
    %0 = arith.addi %arg0, %c1_i32 : i32
    %c16_i32 = arith.constant 16 : i32
    %1 = arith.muli %0, %c16_i32 : i32
    %c0_i32 = arith.constant 0 : i32
    %c0_i32_0 = arith.constant 0 : i32
    return %1, %c0_i32 : i32, i32
  }
  func.func @transform_2(%arg0: i32) -> (i32, i32) {
    %c0_i32 = arith.constant 0 : i32
    %c0_i32_0 = arith.constant 0 : i32
    return %arg0, %c0_i32 : i32, i32
  }
  func.func @transform_3(%arg0: i32) -> (i32, i32) {
    %c1_i32 = arith.constant 1 : i32
    %0 = arith.addi %arg0, %c1_i32 : i32
    %c16_i32 = arith.constant 16 : i32
    %1 = arith.muli %0, %c16_i32 : i32
    %c0_i32 = arith.constant 0 : i32
    %c0_i32_0 = arith.constant 0 : i32
    return %1, %c0_i32 : i32, i32
  }
  func.func @transform_4(%arg0: i32) -> (i32, i32) {
    %c0_i32 = arith.constant 0 : i32
    %c0_i32_0 = arith.constant 0 : i32
    %c0_i32_1 = arith.constant 0 : i32
    return %c0_i32, %c0_i32_0 : i32, i32
  }
  func.func @transform_5(%arg0: i32) -> (i32, i32) {
    %c0_i32 = arith.constant 0 : i32
    %c0_i32_0 = arith.constant 0 : i32
    %c0_i32_1 = arith.constant 0 : i32
    return %c0_i32, %c0_i32_0 : i32, i32
  }
  func.func @transform_6(%arg0: i32) -> (i32, i32) {
    %c0_i32 = arith.constant 0 : i32
    %c0_i32_0 = arith.constant 0 : i32
    %c0_i32_1 = arith.constant 0 : i32
    return %c0_i32, %c0_i32_0 : i32, i32
  }
  func.func @transform_7(%arg0: i32) -> (i32, i32) {
    %c0_i32 = arith.constant 0 : i32
    %c0_i32_0 = arith.constant 0 : i32
    %c0_i32_1 = arith.constant 0 : i32
    return %c0_i32, %c0_i32_0 : i32, i32
  }
  func.func @transform_8(%arg0: i32) -> (i32, i32) {
    %c0_i32 = arith.constant 0 : i32
    %c0_i32_0 = arith.constant 0 : i32
    return %arg0, %c0_i32 : i32, i32
  }
}

module attributes {stable_mosaic.version = 11 : i64} {
  func.func @_conv3_kernel(%arg0: i32, %arg1: i32, %arg2: memref<1x4x128x32xbf16, #tpu.memory_space<vmem>>, %arg3: memref<96x32xbf16, #tpu.memory_space<vmem>>, %arg4: memref<1x32xf32, #tpu.memory_space<vmem>>, %arg5: memref<1x4x128x32xbf16, #tpu.memory_space<vmem>>) attributes {dimension_semantics = [#tpu.dimension_semantics<parallel>, #tpu.dimension_semantics<parallel>], iteration_bounds = array<i64: 2, 2>, scalar_prefetch = 0 : i64, scratch_operands = 0 : i64, tpu.core_type = #tpu.core_type<tc>, window_params = [{transform_indices = @transform_0, window_bounds = array<i64: 1, 4, 128, 32>}, {pipeline_mode = #tpu.pipeline_mode<synchronous>, transform_indices = @transform_1, window_bounds = array<i64: 96, 32>}, {pipeline_mode = #tpu.pipeline_mode<synchronous>, transform_indices = @transform_2, window_bounds = array<i64: 1, 32>}, {transform_indices = @transform_3, window_bounds = array<i64: 1, 4, 128, 32>}]} {
    %c0 = arith.constant 0 : index
    %c0_0 = arith.constant 0 : index
    %c0_1 = arith.constant 0 : index
    %c0_2 = arith.constant 0 : index
    %0 = vector.load %arg2[%c0, %c0_0, %c0_1, %c0_2] : memref<1x4x128x32xbf16, #tpu.memory_space<vmem>>, vector<1x4x128x32xbf16>
    %1 = vector.shape_cast %0 : vector<1x4x128x32xbf16> to vector<4x128x32xbf16>
    %cst = arith.constant 0.000000e+00 : bf16
    %2 = vector.broadcast %cst : bf16 to vector<1x128x32xbf16>
    %3 = tpu.concatenate %2, %1, %2 in 0 : vector<1x128x32xbf16>, vector<4x128x32xbf16>, vector<1x128x32xbf16> -> vector<6x128x32xbf16>
    %4 = vector.extract_strided_slice %3 {offsets = [0, 0, 0], sizes = [4, 128, 32], strides = [1, 1, 1]} : vector<6x128x32xbf16> to vector<4x128x32xbf16>
    %5 = vector.extract_strided_slice %3 {offsets = [1, 0, 0], sizes = [4, 128, 32], strides = [1, 1, 1]} : vector<6x128x32xbf16> to vector<4x128x32xbf16>
    %6 = vector.extract_strided_slice %3 {offsets = [2, 0, 0], sizes = [4, 128, 32], strides = [1, 1, 1]} : vector<6x128x32xbf16> to vector<4x128x32xbf16>
    %7 = tpu.concatenate %4, %5, %6 in 2 : vector<4x128x32xbf16>, vector<4x128x32xbf16>, vector<4x128x32xbf16> -> vector<4x128x96xbf16>
    %8 = vector.shape_cast %7 : vector<4x128x96xbf16> to vector<512x96xbf16>
    %c0_3 = arith.constant 0 : index
    %c0_4 = arith.constant 0 : index
    %9 = vector.load %arg3[%c0_3, %c0_4] : memref<96x32xbf16, #tpu.memory_space<vmem>>, vector<96x32xbf16>
    %cst_5 = arith.constant dense<0.000000e+00> : vector<512x32xf32>
    %10 = tpu.matmul %8, %9, %cst_5 {dimension_numbers = #tpu.dot_dimension_numbers<[1], [0], [0], [1], [0, 0, 1, 1], [], []>} : vector<512x96xbf16>, vector<96x32xbf16>, vector<512x32xf32> -> vector<512x32xf32>
    %c0_6 = arith.constant 0 : index
    %c0_7 = arith.constant 0 : index
    %11 = vector.load %arg4[%c0_6, %c0_7] : memref<1x32xf32, #tpu.memory_space<vmem>>, vector<1x32xf32>
    %12 = vector.broadcast %11 : vector<1x32xf32> to vector<512x32xf32>
    %13 = arith.addf %10, %12 : vector<512x32xf32>
    %cst_8 = arith.constant 0.000000e+00 : f32
    %14 = vector.broadcast %cst_8 : f32 to vector<512x32xf32>
    %15 = arith.maximumf %13, %14 : vector<512x32xf32>
    %16 = vector.shape_cast %15 : vector<512x32xf32> to vector<4x128x32xf32>
    %17 = arith.truncf %16 : vector<4x128x32xf32> to vector<4x128x32xbf16>
    %c0_9 = arith.constant 0 : index
    %c0_10 = arith.constant 0 : index
    %c0_11 = arith.constant 0 : index
    %c0_12 = arith.constant 0 : index
    %18 = vector.load %arg5[%c0_9, %c0_10, %c0_11, %c0_12] : memref<1x4x128x32xbf16, #tpu.memory_space<vmem>>, vector<1x4x128x32xbf16>
    %19 = vector.shape_cast %18 : vector<1x4x128x32xbf16> to vector<4x128x32xbf16>
    %20 = vector.shape_cast %17 : vector<4x128x32xbf16> to vector<1x4x128x32xbf16>
    tpu.vector_store %arg5[%c0_9, %c0_10, %c0_11, %c0_12], %20 {strides = array<i32>} : memref<1x4x128x32xbf16, #tpu.memory_space<vmem>>, vector<1x4x128x32xbf16>,
    return
  }
  func.func @transform_0(%arg0: i32, %arg1: i32) -> (i32, i32, i32, i32) {
    %c0_i32 = arith.constant 0 : i32
    %c0_i32_0 = arith.constant 0 : i32
    %c0_i32_1 = arith.constant 0 : i32
    return %arg0, %c0_i32, %arg1, %c0_i32_0 : i32, i32, i32, i32
  }
  func.func @transform_1(%arg0: i32, %arg1: i32) -> (i32, i32) {
    %c0_i32 = arith.constant 0 : i32
    %c0_i32_0 = arith.constant 0 : i32
    %c0_i32_1 = arith.constant 0 : i32
    return %c0_i32, %c0_i32_0 : i32, i32
  }
  func.func @transform_2(%arg0: i32, %arg1: i32) -> (i32, i32) {
    %c0_i32 = arith.constant 0 : i32
    %c0_i32_0 = arith.constant 0 : i32
    %c0_i32_1 = arith.constant 0 : i32
    return %c0_i32, %c0_i32_0 : i32, i32
  }
  func.func @transform_3(%arg0: i32, %arg1: i32) -> (i32, i32, i32, i32) {
    %c0_i32 = arith.constant 0 : i32
    %c0_i32_0 = arith.constant 0 : i32
    %c0_i32_1 = arith.constant 0 : i32
    return %arg0, %c0_i32, %arg1, %c0_i32_0 : i32, i32, i32, i32
  }
}

</mosaic_0001>

<llo_original>
// kernel: _lambda_.3
$region0: #{_lambda_.3}
  #allocation0 [shape = 'u32[]', space=smem, size = 0x4, offset = 0x4, fixed_abs, tag = 'smem constant byte address 0x4 - core index']
  #allocation1 [shape = 'u32[72,128]{1,0:T(1,128)}', space=vmem, size = 0x9000, scoped, tag = 'internal scratch']
  %s0 = inlined_call_operand.vmem [shape: bf16[2,4,256,32], index: 0, kind: input, shape index: {}]
  %s1 = inlined_call_operand.vmem [shape: bf16[96,32], index: 1, kind: input, shape index: {}]
  %s2 = inlined_call_operand.vmem [shape: f32[1,32], index: 2, kind: input, shape index: {}]
  %s3 = inlined_call_operand.vmem [shape: bf16[2,4,256,32], index: 3, kind: output, shape index: {}]
  %s4 = sld [smem:[#allocation0]]
  $region123: #{_lambda_.3} parent=0
    _
  %s6 = ssub.s32 1, %s4
  %s7 = scalar_select 0, %s6, %s4
  $region1: #{_lambda_.3} parent=0
    #allocation2 [shape = 'u8[262144]{0}', space=vmem, size = 0x40000, scoped, tag = 'input window, operand 0']
    #allocation3 [shape = 'u8[262144]{0}', space=vmem, size = 0x40000, scoped, tag = 'output window, operand 0']
    loop: start=0, step=1, limit=6
    $region2: #{_lambda_.3} parent=1 // loop_pre_header
      _
    $region3: #{_lambda_.3} parent=1 // loop_header
      %s9 = sphi 0, %s13
      %p10 = scmp.ge.s32.totalorder %s9, 6
      %s16 = sphi 0, %s28
      %s17 = sphi 0, %s24
      %s18 = sphi 0, %s16
      %s19 = sphi 0, %s17
      %s20 = sphi 0, %s18
      %s21 = sphi 0, %s19
      %s33 = sphi 0, %s35
      %s36 = sphi 0, %s33
      %s37 = sphi 0, %s36
      %s53 = sphi 0, %s37
      %s57 = sphi 0, %s57
      %s59 = sphi 0, %s57
      %s60 = sphi 0, %s59
      %s74 = sphi 0, %s60
      %s78 = sphi 0, %s78
      %s80 = sphi 0, %s78
      %s81 = sphi 0, %s80
      %s95 = sphi 0, %s81
      %s103 = sphi 0, %s105
      %s106 = sphi 0, %s103
      %s107 = sphi 0, %s106
      %s123 = sphi 0, %s107
    $region4: #{_lambda_.3} parent=1 // loop_header_branch
      %12 = sbr.rel (%p10) target = $region8
    $region5: #{_lambda_.3} parent=1 // loop_body
      %s14 = ssub.s32 %s9, 1
      %s15 = ssub.s32 %s9, 2
      %s22 = sadd.s32 1, %s17
      %p23 = scmp.ge.s32.totalorder %s22, 2
      %s24 = scalar_select %p23, 0, %s22
      %s25 = sadd.s32 1, %s16
      %s26 = scalar_select %p23, %s25, %s16
      %p27 = scmp.ge.s32.totalorder %s26, 2
      %s28 = scalar_select %p27, 0, %s26
      %s29 = ssub.s32 %s16, %s28
      %s30 = ssub.s32 %s17, %s24
      %s31 = sor.u32 %s29, %s30
      %p32 = scmp.eq.s32.totalorder %s31, 0
      %s34 = sadd.s32 %s33, 1
      %s35 = scalar_select %p32, %s33, %s34
      %p38 = pneg %p32
      %p39 = scmp.eq.s32.totalorder %s9, 3
      %p40 = por %p38, %p39
      %p41 = scmp.ne.s32.totalorder %s33, %s36
      %p42 = scmp.eq.s32.totalorder %s9, 0
      %p43 = por %p41, %p42
      %p44 = scmp.ne.s32.totalorder %s33, %s36
      %p45 = scmp.eq.s32.totalorder %s14, 3
      %p46 = por %p44, %p45
      %p47 = scmp.ne.s32.totalorder %s36, %s37
      %p48 = scmp.eq.s32.totalorder %s14, 0
      %p49 = por %p47, %p48
      %p50 = scmp.ne.s32.totalorder %s36, %s37
      %p51 = scmp.eq.s32.totalorder %s15, 3
      %p52 = por %p50, %p51
      %p54 = scmp.ne.s32.totalorder %s37, %s53
      %p55 = scmp.eq.s32.totalorder %s15, 0
      %p56 = por %p54, %p55
      %s58 = sadd.s32 %s57, 1
      %p61 = scmp.eq.s32.totalorder %s9, 3
      %p62 = scmp.ne.s32.totalorder %s57, %s59
      %p63 = scmp.eq.s32.totalorder %s9, 0
      %p64 = por %p62, %p63
      %p65 = scmp.ne.s32.totalorder %s57, %s59
      %p66 = scmp.eq.s32.totalorder %s14, 3
      %p67 = por %p65, %p66
      %p68 = scmp.ne.s32.totalorder %s59, %s60
      %p69 = scmp.eq.s32.totalorder %s14, 0
      %p70 = por %p68, %p69
      %p71 = scmp.ne.s32.totalorder %s59, %s60
      %p72 = scmp.eq.s32.totalorder %s15, 3
      %p73 = por %p71, %p72
      %p75 = scmp.ne.s32.totalorder %s60, %s74
      %p76 = scmp.eq.s32.totalorder %s15, 0
      %p77 = por %p75, %p76
      %s79 = sadd.s32 %s78, 1
      %p82 = scmp.eq.s32.totalorder %s9, 3
      %p83 = scmp.ne.s32.totalorder %s78, %s80
      %p84 = scmp.eq.s32.totalorder %s9, 0
      %p85 = por %p83, %p84
      %p86 = scmp.ne.s32.totalorder %s78, %s80
      %p87 = scmp.eq.s32.totalorder %s14, 3
      %p88 = por %p86, %p87
      %p89 = scmp.ne.s32.totalorder %s80, %s81
      %p90 = scmp.eq.s32.totalorder %s14, 0
      %p91 = por %p89, %p90
      %p92 = scmp.ne.s32.totalorder %s80, %s81
      %p93 = scmp.eq.s32.totalorder %s15, 3
      %p94 = por %p92, %p93
      %p96 = scmp.ne.s32.totalorder %s81, %s95
      %p97 = scmp.eq.s32.totalorder %s15, 0
      %p98 = por %p96, %p97
      %s99 = ssub.s32 %s16, %s28
      %s100 = ssub.s32 %s17, %s24
      %s101 = sor.u32 %s99, %s100
      %p102 = scmp.eq.s32.totalorder %s101, 0
      %s104 = sadd.s32 %s103, 1
      %s105 = scalar_select %p102, %s103, %s104
      %p108 = pneg %p102
      %p109 = scmp.eq.s32.totalorder %s9, 3
      %p110 = por %p108, %p109
      %p111 = scmp.ne.s32.totalorder %s103, %s106
      %p112 = scmp.eq.s32.totalorder %s9, 0
      %p113 = por %p111, %p112
      %p114 = scmp.ne.s32.totalorder %s103, %s106
      %p115 = scmp.eq.s32.totalorder %s14, 3
      %p116 = por %p114, %p115
      %p117 = scmp.ne.s32.totalorder %s106, %s107
      %p118 = scmp.eq.s32.totalorder %s14, 0
      %p119 = por %p117, %p118
      %p120 = scmp.ne.s32.totalorder %s106, %s107
      %p121 = scmp.eq.s32.totalorder %s15, 3
      %p122 = por %p120, %p121
      %p124 = scmp.ne.s32.totalorder %s107, %s123
      %p125 = scmp.eq.s32.totalorder %s15, 0
      %p126 = por %p124, %p125
      %p127 = scmp.le.s32.totalorder 1, %s9
      %p128 = scmp.lt.s32.totalorder %s9, 5
      %p129 = pnand %p127, %p128
      %p130 = pneg %p129
      // Predicated region
      $region9: #{_lambda_.3} parent=5 // pred_check
        _
      $region10: #{_lambda_.3} parent=5 // pred_check_branch
        %132 = sbr.rel (%p129) target = $region12
      $region11: #{_lambda_.3} parent=5 // pred_region
        %s133 = ssub.s32 %s9, 1
        // Predicated region
        $region13: #{_lambda_.3} parent=11 // pred_check
          %p134 = pneg %p70
        $region14: #{_lambda_.3} parent=11 // pred_check_branch
          %136 = sbr.rel (%p134) target = $region16
        $region15: #{_lambda_.3} parent=11 // pred_region
          _
        $region16: #{_lambda_.3} parent=11 // pred_fallthru
          _
        // Predicated region
        $region17: #{_lambda_.3} parent=11 // pred_check
          %p137 = pneg %p91
        $region18: #{_lambda_.3} parent=11 // pred_check_branch
          %139 = sbr.rel (%p137) target = $region20
        $region19: #{_lambda_.3} parent=11 // pred_region
          _
        $region20: #{_lambda_.3} parent=11 // pred_fallthru
          _
      $region12: #{_lambda_.3} parent=5 // pred_fallthru
        _
      %p140 = scmp.lt.s32.totalorder %s9, 4
      // Predicated region
      $region21: #{_lambda_.3} parent=5 // pred_check
        %p141 = pneg %p140
      $region22: #{_lambda_.3} parent=5 // pred_check_branch
        %143 = sbr.rel (%p141) target = $region24
      $region23: #{_lambda_.3} parent=5 // pred_region
        // Predicated region
        $region25: #{_lambda_.3} parent=23 // pred_check
          %p144 = pneg %p43
        $region26: #{_lambda_.3} parent=23 // pred_check_branch
          %146 = sbr.rel (%p144) target = $region28
        $region27: #{_lambda_.3} parent=23 // pred_region
          %s147 = sand.u32 %s33, 1
          %s148 = sand.u32 %s33, 1
          %s149 = smul.addr %s148, 256
          %s150 = scalar_lea.vmem [#allocation2], %s149
          %s151 = smul.u32 16, %s17
          %s152 = smul.addr %s16, 128
          %s153 = sadd.s32 %s151, %s152
          %s154 = smul.addr %s153, 4
          %s155 = scalar_lea.vmem %s0, %s154
          // Predicated region
          $region29: #{_lambda_.3} parent=27 // pred_check
            _
          $region30: #{_lambda_.3} parent=27 // pred_check_branch
            %157 = sbr.rel (0) target = $region32
          $region31: #{_lambda_.3} parent=27 // pred_region
            // Predicated region
            $region33: #{_lambda_.3} parent=31 // pred_check
              _
            $region34: #{_lambda_.3} parent=31 // pred_check_branch
              %159 = sbr.rel target = $region36
            $region35: #{_lambda_.3} parent=31 // pred_region
              // Predicated region
              $region48: #{_lambda_.3} parent=35 // pred_check
                _
              $region49: #{_lambda_.3} parent=35 // pred_check_branch
                %301 = sbr.rel (0) target = $region51
              $region50: #{_lambda_.3} parent=35 // pred_region
                loop: start=0, step=1, limit=1
                $region52: #{_lambda_.3} parent=50 // loop_pre_header
                  _
                $region53: #{_lambda_.3} parent=50 // loop_header
                  %s303 = sphi 0, %s307
                  %p304 = scmp.ge.s32.totalorder %s303, 1
                  %s308 = sphi %s155, %s155
                  %s309 = sphi %s150, %s150
                $region54: #{_lambda_.3} parent=50 // loop_header_branch
                  %306 = sbr.rel (%p304) target = $region58
                $region55: #{_lambda_.3} parent=50 // loop_body
                  _
                $region56: #{_lambda_.3} parent=50 // loop_footer
                  %s307 = sadd.s32 1, %s303
                $region57: #{_lambda_.3} parent=50 // loop_footer_branch
                  %302 = sbr.rel target = $region53
                $region58: #{_lambda_.3} parent=50 // loop_exit
                  _
                %s311 = ssub.s32 16, 1
                loop: start=0, step=1, limit=1
                $region59: #{_lambda_.3} parent=50 // loop_pre_header
                  _
                $region60: #{_lambda_.3} parent=50 // loop_header
                  %s313 = sphi 0, %s317
                  %p314 = scmp.ge.s32.totalorder %s313, 1
                  %s318 = sphi %s155, %s155
                  %s319 = sphi %s150, %s150
                $region61: #{_lambda_.3} parent=50 // loop_header_branch
                  %316 = sbr.rel (%p314) target = $region65
                $region62: #{_lambda_.3} parent=50 // loop_body
                  %v320 = vld [vmem:[%s318] sm:%s311]
                  %321 = vst [vmem:[%s319] sm:%s311] %v320
                  %v322 = vld [vmem:[%s318 + $0x4] sm:%s311]
                  %323 = vst [vmem:[%s319 + $0x4] sm:%s311] %v322
                  %v324 = vld [vmem:[%s318 + $0x8] sm:%s311]
                  %325 = vst [vmem:[%s319 + $0x8] sm:%s311] %v324
                  %v326 = vld [vmem:[%s318 + $0xc] sm:%s311]
                  %327 = vst [vmem:[%s319 + $0xc] sm:%s311] %v326
                  %v328 = vld [vmem:[%s318 + $0x10] sm:%s311]
                  %329 = vst [vmem:[%s319 + $0x10] sm:%s311] %v328
                  %v330 = vld [vmem:[%s318 + $0x14] sm:%s311]
                  %331 = vst [vmem:[%s319 + $0x14] sm:%s311] %v330
                  %v332 = vld [vmem:[%s318 + $0x18] sm:%s311]
                  %333 = vst [vmem:[%s319 + $0x18] sm:%s311] %v332
                  %v334 = vld [vmem:[%s318 + $0x1c] sm:%s311]
                  %335 = vst [vmem:[%s319 + $0x1c] sm:%s311] %v334
                  %v336 = vld [vmem:[%s318 + $0x20] sm:%s311]
                  %337 = vst [vmem:[%s319 + $0x20] sm:%s311] %v336
                  %v338 = vld [vmem:[%s318 + $0x24] sm:%s311]
                  %339 = vst [vmem:[%s319 + $0x24] sm:%s311] %v338
                  %v340 = vld [vmem:[%s318 + $0x28] sm:%s311]
                  %341 = vst [vmem:[%s319 + $0x28] sm:%s311] %v340
                  %v342 = vld [vmem:[%s318 + $0x2c] sm:%s311]
                  %343 = vst [vmem:[%s319 + $0x2c] sm:%s311] %v342
                  %v344 = vld [vmem:[%s318 + $0x30] sm:%s311]
                  %345 = vst [vmem:[%s319 + $0x30] sm:%s311] %v344
                  %v346 = vld [vmem:[%s318 + $0x34] sm:%s311]
                  %347 = vst [vmem:[%s319 + $0x34] sm:%s311] %v346
                  %v348 = vld [vmem:[%s318 + $0x38] sm:%s311]
                  %349 = vst [vmem:[%s319 + $0x38] sm:%s311] %v348
                  %v350 = vld [vmem:[%s318 + $0x3c] sm:%s311]
                  %351 = vst [vmem:[%s319 + $0x3c] sm:%s311] %v350
                  %v352 = vld [vmem:[%s318 + $0x80] sm:%s311]
                  %353 = vst [vmem:[%s319 + $0x40] sm:%s311] %v352
                  %v354 = vld [vmem:[%s318 + $0x84] sm:%s311]
                  %355 = vst [vmem:[%s319 + $0x44] sm:%s311] %v354
                  %v356 = vld [vmem:[%s318 + $0x88] sm:%s311]
                  %357 = vst [vmem:[%s319 + $0x48] sm:%s311] %v356
                  %v358 = vld [vmem:[%s318 + $0x8c] sm:%s311]
                  %359 = vst [vmem:[%s319 + $0x4c] sm:%s311] %v358
                  %v360 = vld [vmem:[%s318 + $0x90] sm:%s311]
                  %361 = vst [vmem:[%s319 + $0x50] sm:%s311] %v360
                  %v362 = vld [vmem:[%s318 + $0x94] sm:%s311]
                  %363 = vst [vmem:[%s319 + $0x54] sm:%s311] %v362
                  %v364 = vld [vmem:[%s318 + $0x98] sm:%s311]
                  %365 = vst [vmem:[%s319 + $0x58] sm:%s311] %v364
                  %v366 = vld [vmem:[%s318 + $0x9c] sm:%s311]
                  %367 = vst [vmem:[%s319 + $0x5c] sm:%s311] %v366
                  %v368 = vld [vmem:[%s318 + $0xa0] sm:%s311]
                  %369 = vst [vmem:[%s319 + $0x60] sm:%s311] %v368
                  %v370 = vld [vmem:[%s318 + $0xa4] sm:%s311]
                  %371 = vst [vmem:[%s319 + $0x64] sm:%s311] %v370
                  %v372 = vld [vmem:[%s318 + $0xa8] sm:%s311]
                  %373 = vst [vmem:[%s319 + $0x68] sm:%s311] %v372
                  %v374 = vld [vmem:[%s318 + $0xac] sm:%s311]
                  %375 = vst [vmem:[%s319 + $0x6c] sm:%s311] %v374
                  %v376 = vld [vmem:[%s318 + $0xb0] sm:%s311]
                  %377 = vst [vmem:[%s319 + $0x70] sm:%s311] %v376
                  %v378 = vld [vmem:[%s318 + $0xb4] sm:%s311]
                  %379 = vst [vmem:[%s319 + $0x74] sm:%s311] %v378
                  %v380 = vld [vmem:[%s318 + $0xb8] sm:%s311]
                  %381 = vst [vmem:[%s319 + $0x78] sm:%s311] %v380
                  %v382 = vld [vmem:[%s318 + $0xbc] sm:%s311]
                  %383 = vst [vmem:[%s319 + $0x7c] sm:%s311] %v382
                  %v384 = vld [vmem:[%s318 + $0x100] sm:%s311]
                  %385 = vst [vmem:[%s319 + $0x80] sm:%s311] %v384
                  %v386 = vld [vmem:[%s318 + $0x104] sm:%s311]
                  %387 = vst [vmem:[%s319 + $0x84] sm:%s311] %v386
                  %v388 = vld [vmem:[%s318 + $0x108] sm:%s311]
                  %389 = vst [vmem:[%s319 + $0x88] sm:%s311] %v388
                  %v390 = vld [vmem:[%s318 + $0x10c] sm:%s311]
                  %391 = vst [vmem:[%s319 + $0x8c] sm:%s311] %v390
                  %v392 = vld [vmem:[%s318 + $0x110] sm:%s311]
                  %393 = vst [vmem:[%s319 + $0x90] sm:%s311] %v392
                  %v394 = vld [vmem:[%s318 + $0x114] sm:%s311]
                  %395 = vst [vmem:[%s319 + $0x94] sm:%s311] %v394
                  %v396 = vld [vmem:[%s318 + $0x118] sm:%s311]
                  %397 = vst [vmem:[%s319 + $0x98] sm:%s311] %v396
                  %v398 = vld [vmem:[%s318 + $0x11c] sm:%s311]
                  %399 = vst [vmem:[%s319 + $0x9c] sm:%s311] %v398
                  %v400 = vld [vmem:[%s318 + $0x120] sm:%s311]
                  %401 = vst [vmem:[%s319 + $0xa0] sm:%s311] %v400
                  %v402 = vld [vmem:[%s318 + $0x124] sm:%s311]
                  %403 = vst [vmem:[%s319 + $0xa4] sm:%s311] %v402
                  %v404 = vld [vmem:[%s318 + $0x128] sm:%s311]
                  %405 = vst [vmem:[%s319 + $0xa8] sm:%s311] %v404
                  %v406 = vld [vmem:[%s318 + $0x12c] sm:%s311]
                  %407 = vst [vmem:[%s319 + $0xac] sm:%s311] %v406
                  %v408 = vld [vmem:[%s318 + $0x130] sm:%s311]
                  %409 = vst [vmem:[%s319 + $0xb0] sm:%s311] %v408
                  %v410 = vld [vmem:[%s318 + $0x134] sm:%s311]
                  %411 = vst [vmem:[%s319 + $0xb4] sm:%s311] %v410
                  %v412 = vld [vmem:[%s318 + $0x138] sm:%s311]
                  %413 = vst [vmem:[%s319 + $0xb8] sm:%s311] %v412
                  %v414 = vld [vmem:[%s318 + $0x13c] sm:%s311]
                  %415 = vst [vmem:[%s319 + $0xbc] sm:%s311] %v414
                  %v416 = vld [vmem:[%s318 + $0x180] sm:%s311]
                  %417 = vst [vmem:[%s319 + $0xc0] sm:%s311] %v416
                  %v418 = vld [vmem:[%s318 + $0x184] sm:%s311]
                  %419 = vst [vmem:[%s319 + $0xc4] sm:%s311] %v418
                  %v420 = vld [vmem:[%s318 + $0x188] sm:%s311]
                  %421 = vst [vmem:[%s319 + $0xc8] sm:%s311] %v420
                  %v422 = vld [vmem:[%s318 + $0x18c] sm:%s311]
                  %423 = vst [vmem:[%s319 + $0xcc] sm:%s311] %v422
                  %v424 = vld [vmem:[%s318 + $0x190] sm:%s311]
                  %425 = vst [vmem:[%s319 + $0xd0] sm:%s311] %v424
                  %v426 = vld [vmem:[%s318 + $0x194] sm:%s311]
                  %427 = vst [vmem:[%s319 + $0xd4] sm:%s311] %v426
                  %v428 = vld [vmem:[%s318 + $0x198] sm:%s311]
                  %429 = vst [vmem:[%s319 + $0xd8] sm:%s311] %v428
                  %v430 = vld [vmem:[%s318 + $0x19c] sm:%s311]
                  %431 = vst [vmem:[%s319 + $0xdc] sm:%s311] %v430
                  %v432 = vld [vmem:[%s318 + $0x1a0] sm:%s311]
                  %433 = vst [vmem:[%s319 + $0xe0] sm:%s311] %v432
                  %v434 = vld [vmem:[%s318 + $0x1a4] sm:%s311]
                  %435 = vst [vmem:[%s319 + $0xe4] sm:%s311] %v434
                  %v436 = vld [vmem:[%s318 + $0x1a8] sm:%s311]
                  %437 = vst [vmem:[%s319 + $0xe8] sm:%s311] %v436
                  %v438 = vld [vmem:[%s318 + $0x1ac] sm:%s311]
                  %439 = vst [vmem:[%s319 + $0xec] sm:%s311] %v438
                  %v440 = vld [vmem:[%s318 + $0x1b0] sm:%s311]
                  %441 = vst [vmem:[%s319 + $0xf0] sm:%s311] %v440
                  %v442 = vld [vmem:[%s318 + $0x1b4] sm:%s311]
                  %443 = vst [vmem:[%s319 + $0xf4] sm:%s311] %v442
                  %v444 = vld [vmem:[%s318 + $0x1b8] sm:%s311]
                  %445 = vst [vmem:[%s319 + $0xf8] sm:%s311] %v444
                  %v446 = vld [vmem:[%s318 + $0x1bc] sm:%s311]
                  %447 = vst [vmem:[%s319 + $0xfc] sm:%s311] %v446
                $region63: #{_lambda_.3} parent=50 // loop_footer
                  %s317 = sadd.s32 1, %s313
                $region64: #{_lambda_.3} parent=50 // loop_footer_branch
                  %312 = sbr.rel target = $region60
                $region65: #{_lambda_.3} parent=50 // loop_exit
                  _
              $region51: #{_lambda_.3} parent=35 // pred_fallthru
                _
            $region36: #{_lambda_.3} parent=31 // pred_fallthru
              _
            // Predicated region
            $region37: #{_lambda_.3} parent=31 // pred_check
              _
            $region38: #{_lambda_.3} parent=31 // pred_check_branch
              %161 = sbr.rel (0) target = $region40
            $region39: #{_lambda_.3} parent=31 // pred_region
              %s163 = ssub.s32 16, 1
              loop: start=0, step=1, limit=1
              $region41: #{_lambda_.3} parent=39 // loop_pre_header
                _
              $region42: #{_lambda_.3} parent=39 // loop_header
                %s165 = sphi 0, %s169
                %p166 = scmp.ge.s32.totalorder %s165, 1
                %s170 = sphi %s155, %s155
                %s171 = sphi %s150, %s150
              $region43: #{_lambda_.3} parent=39 // loop_header_branch
                %168 = sbr.rel (%p166) target = $region47
              $region44: #{_lambda_.3} parent=39 // loop_body
                %v172 = vld [vmem:[%s170] sm:%s163]
                %173 = vst [vmem:[%s171] sm:%s163] %v172
                %v174 = vld [vmem:[%s170 + $0x4] sm:%s163]
                %175 = vst [vmem:[%s171 + $0x4] sm:%s163] %v174
                %v176 = vld [vmem:[%s170 + $0x8] sm:%s163]
                %177 = vst [vmem:[%s171 + $0x8] sm:%s163] %v176
                %v178 = vld [vmem:[%s170 + $0xc] sm:%s163]
                %179 = vst [vmem:[%s171 + $0xc] sm:%s163] %v178
                %v180 = vld [vmem:[%s170 + $0x10] sm:%s163]
                %181 = vst [vmem:[%s171 + $0x10] sm:%s163] %v180
                %v182 = vld [vmem:[%s170 + $0x14] sm:%s163]
                %183 = vst [vmem:[%s171 + $0x14] sm:%s163] %v182
                %v184 = vld [vmem:[%s170 + $0x18] sm:%s163]
                %185 = vst [vmem:[%s171 + $0x18] sm:%s163] %v184
                %v186 = vld [vmem:[%s170 + $0x1c] sm:%s163]
                %187 = vst [vmem:[%s171 + $0x1c] sm:%s163] %v186
                %v188 = vld [vmem:[%s170 + $0x20] sm:%s163]
                %189 = vst [vmem:[%s171 + $0x20] sm:%s163] %v188
                %v190 = vld [vmem:[%s170 + $0x24] sm:%s163]
                %191 = vst [vmem:[%s171 + $0x24] sm:%s163] %v190
                %v192 = vld [vmem:[%s170 + $0x28] sm:%s163]
                %193 = vst [vmem:[%s171 + $0x28] sm:%s163] %v192
                %v194 = vld [vmem:[%s170 + $0x2c] sm:%s163]
                %195 = vst [vmem:[%s171 + $0x2c] sm:%s163] %v194
                %v196 = vld [vmem:[%s170 + $0x30] sm:%s163]
                %197 = vst [vmem:[%s171 + $0x30] sm:%s163] %v196
                %v198 = vld [vmem:[%s170 + $0x34] sm:%s163]
                %199 = vst [vmem:[%s171 + $0x34] sm:%s163] %v198
                %v200 = vld [vmem:[%s170 + $0x38] sm:%s163]
                %201 = vst [vmem:[%s171 + $0x38] sm:%s163] %v200
                %v202 = vld [vmem:[%s170 + $0x3c] sm:%s163]
                %203 = vst [vmem:[%s171 + $0x3c] sm:%s163] %v202
                %v204 = vld [vmem:[%s170 + $0x80] sm:%s163]
                %205 = vst [vmem:[%s171 + $0x40] sm:%s163] %v204
                %v206 = vld [vmem:[%s170 + $0x84] sm:%s163]
                %207 = vst [vmem:[%s171 + $0x44] sm:%s163] %v206
                %v208 = vld [vmem:[%s170 + $0x88] sm:%s163]
                %209 = vst [vmem:[%s171 + $0x48] sm:%s163] %v208
                %v210 = vld [vmem:[%s170 + $0x8c] sm:%s163]
                %211 = vst [vmem:[%s171 + $0x4c] sm:%s163] %v210
                %v212 = vld [vmem:[%s170 + $0x90] sm:%s163]
                %213 = vst [vmem:[%s171 + $0x50] sm:%s163] %v212
                %v214 = vld [vmem:[%s170 + $0x94] sm:%s163]
                %215 = vst [vmem:[%s171 + $0x54] sm:%s163] %v214
                %v216 = vld [vmem:[%s170 + $0x98] sm:%s163]
                %217 = vst [vmem:[%s171 + $0x58] sm:%s163] %v216
                %v218 = vld [vmem:[%s170 + $0x9c] sm:%s163]
                %219 = vst [vmem:[%s171 + $0x5c] sm:%s163] %v218
                %v220 = vld [vmem:[%s170 + $0xa0] sm:%s163]
                %221 = vst [vmem:[%s171 + $0x60] sm:%s163] %v220
                %v222 = vld [vmem:[%s170 + $0xa4] sm:%s163]
                %223 = vst [vmem:[%s171 + $0x64] sm:%s163] %v222
                %v224 = vld [vmem:[%s170 + $0xa8] sm:%s163]
                %225 = vst [vmem:[%s171 + $0x68] sm:%s163] %v224
                %v226 = vld [vmem:[%s170 + $0xac] sm:%s163]
                %227 = vst [vmem:[%s171 + $0x6c] sm:%s163] %v226
                %v228 = vld [vmem:[%s170 + $0xb0] sm:%s163]
                %229 = vst [vmem:[%s171 + $0x70] sm:%s163] %v228
                %v230 = vld [vmem:[%s170 + $0xb4] sm:%s163]
                %231 = vst [vmem:[%s171 + $0x74] sm:%s163] %v230
                %v232 = vld [vmem:[%s170 + $0xb8] sm:%s163]
                %233 = vst [vmem:[%s171 + $0x78] sm:%s163] %v232
                %v234 = vld [vmem:[%s170 + $0xbc] sm:%s163]
                %235 = vst [vmem:[%s171 + $0x7c] sm:%s163] %v234
                %v236 = vld [vmem:[%s170 + $0x100] sm:%s163]
                %237 = vst [vmem:[%s171 + $0x80] sm:%s163] %v236
                %v238 = vld [vmem:[%s170 + $0x104] sm:%s163]
                %239 = vst [vmem:[%s171 + $0x84] sm:%s163] %v238
                %v240 = vld [vmem:[%s170 + $0x108] sm:%s163]
                %241 = vst [vmem:[%s171 + $0x88] sm:%s163] %v240
                %v242 = vld [vmem:[%s170 + $0x10c] sm:%s163]
                %243 = vst [vmem:[%s171 + $0x8c] sm:%s163] %v242
                %v244 = vld [vmem:[%s170 + $0x110] sm:%s163]
                %245 = vst [vmem:[%s171 + $0x90] sm:%s163] %v244
                %v246 = vld [vmem:[%s170 + $0x114] sm:%s163]
                %247 = vst [vmem:[%s171 + $0x94] sm:%s163] %v246
                %v248 = vld [vmem:[%s170 + $0x118] sm:%s163]
                %249 = vst [vmem:[%s171 + $0x98] sm:%s163] %v248
                %v250 = vld [vmem:[%s170 + $0x11c] sm:%s163]
                %251 = vst [vmem:[%s171 + $0x9c] sm:%s163] %v250
                %v252 = vld [vmem:[%s170 + $0x120] sm:%s163]
                %253 = vst [vmem:[%s171 + $0xa0] sm:%s163] %v252
                %v254 = vld [vmem:[%s170 + $0x124] sm:%s163]
                %255 = vst [vmem:[%s171 + $0xa4] sm:%s163] %v254
                %v256 = vld [vmem:[%s170 + $0x128] sm:%s163]
                %257 = vst [vmem:[%s171 + $0xa8] sm:%s163] %v256
                %v258 = vld [vmem:[%s170 + $0x12c] sm:%s163]
                %259 = vst [vmem:[%s171 + $0xac] sm:%s163] %v258
                %v260 = vld [vmem:[%s170 + $0x130] sm:%s163]
                %261 = vst [vmem:[%s171 + $0xb0] sm:%s163] %v260
                %v262 = vld [vmem:[%s170 + $0x134] sm:%s163]
                %263 = vst [vmem:[%s171 + $0xb4] sm:%s163] %v262
                %v264 = vld [vmem:[%s170 + $0x138] sm:%s163]
                %265 = vst [vmem:[%s171 + $0xb8] sm:%s163] %v264
                %v266 = vld [vmem:[%s170 + $0x13c] sm:%s163]
                %267 = vst [vmem:[%s171 + $0xbc] sm:%s163] %v266
                %v268 = vld [vmem:[%s170 + $0x180] sm:%s163]
                %269 = vst [vmem:[%s171 + $0xc0] sm:%s163] %v268
                %v270 = vld [vmem:[%s170 + $0x184] sm:%s163]
                %271 = vst [vmem:[%s171 + $0xc4] sm:%s163] %v270
                %v272 = vld [vmem:[%s170 + $0x188] sm:%s163]
                %273 = vst [vmem:[%s171 + $0xc8] sm:%s163] %v272
                %v274 = vld [vmem:[%s170 + $0x18c] sm:%s163]
                %275 = vst [vmem:[%s171 + $0xcc] sm:%s163] %v274
                %v276 = vld [vmem:[%s170 + $0x190] sm:%s163]
                %277 = vst [vmem:[%s171 + $0xd0] sm:%s163] %v276
                %v278 = vld [vmem:[%s170 + $0x194] sm:%s163]
                %279 = vst [vmem:[%s171 + $0xd4] sm:%s163] %v278
                %v280 = vld [vmem:[%s170 + $0x198] sm:%s163]
                %281 = vst [vmem:[%s171 + $0xd8] sm:%s163] %v280
                %v282 = vld [vmem:[%s170 + $0x19c] sm:%s163]
                %283 = vst [vmem:[%s171 + $0xdc] sm:%s163] %v282
                %v284 = vld [vmem:[%s170 + $0x1a0] sm:%s163]
                %285 = vst [vmem:[%s171 + $0xe0] sm:%s163] %v284
                %v286 = vld [vmem:[%s170 + $0x1a4] sm:%s163]
                %287 = vst [vmem:[%s171 + $0xe4] sm:%s163] %v286
                %v288 = vld [vmem:[%s170 + $0x1a8] sm:%s163]
                %289 = vst [vmem:[%s171 + $0xe8] sm:%s163] %v288
                %v290 = vld [vmem:[%s170 + $0x1ac] sm:%s163]
                %291 = vst [vmem:[%s171 + $0xec] sm:%s163] %v290
                %v292 = vld [vmem:[%s170 + $0x1b0] sm:%s163]
                %293 = vst [vmem:[%s171 + $0xf0] sm:%s163] %v292
                %v294 = vld [vmem:[%s170 + $0x1b4] sm:%s163]
                %295 = vst [vmem:[%s171 + $0xf4] sm:%s163] %v294
                %v296 = vld [vmem:[%s170 + $0x1b8] sm:%s163]
                %297 = vst [vmem:[%s171 + $0xf8] sm:%s163] %v296
                %v298 = vld [vmem:[%s170 + $0x1bc] sm:%s163]
                %299 = vst [vmem:[%s171 + $0xfc] sm:%s163] %v298
              $region45: #{_lambda_.3} parent=39 // loop_footer
                %s169 = sadd.s32 1, %s165
              $region46: #{_lambda_.3} parent=39 // loop_footer_branch
                %164 = sbr.rel target = $region42
              $region47: #{_lambda_.3} parent=39 // loop_exit
                _
            $region40: #{_lambda_.3} parent=31 // pred_fallthru
              _
          $region32: #{_lambda_.3} parent=27 // pred_fallthru
            _
          %448 = vnop
        $region28: #{_lambda_.3} parent=23 // pred_fallthru
          _
      $region24: #{_lambda_.3} parent=5 // pred_fallthru
        _
      %p449 = scmp.le.s32.totalorder 1, %s9
      %p450 = scmp.lt.s32.totalorder %s9, 5
      %p451 = pnand %p449, %p450
      %p452 = pneg %p451
      // Predicated region
      $region66: #{_lambda_.3} parent=5 // pred_check
        _
      $region67: #{_lambda_.3} parent=5 // pred_check_branch
        %454 = sbr.rel (%p451) target = $region69
      $region68: #{_lambda_.3} parent=5 // pred_region
        %s455 = ssub.s32 %s9, 1
        %s456 = sand.u32 %s36, 1
        %s457 = sand.u32 %s36, 1
        %s458 = smul.addr %s457, 256
        %s459 = scalar_lea.vmem [#allocation2], %s458
        // Predicated region
        $region70: #{_lambda_.3} parent=68 // pred_check
          %p460 = pneg %p49
        $region71: #{_lambda_.3} parent=68 // pred_check_branch
          %462 = sbr.rel (%p460) target = $region73
        $region72: #{_lambda_.3} parent=68 // pred_region
          _
        $region73: #{_lambda_.3} parent=68 // pred_fallthru
          _
        %s463 = sand.u32 %s36, 1
        %s464 = sand.u32 %s36, 1
        %s465 = smul.addr %s464, 256
        %s466 = scalar_lea.vmem [#allocation2], %s465
        %p467 = pneg %p49
        %p468 = pneg %p46
        %p469 = pneg %p70
        %p470 = pneg %p67
        %p471 = pneg %p91
        %p472 = pneg %p88
        %p473 = pneg %p119
        %p474 = pneg %p116
        %s475 = sand.u32 %s106, 1
        %s476 = sand.u32 %s106, 1
        %s477 = smul.addr %s476, 256
        %s478 = scalar_lea.vmem [#allocation3], %s477
        %s479 = smul.u32 16, %s19
        %s480 = smul.u32 16, %s19
        %v482 = vld [vmem:[%s459] sm:$0xf]
        %v483 = vld [vmem:[%s459 + $0x4] sm:$0xf]
        %v484 = vld [vmem:[%s459 + $0x8] sm:$0xf]
        %v485 = vld [vmem:[%s459 + $0xc] sm:$0xf]
        %v486 = vld [vmem:[%s459 + $0x10] sm:$0xf]
        %v487 = vld [vmem:[%s459 + $0x14] sm:$0xf]
        %v488 = vld [vmem:[%s459 + $0x18] sm:$0xf]
        %v489 = vld [vmem:[%s459 + $0x1c] sm:$0xf]
        %v490 = vld [vmem:[%s459 + $0x20] sm:$0xf]
        %v491 = vld [vmem:[%s459 + $0x24] sm:$0xf]
        %v492 = vld [vmem:[%s459 + $0x28] sm:$0xf]
        %v493 = vld [vmem:[%s459 + $0x2c] sm:$0xf]
        %v494 = vld [vmem:[%s459 + $0x30] sm:$0xf]
        %v495 = vld [vmem:[%s459 + $0x34] sm:$0xf]
        %v496 = vld [vmem:[%s459 + $0x38] sm:$0xf]
        %v497 = vld [vmem:[%s459 + $0x3c] sm:$0xf]
        %v498 = vld [vmem:[%s459 + $0x40] sm:$0xf]
        %v499 = vld [vmem:[%s459 + $0x44] sm:$0xf]
        %v500 = vld [vmem:[%s459 + $0x48] sm:$0xf]
        %v501 = vld [vmem:[%s459 + $0x4c] sm:$0xf]
        %v502 = vld [vmem:[%s459 + $0x50] sm:$0xf]
        %v503 = vld [vmem:[%s459 + $0x54] sm:$0xf]
        %v504 = vld [vmem:[%s459 + $0x58] sm:$0xf]
        %v505 = vld [vmem:[%s459 + $0x5c] sm:$0xf]
        %v506 = vld [vmem:[%s459 + $0x60] sm:$0xf]
        %v507 = vld [vmem:[%s459 + $0x64] sm:$0xf]
        %v508 = vld [vmem:[%s459 + $0x68] sm:$0xf]
        %v509 = vld [vmem:[%s459 + $0x6c] sm:$0xf]
        %v510 = vld [vmem:[%s459 + $0x70] sm:$0xf]
        %v511 = vld [vmem:[%s459 + $0x74] sm:$0xf]
        %v512 = vld [vmem:[%s459 + $0x78] sm:$0xf]
        %v513 = vld [vmem:[%s459 + $0x7c] sm:$0xf]
        %v514 = vld [vmem:[%s459 + $0x80] sm:$0xf]
        %v515 = vld [vmem:[%s459 + $0x84] sm:$0xf]
        %v516 = vld [vmem:[%s459 + $0x88] sm:$0xf]
        %v517 = vld [vmem:[%s459 + $0x8c] sm:$0xf]
        %v518 = vld [vmem:[%s459 + $0x90] sm:$0xf]
        %v519 = vld [vmem:[%s459 + $0x94] sm:$0xf]
        %v520 = vld [vmem:[%s459 + $0x98] sm:$0xf]
        %v521 = vld [vmem:[%s459 + $0x9c] sm:$0xf]
        %v522 = vld [vmem:[%s459 + $0xa0] sm:$0xf]
        %v523 = vld [vmem:[%s459 + $0xa4] sm:$0xf]
        %v524 = vld [vmem:[%s459 + $0xa8] sm:$0xf]
        %v525 = vld [vmem:[%s459 + $0xac] sm:$0xf]
        %v526 = vld [vmem:[%s459 + $0xb0] sm:$0xf]
        %v527 = vld [vmem:[%s459 + $0xb4] sm:$0xf]
        %v528 = vld [vmem:[%s459 + $0xb8] sm:$0xf]
        %v529 = vld [vmem:[%s459 + $0xbc] sm:$0xf]
        %v530 = vld [vmem:[%s459 + $0xc0] sm:$0xf]
        %v531 = vld [vmem:[%s459 + $0xc4] sm:$0xf]
        %v532 = vld [vmem:[%s459 + $0xc8] sm:$0xf]
        %v533 = vld [vmem:[%s459 + $0xcc] sm:$0xf]
        %v534 = vld [vmem:[%s459 + $0xd0] sm:$0xf]
        %v535 = vld [vmem:[%s459 + $0xd4] sm:$0xf]
        %v536 = vld [vmem:[%s459 + $0xd8] sm:$0xf]
        %v537 = vld [vmem:[%s459 + $0xdc] sm:$0xf]
        %v538 = vld [vmem:[%s459 + $0xe0] sm:$0xf]
        %v539 = vld [vmem:[%s459 + $0xe4] sm:$0xf]
        %v540 = vld [vmem:[%s459 + $0xe8] sm:$0xf]
        %v541 = vld [vmem:[%s459 + $0xec] sm:$0xf]
        %v542 = vld [vmem:[%s459 + $0xf0] sm:$0xf]
        %v543 = vld [vmem:[%s459 + $0xf4] sm:$0xf]
        %v544 = vld [vmem:[%s459 + $0xf8] sm:$0xf]
        %v545 = vld [vmem:[%s459 + $0xfc] sm:$0xf]
        %v610 = vunpack.c.l.b16 %v482
        %v611 = vunpack.c.l.b16 %v483
        %v612 = vunpack.c.l.b16 %v484
        %v613 = vunpack.c.l.b16 %v485
        %v614 = vunpack.c.l.b16 %v486
        %v615 = vunpack.c.l.b16 %v487
        %v616 = vunpack.c.l.b16 %v488
        %v617 = vunpack.c.l.b16 %v489
        %v618 = vunpack.c.l.b16 %v490
        %v619 = vunpack.c.l.b16 %v491
        %v620 = vunpack.c.l.b16 %v492
        %v621 = vunpack.c.l.b16 %v493
        %v622 = vunpack.c.l.b16 %v494
        %v623 = vunpack.c.l.b16 %v495
        %v624 = vunpack.c.l.b16 %v496
        %v625 = vunpack.c.l.b16 %v497
        %v626 = vunpack.c.l.b16 %v498
        %v627 = vunpack.c.l.b16 %v499
        %v628 = vunpack.c.l.b16 %v500
        %v629 = vunpack.c.l.b16 %v501
        %v630 = vunpack.c.l.b16 %v502
        %v631 = vunpack.c.l.b16 %v503
        %v632 = vunpack.c.l.b16 %v504
        %v633 = vunpack.c.l.b16 %v505
        %v634 = vunpack.c.l.b16 %v506
        %v635 = vunpack.c.l.b16 %v507
        %v636 = vunpack.c.l.b16 %v508
        %v637 = vunpack.c.l.b16 %v509
        %v638 = vunpack.c.l.b16 %v510
        %v639 = vunpack.c.l.b16 %v511
        %v640 = vunpack.c.l.b16 %v512
        %v641 = vunpack.c.l.b16 %v513
        %v642 = vunpack.c.l.b16 %v514
        %v643 = vunpack.c.l.b16 %v515
        %v644 = vunpack.c.l.b16 %v516
        %v645 = vunpack.c.l.b16 %v517
        %v646 = vunpack.c.l.b16 %v518
        %v647 = vunpack.c.l.b16 %v519
        %v648 = vunpack.c.l.b16 %v520
        %v649 = vunpack.c.l.b16 %v521
        %v650 = vunpack.c.l.b16 %v522
        %v651 = vunpack.c.l.b16 %v523
        %v652 = vunpack.c.l.b16 %v524
        %v653 = vunpack.c.l.b16 %v525
        %v654 = vunpack.c.l.b16 %v526
        %v655 = vunpack.c.l.b16 %v527
        %v656 = vunpack.c.l.b16 %v528
        %v657 = vunpack.c.l.b16 %v529
        %v658 = vunpack.c.l.b16 %v530
        %v659 = vunpack.c.l.b16 %v531
        %v660 = vunpack.c.l.b16 %v532
        %v661 = vunpack.c.l.b16 %v533
        %v662 = vunpack.c.l.b16 %v534
        %v663 = vunpack.c.l.b16 %v535
        %v664 = vunpack.c.l.b16 %v536
        %v665 = vunpack.c.l.b16 %v537
        %v666 = vunpack.c.l.b16 %v538
        %v667 = vunpack.c.l.b16 %v539
        %v668 = vunpack.c.l.b16 %v540
        %v669 = vunpack.c.l.b16 %v541
        %v670 = vunpack.c.l.b16 %v542
        %v671 = vunpack.c.l.b16 %v543
        %v672 = vunpack.c.l.b16 %v544
        %v673 = vunpack.c.l.b16 %v545
        %v674 = vpack.c.b16 %v611, %v610
        %v675 = vpack.c.b16 %v613, %v612
        %v676 = vpack.c.b16 %v615, %v614
        %v677 = vpack.c.b16 %v617, %v616
        %v678 = vpack.c.b16 %v619, %v618
        %v679 = vpack.c.b16 %v621, %v620
        %v680 = vpack.c.b16 %v623, %v622
        %v681 = vpack.c.b16 %v625, %v624
        %v682 = vpack.c.b16 %v627, %v626
        %v683 = vpack.c.b16 %v629, %v628
        %v684 = vpack.c.b16 %v631, %v630
        %v685 = vpack.c.b16 %v633, %v632
        %v686 = vpack.c.b16 %v635, %v634
        %v687 = vpack.c.b16 %v637, %v636
        %v688 = vpack.c.b16 %v639, %v638
        %v689 = vpack.c.b16 %v641, %v640
        %v690 = vpack.c.b16 %v643, %v642
        %v691 = vpack.c.b16 %v645, %v644
        %v692 = vpack.c.b16 %v647, %v646
        %v693 = vpack.c.b16 %v649, %v648
        %v694 = vpack.c.b16 %v651, %v650
        %v695 = vpack.c.b16 %v653, %v652
        %v696 = vpack.c.b16 %v655, %v654
        %v697 = vpack.c.b16 %v657, %v656
        %v698 = vpack.c.b16 %v659, %v658
        %v699 = vpack.c.b16 %v661, %v660
        %v700 = vpack.c.b16 %v663, %v662
        %v701 = vpack.c.b16 %v665, %v664
        %v702 = vpack.c.b16 %v667, %v666
        %v703 = vpack.c.b16 %v669, %v668
        %v704 = vpack.c.b16 %v671, %v670
        %v705 = vpack.c.b16 %v673, %v672
        %706 = vrot.lane.b32.xlu0 %v674, 32
        %v707 = vpop.permute.xlu0 %706
        %708 = vrot.lane.b32.xlu0 %v675, 32
        %v709 = vpop.permute.xlu0 %708
        %710 = vrot.lane.b32.xlu0 %v676, 32
        %v711 = vpop.permute.xlu0 %710
        %712 = vrot.lane.b32.xlu0 %v677, 32
        %v713 = vpop.permute.xlu0 %712
        %714 = vrot.lane.b32.xlu0 %v678, 32
        %v715 = vpop.permute.xlu0 %714
        %716 = vrot.lane.b32.xlu0 %v679, 32
        %v717 = vpop.permute.xlu0 %716
        %718 = vrot.lane.b32.xlu0 %v680, 32
        %v719 = vpop.permute.xlu0 %718
        %720 = vrot.lane.b32.xlu0 %v681, 32
        %v721 = vpop.permute.xlu0 %720
        %722 = vrot.lane.b32.xlu0 %v682, 32
        %v723 = vpop.permute.xlu0 %722
        %724 = vrot.lane.b32.xlu0 %v683, 32
        %v725 = vpop.permute.xlu0 %724
        %726 = vrot.lane.b32.xlu0 %v684, 32
        %v727 = vpop.permute.xlu0 %726
        %728 = vrot.lane.b32.xlu0 %v685, 32
        %v729 = vpop.permute.xlu0 %728
        %730 = vrot.lane.b32.xlu0 %v686, 32
        %v731 = vpop.permute.xlu0 %730
        %732 = vrot.lane.b32.xlu0 %v687, 32
        %v733 = vpop.permute.xlu0 %732
        %734 = vrot.lane.b32.xlu0 %v688, 32
        %v735 = vpop.permute.xlu0 %734
        %736 = vrot.lane.b32.xlu0 %v689, 32
        %v737 = vpop.permute.xlu0 %736
        %738 = vrot.lane.b32.xlu0 %v690, 32
        %v739 = vpop.permute.xlu0 %738
        %740 = vrot.lane.b32.xlu0 %v691, 32
        %v741 = vpop.permute.xlu0 %740
        %742 = vrot.lane.b32.xlu0 %v692, 32
        %v743 = vpop.permute.xlu0 %742
        %744 = vrot.lane.b32.xlu0 %v693, 32
        %v745 = vpop.permute.xlu0 %744
        %746 = vrot.lane.b32.xlu0 %v694, 32
        %v747 = vpop.permute.xlu0 %746
        %748 = vrot.lane.b32.xlu0 %v695, 32
        %v749 = vpop.permute.xlu0 %748
        %750 = vrot.lane.b32.xlu0 %v696, 32
        %v751 = vpop.permute.xlu0 %750
        %752 = vrot.lane.b32.xlu0 %v697, 32
        %v753 = vpop.permute.xlu0 %752
        %754 = vrot.lane.b32.xlu0 %v698, 32
        %v755 = vpop.permute.xlu0 %754
        %756 = vrot.lane.b32.xlu0 %v699, 32
        %v757 = vpop.permute.xlu0 %756
        %758 = vrot.lane.b32.xlu0 %v700, 32
        %v759 = vpop.permute.xlu0 %758
        %760 = vrot.lane.b32.xlu0 %v701, 32
        %v761 = vpop.permute.xlu0 %760
        %762 = vrot.lane.b32.xlu0 %v702, 32
        %v763 = vpop.permute.xlu0 %762
        %764 = vrot.lane.b32.xlu0 %v703, 32
        %v765 = vpop.permute.xlu0 %764
        %766 = vrot.lane.b32.xlu0 %v704, 32
        %v767 = vpop.permute.xlu0 %766
        %768 = vrot.lane.b32.xlu0 %v705, 32
        %v769 = vpop.permute.xlu0 %768
        %771 = vrot.lane.b32.xlu0 %v682, 64
        %v772 = vpop.permute.xlu0 %771
        %773 = vrot.lane.b32.xlu0 %v683, 64
        %v774 = vpop.permute.xlu0 %773
        %775 = vrot.lane.b32.xlu0 %v684, 64
        %v776 = vpop.permute.xlu0 %775
        %777 = vrot.lane.b32.xlu0 %v685, 64
        %v778 = vpop.permute.xlu0 %777
        %779 = vrot.lane.b32.xlu0 %v686, 64
        %v780 = vpop.permute.xlu0 %779
        %781 = vrot.lane.b32.xlu0 %v687, 64
        %v782 = vpop.permute.xlu0 %781
        %783 = vrot.lane.b32.xlu0 %v688, 64
        %v784 = vpop.permute.xlu0 %783
        %785 = vrot.lane.b32.xlu0 %v689, 64
        %v786 = vpop.permute.xlu0 %785
        %787 = vrot.lane.b32.xlu0 %v690, 64
        %v788 = vpop.permute.xlu0 %787
        %789 = vrot.lane.b32.xlu0 %v691, 64
        %v790 = vpop.permute.xlu0 %789
        %791 = vrot.lane.b32.xlu0 %v692, 64
        %v792 = vpop.permute.xlu0 %791
        %793 = vrot.lane.b32.xlu0 %v693, 64
        %v794 = vpop.permute.xlu0 %793
        %795 = vrot.lane.b32.xlu0 %v694, 64
        %v796 = vpop.permute.xlu0 %795
        %797 = vrot.lane.b32.xlu0 %v695, 64
        %v798 = vpop.permute.xlu0 %797
        %799 = vrot.lane.b32.xlu0 %v696, 64
        %v800 = vpop.permute.xlu0 %799
        %801 = vrot.lane.b32.xlu0 %v697, 64
        %v802 = vpop.permute.xlu0 %801
        %803 = vrot.lane.b32.xlu0 %v698, 64
        %v804 = vpop.permute.xlu0 %803
        %805 = vrot.lane.b32.xlu0 %v699, 64
        %v806 = vpop.permute.xlu0 %805
        %807 = vrot.lane.b32.xlu0 %v700, 64
        %v808 = vpop.permute.xlu0 %807
        %809 = vrot.lane.b32.xlu0 %v701, 64
        %v810 = vpop.permute.xlu0 %809
        %811 = vrot.lane.b32.xlu0 %v702, 64
        %v812 = vpop.permute.xlu0 %811
        %813 = vrot.lane.b32.xlu0 %v703, 64
        %v814 = vpop.permute.xlu0 %813
        %815 = vrot.lane.b32.xlu0 %v704, 64
        %v816 = vpop.permute.xlu0 %815
        %817 = vrot.lane.b32.xlu0 %v705, 64
        %v818 = vpop.permute.xlu0 %817
        %819 = vrot.lane.b32.xlu0 0, 64
        %v820 = vpop.permute.xlu0 %819
        %vm821 = vcmask 261120
        %v824 = vsel %vm821, 0, %v707
        %v826 = vsel %vm821, 0, %v709
        %v828 = vsel %vm821, 0, %v711
        %v830 = vsel %vm821, 0, %v713
        %v832 = vsel %vm821, 0, %v715
        %v834 = vsel %vm821, 0, %v717
        %v836 = vsel %vm821, 0, %v719
        %v838 = vsel %vm821, 0, %v721
        %v841 = vsel %vm821, %v674, %v723
        %v844 = vsel %vm821, %v675, %v725
        %v847 = vsel %vm821, %v676, %v727
        %v850 = vsel %vm821, %v677, %v729
        %v853 = vsel %vm821, %v678, %v731
        %v856 = vsel %vm821, %v679, %v733
        %v859 = vsel %vm821, %v680, %v735
        %v862 = vsel %vm821, %v681, %v737
        %v865 = vsel %vm821, %v682, %v739
        %v868 = vsel %vm821, %v683, %v741
        %v871 = vsel %vm821, %v684, %v743
        %v874 = vsel %vm821, %v685, %v745
        %v877 = vsel %vm821, %v686, %v747
        %v880 = vsel %vm821, %v687, %v749
        %v883 = vsel %vm821, %v688, %v751
        %v886 = vsel %vm821, %v689, %v753
        %v889 = vsel %vm821, %v690, %v755
        %v892 = vsel %vm821, %v691, %v757
        %v895 = vsel %vm821, %v692, %v759
        %v898 = vsel %vm821, %v693, %v761
        %v901 = vsel %vm821, %v694, %v763
        %v904 = vsel %vm821, %v695, %v765
        %v907 = vsel %vm821, %v696, %v767
        %v910 = vsel %vm821, %v697, %v769
        %vm911 = vcmask 523264
        %v913 = vsel %vm911, %v824, %v772
        %v915 = vsel %vm911, %v826, %v774
        %v917 = vsel %vm911, %v828, %v776
        %v919 = vsel %vm911, %v830, %v778
        %v921 = vsel %vm911, %v832, %v780
        %v923 = vsel %vm911, %v834, %v782
        %v925 = vsel %vm911, %v836, %v784
        %v927 = vsel %vm911, %v838, %v786
        %v929 = vsel %vm911, %v841, %v788
        %v931 = vsel %vm911, %v844, %v790
        %v933 = vsel %vm911, %v847, %v792
        %v935 = vsel %vm911, %v850, %v794
        %v937 = vsel %vm911, %v853, %v796
        %v939 = vsel %vm911, %v856, %v798
        %v941 = vsel %vm911, %v859, %v800
        %v943 = vsel %vm911, %v862, %v802
        %v945 = vsel %vm911, %v865, %v804
        %v947 = vsel %vm911, %v868, %v806
        %v949 = vsel %vm911, %v871, %v808
        %v951 = vsel %vm911, %v874, %v810
        %v953 = vsel %vm911, %v877, %v812
        %v955 = vsel %vm911, %v880, %v814
        %v957 = vsel %vm911, %v883, %v816
        %v959 = vsel %vm911, %v886, %v818
        %v961 = vsel %vm911, %v889, %v820
        %v962 = vsel %vm911, %v892, %v820
        %v963 = vsel %vm911, %v895, %v820
        %v964 = vsel %vm911, %v898, %v820
        %v965 = vsel %vm911, %v901, %v820
        %v966 = vsel %vm911, %v904, %v820
        %v967 = vsel %vm911, %v907, %v820
        %v968 = vsel %vm911, %v910, %v820
        %v969 = vld [vmem:[%s1] sm:$0xf]
        %v970 = vld [vmem:[%s1 + $0x4] sm:$0xf]
        %v971 = vld [vmem:[%s1 + $0x8] sm:$0xf]
        %v972 = vld [vmem:[%s1 + $0xc] sm:$0xf]
        %v973 = vld [vmem:[%s1 + $0x10] sm:$0xf]
        %v974 = vld [vmem:[%s1 + $0x14] sm:$0xf]
        %v975 = vld [vmem:[%s1 + $0x18] sm:$0xf]
        %v976 = vld [vmem:[%s1 + $0x1c] sm:$0xf]
        %v977 = vld [vmem:[%s1 + $0x20] sm:$0xf]
        %v978 = vld [vmem:[%s1 + $0x24] sm:$0xf]
        %v979 = vld [vmem:[%s1 + $0x28] sm:$0xf]
        %v980 = vld [vmem:[%s1 + $0x2c] sm:$0xf]
        %v981 = vld [vmem:[%s2] sm:$0x1]
        %v983 = vperm.slane %v981, 0
        %v997 = vunpack.c.l.b16 %v969
        %v998 = vunpack.c.l.b16 %v970
        %v999 = vunpack.c.l.b16 %v971
        %v1000 = vunpack.c.l.b16 %v972
        %v1001 = vunpack.c.l.b16 %v973
        %v1002 = vunpack.c.l.b16 %v974
        %v1003 = vunpack.c.l.b16 %v975
        %v1004 = vunpack.c.l.b16 %v976
        %v1005 = vunpack.c.l.b16 %v977
        %v1006 = vunpack.c.l.b16 %v978
        %v1007 = vunpack.c.l.b16 %v979
        %v1008 = vunpack.c.l.b16 %v980
        %v1009 = vpack.c.b16 %v998, %v997
        %v1010 = vpack.c.b16 %v1000, %v999
        %v1011 = vpack.c.b16 %v1002, %v1001
        %v1012 = vpack.c.b16 %v1004, %v1003
        %v1013 = vpack.c.b16 %v1006, %v1005
        %v1014 = vpack.c.b16 %v1008, %v1007
        %vm1021 = vcmask 785408
        %v1022 = vsel %vm1021, %v913, 0
        %v1024 = vsel %vm1021, %v915, 0
        %v1026 = vsel %vm1021, %v917, 0
        %v1028 = vsel %vm1021, %v919, 0
        %v1030 = vsel %vm1021, %v921, 0
        %v1032 = vsel %vm1021, %v923, 0
        %v1034 = vsel %vm1021, %v925, 0
        %v1036 = vsel %vm1021, %v927, 0
        %v1038 = vsel %vm1021, %v929, 0
        %v1040 = vsel %vm1021, %v931, 0
        %v1042 = vsel %vm1021, %v933, 0
        %v1044 = vsel %vm1021, %v935, 0
        %v1046 = vsel %vm1021, %v937, 0
        %v1048 = vsel %vm1021, %v939, 0
        %v1050 = vsel %vm1021, %v941, 0
        %v1052 = vsel %vm1021, %v943, 0
        %v1054 = vsel %vm1021, %v945, 0
        %v1056 = vsel %vm1021, %v947, 0
        %v1058 = vsel %vm1021, %v949, 0
        %v1060 = vsel %vm1021, %v951, 0
        %v1062 = vsel %vm1021, %v953, 0
        %v1064 = vsel %vm1021, %v955, 0
        %v1066 = vsel %vm1021, %v957, 0
        %v1068 = vsel %vm1021, %v959, 0
        %v1070 = vsel %vm1021, %v961, 0
        %v1072 = vsel %vm1021, %v962, 0
        %v1074 = vsel %vm1021, %v963, 0
        %v1076 = vsel %vm1021, %v964, 0
        %v1078 = vsel %vm1021, %v965, 0
        %v1080 = vsel %vm1021, %v966, 0
        %v1082 = vsel %vm1021, %v967, 0
        %v1084 = vsel %vm1021, %v968, 0
        %1086 = vmatpush.bf16.msra.mxu0 0
        %1087 = vmatpush.bf16.msra.mxu0 0
        %1088 = vmatpush.bf16.msra.mxu0 %v1014
        %1089 = vmatpush.bf16.msra.mxu0 %v1013
        %1090 = vmatpush.bf16.msra.mxu0 %v1012
        %1091 = vmatpush.bf16.msra.mxu0 %v1011
        %1092 = vmatpush.bf16.msra.mxu0 %v1010
        %1093 = vmatpush.bf16.msra.mxu0 %v1009
        %1094 = vmatmul.bf16.gmra.mxu0 %v1022
        %v1095 = vpop.f32.mrf.mxu0
        %v1096 = vadd.f32 %v983, %v1095
        %v1097 = vpop.f32.mrf.mxu0
        %v1098 = vadd.f32 %v983, %v1097
        %1099 = vmatmul.bf16.gmra.mxu0 %v1024
        %v1100 = vpop.f32.mrf.mxu0
        %v1101 = vadd.f32 %v983, %v1100
        %v1102 = vpop.f32.mrf.mxu0
        %v1103 = vadd.f32 %v983, %v1102
        %1104 = vmatmul.bf16.gmra.mxu0 %v1026
        %v1105 = vpop.f32.mrf.mxu0
        %v1106 = vadd.f32 %v983, %v1105
        %v1107 = vpop.f32.mrf.mxu0
        %v1108 = vadd.f32 %v983, %v1107
        %1109 = vmatmul.bf16.gmra.mxu0 %v1028
        %v1110 = vpop.f32.mrf.mxu0
        %v1111 = vadd.f32 %v983, %v1110
        %v1112 = vpop.f32.mrf.mxu0
        %v1113 = vadd.f32 %v983, %v1112
        %1114 = vmatmul.bf16.gmra.mxu0 %v1030
        %v1115 = vpop.f32.mrf.mxu0
        %v1116 = vadd.f32 %v983, %v1115
        %v1117 = vpop.f32.mrf.mxu0
        %v1118 = vadd.f32 %v983, %v1117
        %1119 = vmatmul.bf16.gmra.mxu0 %v1032
        %v1120 = vpop.f32.mrf.mxu0
        %v1121 = vadd.f32 %v983, %v1120
        %v1122 = vpop.f32.mrf.mxu0
        %v1123 = vadd.f32 %v983, %v1122
        %1124 = vmatmul.bf16.gmra.mxu0 %v1034
        %v1125 = vpop.f32.mrf.mxu0
        %v1126 = vadd.f32 %v983, %v1125
        %v1127 = vpop.f32.mrf.mxu0
        %v1128 = vadd.f32 %v983, %v1127
        %1129 = vmatmul.bf16.gmra.mxu0 %v1036
        %v1130 = vpop.f32.mrf.mxu0
        %v1131 = vadd.f32 %v983, %v1130
        %v1132 = vpop.f32.mrf.mxu0
        %v1133 = vadd.f32 %v983, %v1132
        %1134 = vmatmul.bf16.gmra.mxu0 %v1038
        %v1135 = vpop.f32.mrf.mxu0
        %v1136 = vadd.f32 %v983, %v1135
        %v1137 = vpop.f32.mrf.mxu0
        %v1138 = vadd.f32 %v983, %v1137
        %1139 = vmatmul.bf16.gmra.mxu0 %v1040
        %v1140 = vpop.f32.mrf.mxu0
        %v1141 = vadd.f32 %v983, %v1140
        %v1142 = vpop.f32.mrf.mxu0
        %v1143 = vadd.f32 %v983, %v1142
        %1144 = vmatmul.bf16.gmra.mxu0 %v1042
        %v1145 = vpop.f32.mrf.mxu0
        %v1146 = vadd.f32 %v983, %v1145
        %v1147 = vpop.f32.mrf.mxu0
        %v1148 = vadd.f32 %v983, %v1147
        %1149 = vmatmul.bf16.gmra.mxu0 %v1044
        %v1150 = vpop.f32.mrf.mxu0
        %v1151 = vadd.f32 %v983, %v1150
        %v1152 = vpop.f32.mrf.mxu0
        %v1153 = vadd.f32 %v983, %v1152
        %1154 = vmatmul.bf16.gmra.mxu0 %v1046
        %v1155 = vpop.f32.mrf.mxu0
        %v1156 = vadd.f32 %v983, %v1155
        %v1157 = vpop.f32.mrf.mxu0
        %v1158 = vadd.f32 %v983, %v1157
        %1159 = vmatmul.bf16.gmra.mxu0 %v1048
        %v1160 = vpop.f32.mrf.mxu0
        %v1161 = vadd.f32 %v983, %v1160
        %v1162 = vpop.f32.mrf.mxu0
        %v1163 = vadd.f32 %v983, %v1162
        %1164 = vmatmul.bf16.gmra.mxu0 %v1050
        %v1165 = vpop.f32.mrf.mxu0
        %v1166 = vadd.f32 %v983, %v1165
        %v1167 = vpop.f32.mrf.mxu0
        %v1168 = vadd.f32 %v983, %v1167
        %1169 = vmatmul.bf16.gmra.mxu0 %v1052
        %v1170 = vpop.f32.mrf.mxu0
        %v1171 = vadd.f32 %v983, %v1170
        %v1172 = vpop.f32.mrf.mxu0
        %v1173 = vadd.f32 %v983, %v1172
        %1174 = vmatmul.bf16.gmra.mxu0 %v1054
        %v1175 = vpop.f32.mrf.mxu0
        %v1176 = vadd.f32 %v983, %v1175
        %v1177 = vpop.f32.mrf.mxu0
        %v1178 = vadd.f32 %v983, %v1177
        %1179 = vmatmul.bf16.gmra.mxu0 %v1056
        %v1180 = vpop.f32.mrf.mxu0
        %v1181 = vadd.f32 %v983, %v1180
        %v1182 = vpop.f32.mrf.mxu0
        %v1183 = vadd.f32 %v983, %v1182
        %1184 = vmatmul.bf16.gmra.mxu0 %v1058
        %v1185 = vpop.f32.mrf.mxu0
        %v1186 = vadd.f32 %v983, %v1185
        %v1187 = vpop.f32.mrf.mxu0
        %v1188 = vadd.f32 %v983, %v1187
        %1189 = vmatmul.bf16.gmra.mxu0 %v1060
        %v1190 = vpop.f32.mrf.mxu0
        %v1191 = vadd.f32 %v983, %v1190
        %v1192 = vpop.f32.mrf.mxu0
        %v1193 = vadd.f32 %v983, %v1192
        %1194 = vmatmul.bf16.gmra.mxu0 %v1062
        %v1195 = vpop.f32.mrf.mxu0
        %v1196 = vadd.f32 %v983, %v1195
        %v1197 = vpop.f32.mrf.mxu0
        %v1198 = vadd.f32 %v983, %v1197
        %1199 = vmatmul.bf16.gmra.mxu0 %v1064
        %v1200 = vpop.f32.mrf.mxu0
        %v1201 = vadd.f32 %v983, %v1200
        %v1202 = vpop.f32.mrf.mxu0
        %v1203 = vadd.f32 %v983, %v1202
        %1204 = vmatmul.bf16.gmra.mxu0 %v1066
        %v1205 = vpop.f32.mrf.mxu0
        %v1206 = vadd.f32 %v983, %v1205
        %v1207 = vpop.f32.mrf.mxu0
        %v1208 = vadd.f32 %v983, %v1207
        %1209 = vmatmul.bf16.gmra.mxu0 %v1068
        %v1210 = vpop.f32.mrf.mxu0
        %v1211 = vadd.f32 %v983, %v1210
        %v1212 = vpop.f32.mrf.mxu0
        %v1213 = vadd.f32 %v983, %v1212
        %1214 = vmatmul.bf16.gmra.mxu0 %v1070
        %v1215 = vpop.f32.mrf.mxu0
        %v1216 = vadd.f32 %v983, %v1215
        %v1217 = vpop.f32.mrf.mxu0
        %v1218 = vadd.f32 %v983, %v1217
        %1219 = vmatmul.bf16.gmra.mxu0 %v1072
        %v1220 = vpop.f32.mrf.mxu0
        %v1221 = vadd.f32 %v983, %v1220
        %v1222 = vpop.f32.mrf.mxu0
        %v1223 = vadd.f32 %v983, %v1222
        %1224 = vmatmul.bf16.gmra.mxu0 %v1074
        %v1225 = vpop.f32.mrf.mxu0
        %v1226 = vadd.f32 %v983, %v1225
        %v1227 = vpop.f32.mrf.mxu0
        %v1228 = vadd.f32 %v983, %v1227
        %1229 = vmatmul.bf16.gmra.mxu0 %v1076
        %v1230 = vpop.f32.mrf.mxu0
        %v1231 = vadd.f32 %v983, %v1230
        %v1232 = vpop.f32.mrf.mxu0
        %v1233 = vadd.f32 %v983, %v1232
        %1234 = vmatmul.bf16.gmra.mxu0 %v1078
        %v1235 = vpop.f32.mrf.mxu0
        %v1236 = vadd.f32 %v983, %v1235
        %v1237 = vpop.f32.mrf.mxu0
        %v1238 = vadd.f32 %v983, %v1237
        %1239 = vmatmul.bf16.gmra.mxu0 %v1080
        %v1240 = vpop.f32.mrf.mxu0
        %v1241 = vadd.f32 %v983, %v1240
        %v1242 = vpop.f32.mrf.mxu0
        %v1243 = vadd.f32 %v983, %v1242
        %1244 = vmatmul.bf16.gmra.mxu0 %v1082
        %v1245 = vpop.f32.mrf.mxu0
        %v1246 = vadd.f32 %v983, %v1245
        %v1247 = vpop.f32.mrf.mxu0
        %v1248 = vadd.f32 %v983, %v1247
        %1249 = vmatmul.bf16.gmra.mxu0 %v1084
        %v1250 = vpop.f32.mrf.mxu0
        %v1251 = vadd.f32 %v983, %v1250
        %v1252 = vpop.f32.mrf.mxu0
        %v1253 = vadd.f32 %v983, %v1252
        %1254 = vdwg.mxu0
        %v1255 = vmax.f32 %v1096, 0.0
        %v1256 = vmax.f32 %v1098, 0.0
        %v1257 = vmax.f32 %v1101, 0.0
        %v1258 = vmax.f32 %v1103, 0.0
        %v1259 = vmax.f32 %v1106, 0.0
        %v1260 = vmax.f32 %v1108, 0.0
        %v1261 = vmax.f32 %v1111, 0.0
        %v1262 = vmax.f32 %v1113, 0.0
        %v1263 = vmax.f32 %v1116, 0.0
        %v1264 = vmax.f32 %v1118, 0.0
        %v1265 = vmax.f32 %v1121, 0.0
        %v1266 = vmax.f32 %v1123, 0.0
        %v1267 = vmax.f32 %v1126, 0.0
        %v1268 = vmax.f32 %v1128, 0.0
        %v1269 = vmax.f32 %v1131, 0.0
        %v1270 = vmax.f32 %v1133, 0.0
        %v1271 = vmax.f32 %v1136, 0.0
        %v1272 = vmax.f32 %v1138, 0.0
        %v1273 = vmax.f32 %v1141, 0.0
        %v1274 = vmax.f32 %v1143, 0.0
        %v1275 = vmax.f32 %v1146, 0.0
        %v1276 = vmax.f32 %v1148, 0.0
        %v1277 = vmax.f32 %v1151, 0.0
        %v1278 = vmax.f32 %v1153, 0.0
        %v1279 = vmax.f32 %v1156, 0.0
        %v1280 = vmax.f32 %v1158, 0.0
        %v1281 = vmax.f32 %v1161, 0.0
        %v1282 = vmax.f32 %v1163, 0.0
        %v1283 = vmax.f32 %v1166, 0.0
        %v1284 = vmax.f32 %v1168, 0.0
        %v1285 = vmax.f32 %v1171, 0.0
        %v1286 = vmax.f32 %v1173, 0.0
        %v1287 = vmax.f32 %v1176, 0.0
        %v1288 = vmax.f32 %v1178, 0.0
        %v1289 = vmax.f32 %v1181, 0.0
        %v1290 = vmax.f32 %v1183, 0.0
        %v1291 = vmax.f32 %v1186, 0.0
        %v1292 = vmax.f32 %v1188, 0.0
        %v1293 = vmax.f32 %v1191, 0.0
        %v1294 = vmax.f32 %v1193, 0.0
        %v1295 = vmax.f32 %v1196, 0.0
        %v1296 = vmax.f32 %v1198, 0.0
        %v1297 = vmax.f32 %v1201, 0.0
        %v1298 = vmax.f32 %v1203, 0.0
        %v1299 = vmax.f32 %v1206, 0.0
        %v1300 = vmax.f32 %v1208, 0.0
        %v1301 = vmax.f32 %v1211, 0.0
        %v1302 = vmax.f32 %v1213, 0.0
        %v1303 = vmax.f32 %v1216, 0.0
        %v1304 = vmax.f32 %v1218, 0.0
        %v1305 = vmax.f32 %v1221, 0.0
        %v1306 = vmax.f32 %v1223, 0.0
        %v1307 = vmax.f32 %v1226, 0.0
        %v1308 = vmax.f32 %v1228, 0.0
        %v1309 = vmax.f32 %v1231, 0.0
        %v1310 = vmax.f32 %v1233, 0.0
        %v1311 = vmax.f32 %v1236, 0.0
        %v1312 = vmax.f32 %v1238, 0.0
        %v1313 = vmax.f32 %v1241, 0.0
        %v1314 = vmax.f32 %v1243, 0.0
        %v1315 = vmax.f32 %v1246, 0.0
        %v1316 = vmax.f32 %v1248, 0.0
        %v1317 = vmax.f32 %v1251, 0.0
        %v1318 = vmax.f32 %v1253, 0.0
        %v1319 = vpack.c.bf16 %v1255, %v1255
        %v1320 = vpack.c.bf16 %v1256, %v1256
        %v1321 = vpack.c.bf16 %v1257, %v1257
        %v1322 = vpack.c.bf16 %v1258, %v1258
        %v1323 = vpack.c.bf16 %v1259, %v1259
        %v1324 = vpack.c.bf16 %v1260, %v1260
        %v1325 = vpack.c.bf16 %v1261, %v1261
        %v1326 = vpack.c.bf16 %v1262, %v1262
        %v1327 = vpack.c.bf16 %v1263, %v1263
        %v1328 = vpack.c.bf16 %v1264, %v1264
        %v1329 = vpack.c.bf16 %v1265, %v1265
        %v1330 = vpack.c.bf16 %v1266, %v1266
        %v1331 = vpack.c.bf16 %v1267, %v1267
        %v1332 = vpack.c.bf16 %v1268, %v1268
        %v1333 = vpack.c.bf16 %v1269, %v1269
        %v1334 = vpack.c.bf16 %v1270, %v1270
        %v1335 = vpack.c.bf16 %v1271, %v1271
        %v1336 = vpack.c.bf16 %v1272, %v1272
        %v1337 = vpack.c.bf16 %v1273, %v1273
        %v1338 = vpack.c.bf16 %v1274, %v1274
        %v1339 = vpack.c.bf16 %v1275, %v1275
        %v1340 = vpack.c.bf16 %v1276, %v1276
        %v1341 = vpack.c.bf16 %v1277, %v1277
        %v1342 = vpack.c.bf16 %v1278, %v1278
        %v1343 = vpack.c.bf16 %v1279, %v1279
        %v1344 = vpack.c.bf16 %v1280, %v1280
        %v1345 = vpack.c.bf16 %v1281, %v1281
        %v1346 = vpack.c.bf16 %v1282, %v1282
        %v1347 = vpack.c.bf16 %v1283, %v1283
        %v1348 = vpack.c.bf16 %v1284, %v1284
        %v1349 = vpack.c.bf16 %v1285, %v1285
        %v1350 = vpack.c.bf16 %v1286, %v1286
        %v1351 = vpack.c.bf16 %v1287, %v1287
        %v1352 = vpack.c.bf16 %v1288, %v1288
        %v1353 = vpack.c.bf16 %v1289, %v1289
        %v1354 = vpack.c.bf16 %v1290, %v1290
        %v1355 = vpack.c.bf16 %v1291, %v1291
        %v1356 = vpack.c.bf16 %v1292, %v1292
        %v1357 = vpack.c.bf16 %v1293, %v1293
        %v1358 = vpack.c.bf16 %v1294, %v1294
        %v1359 = vpack.c.bf16 %v1295, %v1295
        %v1360 = vpack.c.bf16 %v1296, %v1296
        %v1361 = vpack.c.bf16 %v1297, %v1297
        %v1362 = vpack.c.bf16 %v1298, %v1298
        %v1363 = vpack.c.bf16 %v1299, %v1299
        %v1364 = vpack.c.bf16 %v1300, %v1300
        %v1365 = vpack.c.bf16 %v1301, %v1301
        %v1366 = vpack.c.bf16 %v1302, %v1302
        %v1367 = vpack.c.bf16 %v1303, %v1303
        %v1368 = vpack.c.bf16 %v1304, %v1304
        %v1369 = vpack.c.bf16 %v1305, %v1305
        %v1370 = vpack.c.bf16 %v1306, %v1306
        %v1371 = vpack.c.bf16 %v1307, %v1307
        %v1372 = vpack.c.bf16 %v1308, %v1308
        %v1373 = vpack.c.bf16 %v1309, %v1309
        %v1374 = vpack.c.bf16 %v1310, %v1310
        %v1375 = vpack.c.bf16 %v1311, %v1311
        %v1376 = vpack.c.bf16 %v1312, %v1312
        %v1377 = vpack.c.bf16 %v1313, %v1313
        %v1378 = vpack.c.bf16 %v1314, %v1314
        %v1379 = vpack.c.bf16 %v1315, %v1315
        %v1380 = vpack.c.bf16 %v1316, %v1316
        %v1381 = vpack.c.bf16 %v1317, %v1317
        %v1382 = vpack.c.bf16 %v1318, %v1318
        %vm1383 = vcmask 257024
        %1384 = vst.msk [vmem:[%s478] sm:$0xf] %vm1383, %v1319
        %1385 = vst.msk [vmem:[%s478 + $0x4] sm:$0xf] %vm1383, %v1320
        %1386 = vst.msk [vmem:[%s478 + $0x8] sm:$0xf] %vm1383, %v1321
        %1387 = vst.msk [vmem:[%s478 + $0xc] sm:$0xf] %vm1383, %v1322
        %1388 = vst.msk [vmem:[%s478 + $0x10] sm:$0xf] %vm1383, %v1323
        %1389 = vst.msk [vmem:[%s478 + $0x14] sm:$0xf] %vm1383, %v1324
        %1390 = vst.msk [vmem:[%s478 + $0x18] sm:$0xf] %vm1383, %v1325
        %1391 = vst.msk [vmem:[%s478 + $0x1c] sm:$0xf] %vm1383, %v1326
        %1392 = vst.msk [vmem:[%s478 + $0x20] sm:$0xf] %vm1383, %v1327
        %1393 = vst.msk [vmem:[%s478 + $0x24] sm:$0xf] %vm1383, %v1328
        %1394 = vst.msk [vmem:[%s478 + $0x28] sm:$0xf] %vm1383, %v1329
        %1395 = vst.msk [vmem:[%s478 + $0x2c] sm:$0xf] %vm1383, %v1330
        %1396 = vst.msk [vmem:[%s478 + $0x30] sm:$0xf] %vm1383, %v1331
        %1397 = vst.msk [vmem:[%s478 + $0x34] sm:$0xf] %vm1383, %v1332
        %1398 = vst.msk [vmem:[%s478 + $0x38] sm:$0xf] %vm1383, %v1333
        %1399 = vst.msk [vmem:[%s478 + $0x3c] sm:$0xf] %vm1383, %v1334
        %1400 = vst.msk [vmem:[%s478 + $0x40] sm:$0xf] %vm1383, %v1335
        %1401 = vst.msk [vmem:[%s478 + $0x44] sm:$0xf] %vm1383, %v1336
        %1402 = vst.msk [vmem:[%s478 + $0x48] sm:$0xf] %vm1383, %v1337
        %1403 = vst.msk [vmem:[%s478 + $0x4c] sm:$0xf] %vm1383, %v1338
        %1404 = vst.msk [vmem:[%s478 + $0x50] sm:$0xf] %vm1383, %v1339
        %1405 = vst.msk [vmem:[%s478 + $0x54] sm:$0xf] %vm1383, %v1340
        %1406 = vst.msk [vmem:[%s478 + $0x58] sm:$0xf] %vm1383, %v1341
        %1407 = vst.msk [vmem:[%s478 + $0x5c] sm:$0xf] %vm1383, %v1342
        %1408 = vst.msk [vmem:[%s478 + $0x60] sm:$0xf] %vm1383, %v1343
        %1409 = vst.msk [vmem:[%s478 + $0x64] sm:$0xf] %vm1383, %v1344
        %1410 = vst.msk [vmem:[%s478 + $0x68] sm:$0xf] %vm1383, %v1345
        %1411 = vst.msk [vmem:[%s478 + $0x6c] sm:$0xf] %vm1383, %v1346
        %1412 = vst.msk [vmem:[%s478 + $0x70] sm:$0xf] %vm1383, %v1347
        %1413 = vst.msk [vmem:[%s478 + $0x74] sm:$0xf] %vm1383, %v1348
        %1414 = vst.msk [vmem:[%s478 + $0x78] sm:$0xf] %vm1383, %v1349
        %1415 = vst.msk [vmem:[%s478 + $0x7c] sm:$0xf] %vm1383, %v1350
        %1416 = vst.msk [vmem:[%s478 + $0x80] sm:$0xf] %vm1383, %v1351
        %1417 = vst.msk [vmem:[%s478 + $0x84] sm:$0xf] %vm1383, %v1352
        %1418 = vst.msk [vmem:[%s478 + $0x88] sm:$0xf] %vm1383, %v1353
        %1419 = vst.msk [vmem:[%s478 + $0x8c] sm:$0xf] %vm1383, %v1354
        %1420 = vst.msk [vmem:[%s478 + $0x90] sm:$0xf] %vm1383, %v1355
        %1421 = vst.msk [vmem:[%s478 + $0x94] sm:$0xf] %vm1383, %v1356
        %1422 = vst.msk [vmem:[%s478 + $0x98] sm:$0xf] %vm1383, %v1357
        %1423 = vst.msk [vmem:[%s478 + $0x9c] sm:$0xf] %vm1383, %v1358
        %1424 = vst.msk [vmem:[%s478 + $0xa0] sm:$0xf] %vm1383, %v1359
        %1425 = vst.msk [vmem:[%s478 + $0xa4] sm:$0xf] %vm1383, %v1360
        %1426 = vst.msk [vmem:[%s478 + $0xa8] sm:$0xf] %vm1383, %v1361
        %1427 = vst.msk [vmem:[%s478 + $0xac] sm:$0xf] %vm1383, %v1362
        %1428 = vst.msk [vmem:[%s478 + $0xb0] sm:$0xf] %vm1383, %v1363
        %1429 = vst.msk [vmem:[%s478 + $0xb4] sm:$0xf] %vm1383, %v1364
        %1430 = vst.msk [vmem:[%s478 + $0xb8] sm:$0xf] %vm1383, %v1365
        %1431 = vst.msk [vmem:[%s478 + $0xbc] sm:$0xf] %vm1383, %v1366
        %1432 = vst.msk [vmem:[%s478 + $0xc0] sm:$0xf] %vm1383, %v1367
        %1433 = vst.msk [vmem:[%s478 + $0xc4] sm:$0xf] %vm1383, %v1368
        %1434 = vst.msk [vmem:[%s478 + $0xc8] sm:$0xf] %vm1383, %v1369
        %1435 = vst.msk [vmem:[%s478 + $0xcc] sm:$0xf] %vm1383, %v1370
        %1436 = vst.msk [vmem:[%s478 + $0xd0] sm:$0xf] %vm1383, %v1371
        %1437 = vst.msk [vmem:[%s478 + $0xd4] sm:$0xf] %vm1383, %v1372
        %1438 = vst.msk [vmem:[%s478 + $0xd8] sm:$0xf] %vm1383, %v1373
        %1439 = vst.msk [vmem:[%s478 + $0xdc] sm:$0xf] %vm1383, %v1374
        %1440 = vst.msk [vmem:[%s478 + $0xe0] sm:$0xf] %vm1383, %v1375
        %1441 = vst.msk [vmem:[%s478 + $0xe4] sm:$0xf] %vm1383, %v1376
        %1442 = vst.msk [vmem:[%s478 + $0xe8] sm:$0xf] %vm1383, %v1377
        %1443 = vst.msk [vmem:[%s478 + $0xec] sm:$0xf] %vm1383, %v1378
        %1444 = vst.msk [vmem:[%s478 + $0xf0] sm:$0xf] %vm1383, %v1379
        %1445 = vst.msk [vmem:[%s478 + $0xf4] sm:$0xf] %vm1383, %v1380
        %1446 = vst.msk [vmem:[%s478 + $0xf8] sm:$0xf] %vm1383, %v1381
        %1447 = vst.msk [vmem:[%s478 + $0xfc] sm:$0xf] %vm1383, %v1382
        %s1448 = sand.u32 %s106, 1
        %s1449 = sand.u32 %s106, 1
        %s1450 = smul.addr %s1449, 256
        %s1451 = scalar_lea.vmem [#allocation3], %s1450
        // Predicated region
        $region74: #{_lambda_.3} parent=68 // pred_check
          %p1452 = pneg %p116
        $region75: #{_lambda_.3} parent=68 // pred_check_branch
          %1454 = sbr.rel (%p1452) target = $region77
        $region76: #{_lambda_.3} parent=68 // pred_region
          %s1455 = smul.u32 16, %s19
          %s1456 = smul.addr %s18, 128
          %s1457 = sadd.s32 %s1455, %s1456
          %s1458 = smul.addr %s1457, 4
          %s1459 = scalar_lea.vmem %s3, %s1458
          // Predicated region
          $region78: #{_lambda_.3} parent=76 // pred_check
            _
          $region79: #{_lambda_.3} parent=76 // pred_check_branch
            %1461 = sbr.rel (0) target = $region81
          $region80: #{_lambda_.3} parent=76 // pred_region
            // Predicated region
            $region82: #{_lambda_.3} parent=80 // pred_check
              _
            $region83: #{_lambda_.3} parent=80 // pred_check_branch
              %1463 = sbr.rel target = $region85
            $region84: #{_lambda_.3} parent=80 // pred_region
              // Predicated region
              $region97: #{_lambda_.3} parent=84 // pred_check
                _
              $region98: #{_lambda_.3} parent=84 // pred_check_branch
                %1605 = sbr.rel (0) target = $region100
              $region99: #{_lambda_.3} parent=84 // pred_region
                loop: start=0, step=1, limit=1
                $region101: #{_lambda_.3} parent=99 // loop_pre_header
                  _
                $region102: #{_lambda_.3} parent=99 // loop_header
                  %s1607 = sphi 0, %s1611
                  %p1608 = scmp.ge.s32.totalorder %s1607, 1
                  %s1612 = sphi %s1451, %s1451
                  %s1613 = sphi %s1459, %s1459
                $region103: #{_lambda_.3} parent=99 // loop_header_branch
                  %1610 = sbr.rel (%p1608) target = $region107
                $region104: #{_lambda_.3} parent=99 // loop_body
                  _
                $region105: #{_lambda_.3} parent=99 // loop_footer
                  %s1611 = sadd.s32 1, %s1607
                $region106: #{_lambda_.3} parent=99 // loop_footer_branch
                  %1606 = sbr.rel target = $region102
                $region107: #{_lambda_.3} parent=99 // loop_exit
                  _
                %s1615 = ssub.s32 16, 1
                loop: start=0, step=1, limit=1
                $region108: #{_lambda_.3} parent=99 // loop_pre_header
                  _
                $region109: #{_lambda_.3} parent=99 // loop_header
                  %s1617 = sphi 0, %s1621
                  %p1618 = scmp.ge.s32.totalorder %s1617, 1
                  %s1622 = sphi %s1451, %s1451
                  %s1623 = sphi %s1459, %s1459
                $region110: #{_lambda_.3} parent=99 // loop_header_branch
                  %1620 = sbr.rel (%p1618) target = $region114
                $region111: #{_lambda_.3} parent=99 // loop_body
                  %v1624 = vld [vmem:[%s1622] sm:%s1615]
                  %1625 = vst [vmem:[%s1623] sm:%s1615] %v1624
                  %v1626 = vld [vmem:[%s1622 + $0x4] sm:%s1615]
                  %1627 = vst [vmem:[%s1623 + $0x4] sm:%s1615] %v1626
                  %v1628 = vld [vmem:[%s1622 + $0x8] sm:%s1615]
                  %1629 = vst [vmem:[%s1623 + $0x8] sm:%s1615] %v1628
                  %v1630 = vld [vmem:[%s1622 + $0xc] sm:%s1615]
                  %1631 = vst [vmem:[%s1623 + $0xc] sm:%s1615] %v1630
                  %v1632 = vld [vmem:[%s1622 + $0x10] sm:%s1615]
                  %1633 = vst [vmem:[%s1623 + $0x10] sm:%s1615] %v1632
                  %v1634 = vld [vmem:[%s1622 + $0x14] sm:%s1615]
                  %1635 = vst [vmem:[%s1623 + $0x14] sm:%s1615] %v1634
                  %v1636 = vld [vmem:[%s1622 + $0x18] sm:%s1615]
                  %1637 = vst [vmem:[%s1623 + $0x18] sm:%s1615] %v1636
                  %v1638 = vld [vmem:[%s1622 + $0x1c] sm:%s1615]
                  %1639 = vst [vmem:[%s1623 + $0x1c] sm:%s1615] %v1638
                  %v1640 = vld [vmem:[%s1622 + $0x20] sm:%s1615]
                  %1641 = vst [vmem:[%s1623 + $0x20] sm:%s1615] %v1640
                  %v1642 = vld [vmem:[%s1622 + $0x24] sm:%s1615]
                  %1643 = vst [vmem:[%s1623 + $0x24] sm:%s1615] %v1642
                  %v1644 = vld [vmem:[%s1622 + $0x28] sm:%s1615]
                  %1645 = vst [vmem:[%s1623 + $0x28] sm:%s1615] %v1644
                  %v1646 = vld [vmem:[%s1622 + $0x2c] sm:%s1615]
                  %1647 = vst [vmem:[%s1623 + $0x2c] sm:%s1615] %v1646
                  %v1648 = vld [vmem:[%s1622 + $0x30] sm:%s1615]
                  %1649 = vst [vmem:[%s1623 + $0x30] sm:%s1615] %v1648
                  %v1650 = vld [vmem:[%s1622 + $0x34] sm:%s1615]
                  %1651 = vst [vmem:[%s1623 + $0x34] sm:%s1615] %v1650
                  %v1652 = vld [vmem:[%s1622 + $0x38] sm:%s1615]
                  %1653 = vst [vmem:[%s1623 + $0x38] sm:%s1615] %v1652
                  %v1654 = vld [vmem:[%s1622 + $0x3c] sm:%s1615]
                  %1655 = vst [vmem:[%s1623 + $0x3c] sm:%s1615] %v1654
                  %v1656 = vld [vmem:[%s1622 + $0x40] sm:%s1615]
                  %1657 = vst [vmem:[%s1623 + $0x80] sm:%s1615] %v1656
                  %v1658 = vld [vmem:[%s1622 + $0x44] sm:%s1615]
                  %1659 = vst [vmem:[%s1623 + $0x84] sm:%s1615] %v1658
                  %v1660 = vld [vmem:[%s1622 + $0x48] sm:%s1615]
                  %1661 = vst [vmem:[%s1623 + $0x88] sm:%s1615] %v1660
                  %v1662 = vld [vmem:[%s1622 + $0x4c] sm:%s1615]
                  %1663 = vst [vmem:[%s1623 + $0x8c] sm:%s1615] %v1662
                  %v1664 = vld [vmem:[%s1622 + $0x50] sm:%s1615]
                  %1665 = vst [vmem:[%s1623 + $0x90] sm:%s1615] %v1664
                  %v1666 = vld [vmem:[%s1622 + $0x54] sm:%s1615]
                  %1667 = vst [vmem:[%s1623 + $0x94] sm:%s1615] %v1666
                  %v1668 = vld [vmem:[%s1622 + $0x58] sm:%s1615]
                  %1669 = vst [vmem:[%s1623 + $0x98] sm:%s1615] %v1668
                  %v1670 = vld [vmem:[%s1622 + $0x5c] sm:%s1615]
                  %1671 = vst [vmem:[%s1623 + $0x9c] sm:%s1615] %v1670
                  %v1672 = vld [vmem:[%s1622 + $0x60] sm:%s1615]
                  %1673 = vst [vmem:[%s1623 + $0xa0] sm:%s1615] %v1672
                  %v1674 = vld [vmem:[%s1622 + $0x64] sm:%s1615]
                  %1675 = vst [vmem:[%s1623 + $0xa4] sm:%s1615] %v1674
                  %v1676 = vld [vmem:[%s1622 + $0x68] sm:%s1615]
                  %1677 = vst [vmem:[%s1623 + $0xa8] sm:%s1615] %v1676
                  %v1678 = vld [vmem:[%s1622 + $0x6c] sm:%s1615]
                  %1679 = vst [vmem:[%s1623 + $0xac] sm:%s1615] %v1678
                  %v1680 = vld [vmem:[%s1622 + $0x70] sm:%s1615]
                  %1681 = vst [vmem:[%s1623 + $0xb0] sm:%s1615] %v1680
                  %v1682 = vld [vmem:[%s1622 + $0x74] sm:%s1615]
                  %1683 = vst [vmem:[%s1623 + $0xb4] sm:%s1615] %v1682
                  %v1684 = vld [vmem:[%s1622 + $0x78] sm:%s1615]
                  %1685 = vst [vmem:[%s1623 + $0xb8] sm:%s1615] %v1684
                  %v1686 = vld [vmem:[%s1622 + $0x7c] sm:%s1615]
                  %1687 = vst [vmem:[%s1623 + $0xbc] sm:%s1615] %v1686
                  %v1688 = vld [vmem:[%s1622 + $0x80] sm:%s1615]
                  %1689 = vst [vmem:[%s1623 + $0x100] sm:%s1615] %v1688
                  %v1690 = vld [vmem:[%s1622 + $0x84] sm:%s1615]
                  %1691 = vst [vmem:[%s1623 + $0x104] sm:%s1615] %v1690
                  %v1692 = vld [vmem:[%s1622 + $0x88] sm:%s1615]
                  %1693 = vst [vmem:[%s1623 + $0x108] sm:%s1615] %v1692
                  %v1694 = vld [vmem:[%s1622 + $0x8c] sm:%s1615]
                  %1695 = vst [vmem:[%s1623 + $0x10c] sm:%s1615] %v1694
                  %v1696 = vld [vmem:[%s1622 + $0x90] sm:%s1615]
                  %1697 = vst [vmem:[%s1623 + $0x110] sm:%s1615] %v1696
                  %v1698 = vld [vmem:[%s1622 + $0x94] sm:%s1615]
                  %1699 = vst [vmem:[%s1623 + $0x114] sm:%s1615] %v1698
                  %v1700 = vld [vmem:[%s1622 + $0x98] sm:%s1615]
                  %1701 = vst [vmem:[%s1623 + $0x118] sm:%s1615] %v1700
                  %v1702 = vld [vmem:[%s1622 + $0x9c] sm:%s1615]
                  %1703 = vst [vmem:[%s1623 + $0x11c] sm:%s1615] %v1702
                  %v1704 = vld [vmem:[%s1622 + $0xa0] sm:%s1615]
                  %1705 = vst [vmem:[%s1623 + $0x120] sm:%s1615] %v1704
                  %v1706 = vld [vmem:[%s1622 + $0xa4] sm:%s1615]
                  %1707 = vst [vmem:[%s1623 + $0x124] sm:%s1615] %v1706
                  %v1708 = vld [vmem:[%s1622 + $0xa8] sm:%s1615]
                  %1709 = vst [vmem:[%s1623 + $0x128] sm:%s1615] %v1708
                  %v1710 = vld [vmem:[%s1622 + $0xac] sm:%s1615]
                  %1711 = vst [vmem:[%s1623 + $0x12c] sm:%s1615] %v1710
                  %v1712 = vld [vmem:[%s1622 + $0xb0] sm:%s1615]
                  %1713 = vst [vmem:[%s1623 + $0x130] sm:%s1615] %v1712
                  %v1714 = vld [vmem:[%s1622 + $0xb4] sm:%s1615]
                  %1715 = vst [vmem:[%s1623 + $0x134] sm:%s1615] %v1714
                  %v1716 = vld [vmem:[%s1622 + $0xb8] sm:%s1615]
                  %1717 = vst [vmem:[%s1623 + $0x138] sm:%s1615] %v1716
                  %v1718 = vld [vmem:[%s1622 + $0xbc] sm:%s1615]
                  %1719 = vst [vmem:[%s1623 + $0x13c] sm:%s1615] %v1718
                  %v1720 = vld [vmem:[%s1622 + $0xc0] sm:%s1615]
                  %1721 = vst [vmem:[%s1623 + $0x180] sm:%s1615] %v1720
                  %v1722 = vld [vmem:[%s1622 + $0xc4] sm:%s1615]
                  %1723 = vst [vmem:[%s1623 + $0x184] sm:%s1615] %v1722
                  %v1724 = vld [vmem:[%s1622 + $0xc8] sm:%s1615]
                  %1725 = vst [vmem:[%s1623 + $0x188] sm:%s1615] %v1724
                  %v1726 = vld [vmem:[%s1622 + $0xcc] sm:%s1615]
                  %1727 = vst [vmem:[%s1623 + $0x18c] sm:%s1615] %v1726
                  %v1728 = vld [vmem:[%s1622 + $0xd0] sm:%s1615]
                  %1729 = vst [vmem:[%s1623 + $0x190] sm:%s1615] %v1728
                  %v1730 = vld [vmem:[%s1622 + $0xd4] sm:%s1615]
                  %1731 = vst [vmem:[%s1623 + $0x194] sm:%s1615] %v1730
                  %v1732 = vld [vmem:[%s1622 + $0xd8] sm:%s1615]
                  %1733 = vst [vmem:[%s1623 + $0x198] sm:%s1615] %v1732
                  %v1734 = vld [vmem:[%s1622 + $0xdc] sm:%s1615]
                  %1735 = vst [vmem:[%s1623 + $0x19c] sm:%s1615] %v1734
                  %v1736 = vld [vmem:[%s1622 + $0xe0] sm:%s1615]
                  %1737 = vst [vmem:[%s1623 + $0x1a0] sm:%s1615] %v1736
                  %v1738 = vld [vmem:[%s1622 + $0xe4] sm:%s1615]
                  %1739 = vst [vmem:[%s1623 + $0x1a4] sm:%s1615] %v1738
                  %v1740 = vld [vmem:[%s1622 + $0xe8] sm:%s1615]
                  %1741 = vst [vmem:[%s1623 + $0x1a8] sm:%s1615] %v1740
                  %v1742 = vld [vmem:[%s1622 + $0xec] sm:%s1615]
                  %1743 = vst [vmem:[%s1623 + $0x1ac] sm:%s1615] %v1742
                  %v1744 = vld [vmem:[%s1622 + $0xf0] sm:%s1615]
                  %1745 = vst [vmem:[%s1623 + $0x1b0] sm:%s1615] %v1744
                  %v1746 = vld [vmem:[%s1622 + $0xf4] sm:%s1615]
                  %1747 = vst [vmem:[%s1623 + $0x1b4] sm:%s1615] %v1746
                  %v1748 = vld [vmem:[%s1622 + $0xf8] sm:%s1615]
                  %1749 = vst [vmem:[%s1623 + $0x1b8] sm:%s1615] %v1748
                  %v1750 = vld [vmem:[%s1622 + $0xfc] sm:%s1615]
                  %1751 = vst [vmem:[%s1623 + $0x1bc] sm:%s1615] %v1750
                $region112: #{_lambda_.3} parent=99 // loop_footer
                  %s1621 = sadd.s32 1, %s1617
                $region113: #{_lambda_.3} parent=99 // loop_footer_branch
                  %1616 = sbr.rel target = $region109
                $region114: #{_lambda_.3} parent=99 // loop_exit
                  _
              $region100: #{_lambda_.3} parent=84 // pred_fallthru
                _
            $region85: #{_lambda_.3} parent=80 // pred_fallthru
              _
            // Predicated region
            $region86: #{_lambda_.3} parent=80 // pred_check
              _
            $region87: #{_lambda_.3} parent=80 // pred_check_branch
              %1465 = sbr.rel (0) target = $region89
            $region88: #{_lambda_.3} parent=80 // pred_region
              %s1467 = ssub.s32 16, 1
              loop: start=0, step=1, limit=1
              $region90: #{_lambda_.3} parent=88 // loop_pre_header
                _
              $region91: #{_lambda_.3} parent=88 // loop_header
                %s1469 = sphi 0, %s1473
                %p1470 = scmp.ge.s32.totalorder %s1469, 1
                %s1474 = sphi %s1451, %s1451
                %s1475 = sphi %s1459, %s1459
              $region92: #{_lambda_.3} parent=88 // loop_header_branch
                %1472 = sbr.rel (%p1470) target = $region96
              $region93: #{_lambda_.3} parent=88 // loop_body
                %v1476 = vld [vmem:[%s1474] sm:%s1467]
                %1477 = vst [vmem:[%s1475] sm:%s1467] %v1476
                %v1478 = vld [vmem:[%s1474 + $0x4] sm:%s1467]
                %1479 = vst [vmem:[%s1475 + $0x4] sm:%s1467] %v1478
                %v1480 = vld [vmem:[%s1474 + $0x8] sm:%s1467]
                %1481 = vst [vmem:[%s1475 + $0x8] sm:%s1467] %v1480
                %v1482 = vld [vmem:[%s1474 + $0xc] sm:%s1467]
                %1483 = vst [vmem:[%s1475 + $0xc] sm:%s1467] %v1482
                %v1484 = vld [vmem:[%s1474 + $0x10] sm:%s1467]
                %1485 = vst [vmem:[%s1475 + $0x10] sm:%s1467] %v1484
                %v1486 = vld [vmem:[%s1474 + $0x14] sm:%s1467]
                %1487 = vst [vmem:[%s1475 + $0x14] sm:%s1467] %v1486
                %v1488 = vld [vmem:[%s1474 + $0x18] sm:%s1467]
                %1489 = vst [vmem:[%s1475 + $0x18] sm:%s1467] %v1488
                %v1490 = vld [vmem:[%s1474 + $0x1c] sm:%s1467]
                %1491 = vst [vmem:[%s1475 + $0x1c] sm:%s1467] %v1490
                %v1492 = vld [vmem:[%s1474 + $0x20] sm:%s1467]
                %1493 = vst [vmem:[%s1475 + $0x20] sm:%s1467] %v1492
                %v1494 = vld [vmem:[%s1474 + $0x24] sm:%s1467]
                %1495 = vst [vmem:[%s1475 + $0x24] sm:%s1467] %v1494
                %v1496 = vld [vmem:[%s1474 + $0x28] sm:%s1467]
                %1497 = vst [vmem:[%s1475 + $0x28] sm:%s1467] %v1496
                %v1498 = vld [vmem:[%s1474 + $0x2c] sm:%s1467]
                %1499 = vst [vmem:[%s1475 + $0x2c] sm:%s1467] %v1498
                %v1500 = vld [vmem:[%s1474 + $0x30] sm:%s1467]
                %1501 = vst [vmem:[%s1475 + $0x30] sm:%s1467] %v1500
                %v1502 = vld [vmem:[%s1474 + $0x34] sm:%s1467]
                %1503 = vst [vmem:[%s1475 + $0x34] sm:%s1467] %v1502
                %v1504 = vld [vmem:[%s1474 + $0x38] sm:%s1467]
                %1505 = vst [vmem:[%s1475 + $0x38] sm:%s1467] %v1504
                %v1506 = vld [vmem:[%s1474 + $0x3c] sm:%s1467]
                %1507 = vst [vmem:[%s1475 + $0x3c] sm:%s1467] %v1506
                %v1508 = vld [vmem:[%s1474 + $0x40] sm:%s1467]
                %1509 = vst [vmem:[%s1475 + $0x80] sm:%s1467] %v1508
                %v1510 = vld [vmem:[%s1474 + $0x44] sm:%s1467]
                %1511 = vst [vmem:[%s1475 + $0x84] sm:%s1467] %v1510
                %v1512 = vld [vmem:[%s1474 + $0x48] sm:%s1467]
                %1513 = vst [vmem:[%s1475 + $0x88] sm:%s1467] %v1512
                %v1514 = vld [vmem:[%s1474 + $0x4c] sm:%s1467]
                %1515 = vst [vmem:[%s1475 + $0x8c] sm:%s1467] %v1514
                %v1516 = vld [vmem:[%s1474 + $0x50] sm:%s1467]
                %1517 = vst [vmem:[%s1475 + $0x90] sm:%s1467] %v1516
                %v1518 = vld [vmem:[%s1474 + $0x54] sm:%s1467]
                %1519 = vst [vmem:[%s1475 + $0x94] sm:%s1467] %v1518
                %v1520 = vld [vmem:[%s1474 + $0x58] sm:%s1467]
                %1521 = vst [vmem:[%s1475 + $0x98] sm:%s1467] %v1520
                %v1522 = vld [vmem:[%s1474 + $0x5c] sm:%s1467]
                %1523 = vst [vmem:[%s1475 + $0x9c] sm:%s1467] %v1522
                %v1524 = vld [vmem:[%s1474 + $0x60] sm:%s1467]
                %1525 = vst [vmem:[%s1475 + $0xa0] sm:%s1467] %v1524
                %v1526 = vld [vmem:[%s1474 + $0x64] sm:%s1467]
                %1527 = vst [vmem:[%s1475 + $0xa4] sm:%s1467] %v1526
                %v1528 = vld [vmem:[%s1474 + $0x68] sm:%s1467]
                %1529 = vst [vmem:[%s1475 + $0xa8] sm:%s1467] %v1528
                %v1530 = vld [vmem:[%s1474 + $0x6c] sm:%s1467]
                %1531 = vst [vmem:[%s1475 + $0xac] sm:%s1467] %v1530
                %v1532 = vld [vmem:[%s1474 + $0x70] sm:%s1467]
                %1533 = vst [vmem:[%s1475 + $0xb0] sm:%s1467] %v1532
                %v1534 = vld [vmem:[%s1474 + $0x74] sm:%s1467]
                %1535 = vst [vmem:[%s1475 + $0xb4] sm:%s1467] %v1534
                %v1536 = vld [vmem:[%s1474 + $0x78] sm:%s1467]
                %1537 = vst [vmem:[%s1475 + $0xb8] sm:%s1467] %v1536
                %v1538 = vld [vmem:[%s1474 + $0x7c] sm:%s1467]
                %1539 = vst [vmem:[%s1475 + $0xbc] sm:%s1467] %v1538
                %v1540 = vld [vmem:[%s1474 + $0x80] sm:%s1467]
                %1541 = vst [vmem:[%s1475 + $0x100] sm:%s1467] %v1540
                %v1542 = vld [vmem:[%s1474 + $0x84] sm:%s1467]
                %1543 = vst [vmem:[%s1475 + $0x104] sm:%s1467] %v1542
                %v1544 = vld [vmem:[%s1474 + $0x88] sm:%s1467]
                %1545 = vst [vmem:[%s1475 + $0x108] sm:%s1467] %v1544
                %v1546 = vld [vmem:[%s1474 + $0x8c] sm:%s1467]
                %1547 = vst [vmem:[%s1475 + $0x10c] sm:%s1467] %v1546
                %v1548 = vld [vmem:[%s1474 + $0x90] sm:%s1467]
                %1549 = vst [vmem:[%s1475 + $0x110] sm:%s1467] %v1548
                %v1550 = vld [vmem:[%s1474 + $0x94] sm:%s1467]
                %1551 = vst [vmem:[%s1475 + $0x114] sm:%s1467] %v1550
                %v1552 = vld [vmem:[%s1474 + $0x98] sm:%s1467]
                %1553 = vst [vmem:[%s1475 + $0x118] sm:%s1467] %v1552
                %v1554 = vld [vmem:[%s1474 + $0x9c] sm:%s1467]
                %1555 = vst [vmem:[%s1475 + $0x11c] sm:%s1467] %v1554
                %v1556 = vld [vmem:[%s1474 + $0xa0] sm:%s1467]
                %1557 = vst [vmem:[%s1475 + $0x120] sm:%s1467] %v1556
                %v1558 = vld [vmem:[%s1474 + $0xa4] sm:%s1467]
                %1559 = vst [vmem:[%s1475 + $0x124] sm:%s1467] %v1558
                %v1560 = vld [vmem:[%s1474 + $0xa8] sm:%s1467]
                %1561 = vst [vmem:[%s1475 + $0x128] sm:%s1467] %v1560
                %v1562 = vld [vmem:[%s1474 + $0xac] sm:%s1467]
                %1563 = vst [vmem:[%s1475 + $0x12c] sm:%s1467] %v1562
                %v1564 = vld [vmem:[%s1474 + $0xb0] sm:%s1467]
                %1565 = vst [vmem:[%s1475 + $0x130] sm:%s1467] %v1564
                %v1566 = vld [vmem:[%s1474 + $0xb4] sm:%s1467]
                %1567 = vst [vmem:[%s1475 + $0x134] sm:%s1467] %v1566
                %v1568 = vld [vmem:[%s1474 + $0xb8] sm:%s1467]
                %1569 = vst [vmem:[%s1475 + $0x138] sm:%s1467] %v1568
                %v1570 = vld [vmem:[%s1474 + $0xbc] sm:%s1467]
                %1571 = vst [vmem:[%s1475 + $0x13c] sm:%s1467] %v1570
                %v1572 = vld [vmem:[%s1474 + $0xc0] sm:%s1467]
                %1573 = vst [vmem:[%s1475 + $0x180] sm:%s1467] %v1572
                %v1574 = vld [vmem:[%s1474 + $0xc4] sm:%s1467]
                %1575 = vst [vmem:[%s1475 + $0x184] sm:%s1467] %v1574
                %v1576 = vld [vmem:[%s1474 + $0xc8] sm:%s1467]
                %1577 = vst [vmem:[%s1475 + $0x188] sm:%s1467] %v1576
                %v1578 = vld [vmem:[%s1474 + $0xcc] sm:%s1467]
                %1579 = vst [vmem:[%s1475 + $0x18c] sm:%s1467] %v1578
                %v1580 = vld [vmem:[%s1474 + $0xd0] sm:%s1467]
                %1581 = vst [vmem:[%s1475 + $0x190] sm:%s1467] %v1580
                %v1582 = vld [vmem:[%s1474 + $0xd4] sm:%s1467]
                %1583 = vst [vmem:[%s1475 + $0x194] sm:%s1467] %v1582
                %v1584 = vld [vmem:[%s1474 + $0xd8] sm:%s1467]
                %1585 = vst [vmem:[%s1475 + $0x198] sm:%s1467] %v1584
                %v1586 = vld [vmem:[%s1474 + $0xdc] sm:%s1467]
                %1587 = vst [vmem:[%s1475 + $0x19c] sm:%s1467] %v1586
                %v1588 = vld [vmem:[%s1474 + $0xe0] sm:%s1467]
                %1589 = vst [vmem:[%s1475 + $0x1a0] sm:%s1467] %v1588
                %v1590 = vld [vmem:[%s1474 + $0xe4] sm:%s1467]
                %1591 = vst [vmem:[%s1475 + $0x1a4] sm:%s1467] %v1590
                %v1592 = vld [vmem:[%s1474 + $0xe8] sm:%s1467]
                %1593 = vst [vmem:[%s1475 + $0x1a8] sm:%s1467] %v1592
                %v1594 = vld [vmem:[%s1474 + $0xec] sm:%s1467]
                %1595 = vst [vmem:[%s1475 + $0x1ac] sm:%s1467] %v1594
                %v1596 = vld [vmem:[%s1474 + $0xf0] sm:%s1467]
                %1597 = vst [vmem:[%s1475 + $0x1b0] sm:%s1467] %v1596
                %v1598 = vld [vmem:[%s1474 + $0xf4] sm:%s1467]
                %1599 = vst [vmem:[%s1475 + $0x1b4] sm:%s1467] %v1598
                %v1600 = vld [vmem:[%s1474 + $0xf8] sm:%s1467]
                %1601 = vst [vmem:[%s1475 + $0x1b8] sm:%s1467] %v1600
                %v1602 = vld [vmem:[%s1474 + $0xfc] sm:%s1467]
                %1603 = vst [vmem:[%s1475 + $0x1bc] sm:%s1467] %v1602
              $region94: #{_lambda_.3} parent=88 // loop_footer
                %s1473 = sadd.s32 1, %s1469
              $region95: #{_lambda_.3} parent=88 // loop_footer_branch
                %1468 = sbr.rel target = $region91
              $region96: #{_lambda_.3} parent=88 // loop_exit
                _
            $region89: #{_lambda_.3} parent=80 // pred_fallthru
              _
          $region81: #{_lambda_.3} parent=76 // pred_fallthru
            _
          %1752 = vnop
        $region77: #{_lambda_.3} parent=68 // pred_fallthru
          _
      $region69: #{_lambda_.3} parent=5 // pred_fallthru
        _
      %p1753 = scmp.le.s32.totalorder 2, %s9
      // Predicated region
      $region115: #{_lambda_.3} parent=5 // pred_check
        %p1754 = pneg %p1753
      $region116: #{_lambda_.3} parent=5 // pred_check_branch
        %1756 = sbr.rel (%p1754) target = $region118
      $region117: #{_lambda_.3} parent=5 // pred_region
        %s1757 = ssub.s32 %s9, 2
        // Predicated region
        $region119: #{_lambda_.3} parent=117 // pred_check
          %p1758 = pneg %p122
        $region120: #{_lambda_.3} parent=117 // pred_check_branch
          %1760 = sbr.rel (%p1758) target = $region122
        $region121: #{_lambda_.3} parent=117 // pred_region
          %s1761 = sand.u32 %s107, 1
          %s1762 = sand.u32 %s107, 1
          %s1763 = smul.addr %s1762, 256
          %s1764 = scalar_lea.vmem [#allocation3], %s1763
        $region122: #{_lambda_.3} parent=117 // pred_fallthru
          _
      $region118: #{_lambda_.3} parent=5 // pred_fallthru
        _
    $region6: #{_lambda_.3} parent=1 // loop_footer
      %s13 = sadd.s32 1, %s9
    $region7: #{_lambda_.3} parent=1 // loop_footer_branch
      %8 = sbr.rel target = $region3
    $region8: #{_lambda_.3} parent=1 // loop_exit
      _

// kernel: _lambda_.2
$region0: #{_lambda_.2}
  #allocation0 [shape = 'u32[]', space=smem, size = 0x4, offset = 0x4, fixed_abs, tag = 'smem constant byte address 0x4 - core index']
  #allocation1 [shape = 'u32[72,128]{1,0:T(1,128)}', space=vmem, size = 0x9000, scoped, tag = 'internal scratch']
  %s0 = inlined_call_operand.vmem [shape: bf16[3240,8], index: 0, kind: input, shape index: {}, may-alias: {0,1}]
  %s1 = inlined_call_operand.vmem [shape: bf16[3240,8], index: 1, kind: input, shape index: {}, may-alias: {0,1}]
  %s2 = inlined_call_operand.vmem [shape: f32[3240,1], index: 2, kind: input, shape index: {}, may-alias: {2,3}]
  %s3 = inlined_call_operand.vmem [shape: f32[3240,1], index: 3, kind: input, shape index: {}, may-alias: {2,3}]
  %s4 = inlined_call_operand.vmem [shape: bf16[8,16], index: 4, kind: input, shape index: {}]
  %s5 = inlined_call_operand.vmem [shape: f32[1,16], index: 5, kind: input, shape index: {}]
  %s6 = inlined_call_operand.vmem [shape: bf16[144,32], index: 6, kind: input, shape index: {}]
  %s7 = inlined_call_operand.vmem [shape: f32[1,32], index: 7, kind: input, shape index: {}]
  %s8 = inlined_call_operand.vmem [shape: bf16[3200,32], index: 8, kind: output, shape index: {}]
  %s9 = sld [smem:[#allocation0]]
  $region65: #{_lambda_.2} parent=0
    _
  %s11 = ssub.s32 1, %s9
  %s12 = scalar_select 0, %s11, %s9
  loop: start=0, step=1, limit=7
  $region2: #{_lambda_.2} parent=0 // loop_pre_header
    _
  $region3: #{_lambda_.2} parent=0 // loop_header
    %s14 = sphi 0, %s18
    %p15 = scmp.ge.s32.totalorder %s14, 7
    %s24 = sphi 0, %s26
    %s27 = sphi 0, %s24
    %s28 = sphi 0, %s27
    %s44 = sphi 0, %s28
    %s54 = sphi 0, %s56
    %s57 = sphi 0, %s54
    %s58 = sphi 0, %s57
    %s74 = sphi 0, %s58
    %s80 = sphi 0, %s82
    %s83 = sphi 0, %s80
    %s84 = sphi 0, %s83
    %s100 = sphi 0, %s84
    %s110 = sphi 0, %s112
    %s113 = sphi 0, %s110
    %s114 = sphi 0, %s113
    %s130 = sphi 0, %s114
    %s134 = sphi 0, %s134
    %s136 = sphi 0, %s134
    %s137 = sphi 0, %s136
    %s151 = sphi 0, %s137
    %s155 = sphi 0, %s155
    %s157 = sphi 0, %s155
    %s158 = sphi 0, %s157
    %s172 = sphi 0, %s158
    %s176 = sphi 0, %s176
    %s178 = sphi 0, %s176
    %s179 = sphi 0, %s178
    %s193 = sphi 0, %s179
    %s197 = sphi 0, %s197
    %s199 = sphi 0, %s197
    %s200 = sphi 0, %s199
    %s214 = sphi 0, %s200
    %s220 = sphi 0, %s222
    %s223 = sphi 0, %s220
    %s224 = sphi 0, %s223
    %s240 = sphi 0, %s224
  $region4: #{_lambda_.2} parent=0 // loop_header_branch
    %17 = sbr.rel (%p15) target = $region8
  $region5: #{_lambda_.2} parent=0 // loop_body
    %s19 = ssub.s32 %s14, 1
    %s20 = ssub.s32 %s14, 2
    %s21 = sadd.s32 %s14, 1
    %s22 = ssub.s32 %s14, %s21
    %p23 = scmp.eq.s32.totalorder %s22, 0
    %s25 = sadd.s32 %s24, 1
    %s26 = scalar_select %p23, %s24, %s25
    %p29 = pneg %p23
    %p30 = scmp.eq.s32.totalorder %s14, 4
    %p31 = por %p29, %p30
    %p32 = scmp.ne.s32.totalorder %s24, %s27
    %p33 = scmp.eq.s32.totalorder %s14, 0
    %p34 = por %p32, %p33
    %p35 = scmp.ne.s32.totalorder %s24, %s27
    %p36 = scmp.eq.s32.totalorder %s19, 4
    %p37 = por %p35, %p36
    %p38 = scmp.ne.s32.totalorder %s27, %s28
    %p39 = scmp.eq.s32.totalorder %s19, 0
    %p40 = por %p38, %p39
    %p41 = scmp.ne.s32.totalorder %s27, %s28
    %p42 = scmp.eq.s32.totalorder %s20, 4
    %p43 = por %p41, %p42
    %p45 = scmp.ne.s32.totalorder %s28, %s44
    %p46 = scmp.eq.s32.totalorder %s20, 0
    %p47 = por %p45, %p46
    %s48 = sadd.s32 %s14, 1
    %s49 = smul.u32 %s48, 16
    %s50 = sadd.s32 %s21, 1
    %s51 = smul.u32 %s50, 16
    %s52 = ssub.s32 %s49, %s51
    %p53 = scmp.eq.s32.totalorder %s52, 0
    %s55 = sadd.s32 %s54, 1
    %s56 = scalar_select %p53, %s54, %s55
    %p59 = pneg %p53
    %p60 = scmp.eq.s32.totalorder %s14, 4
    %p61 = por %p59, %p60
    %p62 = scmp.ne.s32.totalorder %s54, %s57
    %p63 = scmp.eq.s32.totalorder %s14, 0
    %p64 = por %p62, %p63
    %p65 = scmp.ne.s32.totalorder %s54, %s57
    %p66 = scmp.eq.s32.totalorder %s19, 4
    %p67 = por %p65, %p66
    %p68 = scmp.ne.s32.totalorder %s57, %s58
    %p69 = scmp.eq.s32.totalorder %s19, 0
    %p70 = por %p68, %p69
    %p71 = scmp.ne.s32.totalorder %s57, %s58
    %p72 = scmp.eq.s32.totalorder %s20, 4
    %p73 = por %p71, %p72
    %p75 = scmp.ne.s32.totalorder %s58, %s74
    %p76 = scmp.eq.s32.totalorder %s20, 0
    %p77 = por %p75, %p76
    %s78 = ssub.s32 %s14, %s21
    %p79 = scmp.eq.s32.totalorder %s78, 0
    %s81 = sadd.s32 %s80, 1
    %s82 = scalar_select %p79, %s80, %s81
    %p85 = pneg %p79
    %p86 = scmp.eq.s32.totalorder %s14, 4
    %p87 = por %p85, %p86
    %p88 = scmp.ne.s32.totalorder %s80, %s83
    %p89 = scmp.eq.s32.totalorder %s14, 0
    %p90 = por %p88, %p89
    %p91 = scmp.ne.s32.totalorder %s80, %s83
    %p92 = scmp.eq.s32.totalorder %s19, 4
    %p93 = por %p91, %p92
    %p94 = scmp.ne.s32.totalorder %s83, %s84
    %p95 = scmp.eq.s32.totalorder %s19, 0
    %p96 = por %p94, %p95
    %p97 = scmp.ne.s32.totalorder %s83, %s84
    %p98 = scmp.eq.s32.totalorder %s20, 4
    %p99 = por %p97, %p98
    %p101 = scmp.ne.s32.totalorder %s84, %s100
    %p102 = scmp.eq.s32.totalorder %s20, 0
    %p103 = por %p101, %p102
    %s104 = sadd.s32 %s14, 1
    %s105 = smul.u32 %s104, 16
    %s106 = sadd.s32 %s21, 1
    %s107 = smul.u32 %s106, 16
    %s108 = ssub.s32 %s105, %s107
    %p109 = scmp.eq.s32.totalorder %s108, 0
    %s111 = sadd.s32 %s110, 1
    %s112 = scalar_select %p109, %s110, %s111
    %p115 = pneg %p109
    %p116 = scmp.eq.s32.totalorder %s14, 4
    %p117 = por %p115, %p116
    %p118 = scmp.ne.s32.totalorder %s110, %s113
    %p119 = scmp.eq.s32.totalorder %s14, 0
    %p120 = por %p118, %p119
    %p121 = scmp.ne.s32.totalorder %s110, %s113
    %p122 = scmp.eq.s32.totalorder %s19, 4
    %p123 = por %p121, %p122
    %p124 = scmp.ne.s32.totalorder %s113, %s114
    %p125 = scmp.eq.s32.totalorder %s19, 0
    %p126 = por %p124, %p125
    %p127 = scmp.ne.s32.totalorder %s113, %s114
    %p128 = scmp.eq.s32.totalorder %s20, 4
    %p129 = por %p127, %p128
    %p131 = scmp.ne.s32.totalorder %s114, %s130
    %p132 = scmp.eq.s32.totalorder %s20, 0
    %p133 = por %p131, %p132
    %s135 = sadd.s32 %s134, 1
    %p138 = scmp.eq.s32.totalorder %s14, 4
    %p139 = scmp.ne.s32.totalorder %s134, %s136
    %p140 = scmp.eq.s32.totalorder %s14, 0
    %p141 = por %p139, %p140
    %p142 = scmp.ne.s32.totalorder %s134, %s136
    %p143 = scmp.eq.s32.totalorder %s19, 4
    %p144 = por %p142, %p143
    %p145 = scmp.ne.s32.totalorder %s136, %s137
    %p146 = scmp.eq.s32.totalorder %s19, 0
    %p147 = por %p145, %p146
    %p148 = scmp.ne.s32.totalorder %s136, %s137
    %p149 = scmp.eq.s32.totalorder %s20, 4
    %p150 = por %p148, %p149
    %p152 = scmp.ne.s32.totalorder %s137, %s151
    %p153 = scmp.eq.s32.totalorder %s20, 0
    %p154 = por %p152, %p153
    %s156 = sadd.s32 %s155, 1
    %p159 = scmp.eq.s32.totalorder %s14, 4
    %p160 = scmp.ne.s32.totalorder %s155, %s157
    %p161 = scmp.eq.s32.totalorder %s14, 0
    %p162 = por %p160, %p161
    %p163 = scmp.ne.s32.totalorder %s155, %s157
    %p164 = scmp.eq.s32.totalorder %s19, 4
    %p165 = por %p163, %p164
    %p166 = scmp.ne.s32.totalorder %s157, %s158
    %p167 = scmp.eq.s32.totalorder %s19, 0
    %p168 = por %p166, %p167
    %p169 = scmp.ne.s32.totalorder %s157, %s158
    %p170 = scmp.eq.s32.totalorder %s20, 4
    %p171 = por %p169, %p170
    %p173 = scmp.ne.s32.totalorder %s158, %s172
    %p174 = scmp.eq.s32.totalorder %s20, 0
    %p175 = por %p173, %p174
    %s177 = sadd.s32 %s176, 1
    %p180 = scmp.eq.s32.totalorder %s14, 4
    %p181 = scmp.ne.s32.totalorder %s176, %s178
    %p182 = scmp.eq.s32.totalorder %s14, 0
    %p183 = por %p181, %p182
    %p184 = scmp.ne.s32.totalorder %s176, %s178
    %p185 = scmp.eq.s32.totalorder %s19, 4
    %p186 = por %p184, %p185
    %p187 = scmp.ne.s32.totalorder %s178, %s179
    %p188 = scmp.eq.s32.totalorder %s19, 0
    %p189 = por %p187, %p188
    %p190 = scmp.ne.s32.totalorder %s178, %s179
    %p191 = scmp.eq.s32.totalorder %s20, 4
    %p192 = por %p190, %p191
    %p194 = scmp.ne.s32.totalorder %s179, %s193
    %p195 = scmp.eq.s32.totalorder %s20, 0
    %p196 = por %p194, %p195
    %s198 = sadd.s32 %s197, 1
    %p201 = scmp.eq.s32.totalorder %s14, 4
    %p202 = scmp.ne.s32.totalorder %s197, %s199
    %p203 = scmp.eq.s32.totalorder %s14, 0
    %p204 = por %p202, %p203
    %p205 = scmp.ne.s32.totalorder %s197, %s199
    %p206 = scmp.eq.s32.totalorder %s19, 4
    %p207 = por %p205, %p206
    %p208 = scmp.ne.s32.totalorder %s199, %s200
    %p209 = scmp.eq.s32.totalorder %s19, 0
    %p210 = por %p208, %p209
    %p211 = scmp.ne.s32.totalorder %s199, %s200
    %p212 = scmp.eq.s32.totalorder %s20, 4
    %p213 = por %p211, %p212
    %p215 = scmp.ne.s32.totalorder %s200, %s214
    %p216 = scmp.eq.s32.totalorder %s20, 0
    %p217 = por %p215, %p216
    %s218 = ssub.s32 %s14, %s21
    %p219 = scmp.eq.s32.totalorder %s218, 0
    %s221 = sadd.s32 %s220, 1
    %s222 = scalar_select %p219, %s220, %s221
    %p225 = pneg %p219
    %p226 = scmp.eq.s32.totalorder %s14, 4
    %p227 = por %p225, %p226
    %p228 = scmp.ne.s32.totalorder %s220, %s223
    %p229 = scmp.eq.s32.totalorder %s14, 0
    %p230 = por %p228, %p229
    %p231 = scmp.ne.s32.totalorder %s220, %s223
    %p232 = scmp.eq.s32.totalorder %s19, 4
    %p233 = por %p231, %p232
    %p234 = scmp.ne.s32.totalorder %s223, %s224
    %p235 = scmp.eq.s32.totalorder %s19, 0
    %p236 = por %p234, %p235
    %p237 = scmp.ne.s32.totalorder %s223, %s224
    %p238 = scmp.eq.s32.totalorder %s20, 4
    %p239 = por %p237, %p238
    %p241 = scmp.ne.s32.totalorder %s224, %s240
    %p242 = scmp.eq.s32.totalorder %s20, 0
    %p243 = por %p241, %p242
    %p244 = scmp.le.s32.totalorder 1, %s14
    %p245 = scmp.lt.s32.totalorder %s14, 6
    %p246 = pnand %p244, %p245
    %p247 = pneg %p246
    // Predicated region
    $region9: #{_lambda_.2} parent=5 // pred_check
      _
    $region10: #{_lambda_.2} parent=5 // pred_check_branch
      %249 = sbr.rel (%p246) target = $region12
    $region11: #{_lambda_.2} parent=5 // pred_region
      %s250 = ssub.s32 %s14, 1
      // Predicated region
      $region13: #{_lambda_.2} parent=11 // pred_check
        %p251 = pneg %p147
      $region14: #{_lambda_.2} parent=11 // pred_check_branch
        %253 = sbr.rel (%p251) target = $region16
      $region15: #{_lambda_.2} parent=11 // pred_region
        _
      $region16: #{_lambda_.2} parent=11 // pred_fallthru
        _
      // Predicated region
      $region17: #{_lambda_.2} parent=11 // pred_check
        %p254 = pneg %p168
      $region18: #{_lambda_.2} parent=11 // pred_check_branch
        %256 = sbr.rel (%p254) target = $region20
      $region19: #{_lambda_.2} parent=11 // pred_region
        _
      $region20: #{_lambda_.2} parent=11 // pred_fallthru
        _
      // Predicated region
      $region21: #{_lambda_.2} parent=11 // pred_check
        %p257 = pneg %p189
      $region22: #{_lambda_.2} parent=11 // pred_check_branch
        %259 = sbr.rel (%p257) target = $region24
      $region23: #{_lambda_.2} parent=11 // pred_region
        _
      $region24: #{_lambda_.2} parent=11 // pred_fallthru
        _
      // Predicated region
      $region25: #{_lambda_.2} parent=11 // pred_check
        %p260 = pneg %p210
      $region26: #{_lambda_.2} parent=11 // pred_check_branch
        %262 = sbr.rel (%p260) target = $region28
      $region27: #{_lambda_.2} parent=11 // pred_region
        _
      $region28: #{_lambda_.2} parent=11 // pred_fallthru
        _
    $region12: #{_lambda_.2} parent=5 // pred_fallthru
      _
    %p263 = scmp.lt.s32.totalorder %s14, 5
    // Predicated region
    $region29: #{_lambda_.2} parent=5 // pred_check
      %p264 = pneg %p263
    $region30: #{_lambda_.2} parent=5 // pred_check_branch
      %266 = sbr.rel (%p264) target = $region32
    $region31: #{_lambda_.2} parent=5 // pred_region
      // Predicated region
      $region33: #{_lambda_.2} parent=31 // pred_check
        %p267 = pneg %p34
      $region34: #{_lambda_.2} parent=31 // pred_check_branch
        %269 = sbr.rel (%p267) target = $region36
      $region35: #{_lambda_.2} parent=31 // pred_region
        %s270 = smul.u32 80, %s14
        %s271 = ssub.s32 405, %s270
        %p272 = scmp.lt.s32.totalorder %s271, 80
        %s273 = scalar_select %p272, %s271, 80
        %s274 = smul.u32 4, %s273
        %p275 = scmp.lt.s32.totalorder %s270, 404
        %s276 = scalar_select %p275, %s270, 404
        %s277 = smul.addr %s276, 4
        %s278 = scalar_lea.vmem %s0, %s277
        %s279 = smul.u32 80, %s14
        %s280 = ssub.s32 405, %s279
        %p281 = scmp.lt.s32.totalorder %s280, 80
        %s282 = scalar_select %p281, %s280, 80
        %s283 = smul.u32 4, %s282
      $region36: #{_lambda_.2} parent=31 // pred_fallthru
        _
      // Predicated region
      $region37: #{_lambda_.2} parent=31 // pred_check
        %p284 = pneg %p64
      $region38: #{_lambda_.2} parent=31 // pred_check_branch
        %286 = sbr.rel (%p284) target = $region40
      $region39: #{_lambda_.2} parent=31 // pred_region
        %s287 = sadd.s32 %s14, 1
        %s288 = smul.u32 %s287, 16
        %s289 = smul.u32 5, %s288
        %p290 = scmp.lt.s32.totalorder %s289, 404
        %s291 = scalar_select %p290, %s289, 404
        %s292 = smul.addr %s291, 4
        %s293 = scalar_lea.vmem %s1, %s292
        %s294 = sadd.s32 %s14, 1
        %s295 = smul.u32 %s294, 16
        %s296 = smul.u32 5, %s295
      $region40: #{_lambda_.2} parent=31 // pred_fallthru
        _
      // Predicated region
      $region41: #{_lambda_.2} parent=31 // pred_check
        %p297 = pneg %p90
      $region42: #{_lambda_.2} parent=31 // pred_check_branch
        %299 = sbr.rel (%p297) target = $region44
      $region43: #{_lambda_.2} parent=31 // pred_region
        %s300 = smul.u32 80, %s14
        %s301 = ssub.s32 405, %s300
        %p302 = scmp.lt.s32.totalorder %s301, 80
        %s303 = scalar_select %p302, %s301, 80
        %s304 = smul.u32 8, %s303
        %p305 = scmp.lt.s32.totalorder %s300, 404
        %s306 = scalar_select %p305, %s300, 404
        %s307 = smul.addr %s306, 8
        %s308 = scalar_lea.vmem %s2, %s307
        %s309 = smul.u32 80, %s14
        %s310 = ssub.s32 405, %s309
        %p311 = scmp.lt.s32.totalorder %s310, 80
        %s312 = scalar_select %p311, %s310, 80
        %s313 = smul.u32 8, %s312
      $region44: #{_lambda_.2} parent=31 // pred_fallthru
        _
      // Predicated region
      $region45: #{_lambda_.2} parent=31 // pred_check
        %p314 = pneg %p120
      $region46: #{_lambda_.2} parent=31 // pred_check_branch
        %316 = sbr.rel (%p314) target = $region48
      $region47: #{_lambda_.2} parent=31 // pred_region
        %s317 = sadd.s32 %s14, 1
        %s318 = smul.u32 %s317, 16
        %s319 = smul.u32 5, %s318
        %p320 = scmp.lt.s32.totalorder %s319, 404
        %s321 = scalar_select %p320, %s319, 404
        %s322 = smul.addr %s321, 8
        %s323 = scalar_lea.vmem %s3, %s322
        %s324 = sadd.s32 %s14, 1
        %s325 = smul.u32 %s324, 16
        %s326 = smul.u32 5, %s325
      $region48: #{_lambda_.2} parent=31 // pred_fallthru
        _
    $region32: #{_lambda_.2} parent=5 // pred_fallthru
      _
    %p327 = scmp.le.s32.totalorder 1, %s14
    %p328 = scmp.lt.s32.totalorder %s14, 6
    %p329 = pnand %p327, %p328
    %p330 = pneg %p329
    // Predicated region
    $region49: #{_lambda_.2} parent=5 // pred_check
      _
    $region50: #{_lambda_.2} parent=5 // pred_check_branch
      %332 = sbr.rel (%p329) target = $region52
    $region51: #{_lambda_.2} parent=5 // pred_region
      %s333 = ssub.s32 %s14, 1
      %s334 = smul.u32 80, %s19
      %s335 = ssub.s32 405, %s334
      %p336 = scmp.lt.s32.totalorder %s335, 80
      %s337 = scalar_select %p336, %s335, 80
      %s338 = smul.u32 4, %s337
      %p339 = scmp.lt.s32.totalorder %s334, 404
      %s340 = scalar_select %p339, %s334, 404
      %s341 = smul.addr %s340, 4
      %s342 = scalar_lea.vmem %s0, %s341
      %p343 = pneg %p40
      %p344 = pneg %p37
      %s345 = sadd.s32 %s19, 1
      %s346 = smul.u32 %s345, 16
      %s347 = smul.u32 5, %s346
      %p348 = scmp.lt.s32.totalorder %s347, 404
      %s349 = scalar_select %p348, %s347, 404
      %s350 = smul.addr %s349, 4
      %s351 = scalar_lea.vmem %s1, %s350
      %p352 = pneg %p70
      %p353 = pneg %p67
      %s354 = smul.u32 80, %s19
      %s355 = ssub.s32 405, %s354
      %p356 = scmp.lt.s32.totalorder %s355, 80
      %s357 = scalar_select %p356, %s355, 80
      %s358 = smul.u32 8, %s357
      %p359 = scmp.lt.s32.totalorder %s354, 404
      %s360 = scalar_select %p359, %s354, 404
      %s361 = smul.addr %s360, 8
      %s362 = scalar_lea.vmem %s2, %s361
      %p363 = pneg %p96
      %p364 = pneg %p93
      %s365 = sadd.s32 %s19, 1
      %s366 = smul.u32 %s365, 16
      %s367 = smul.u32 5, %s366
      %p368 = scmp.lt.s32.totalorder %s367, 404
      %s369 = scalar_select %p368, %s367, 404
      %s370 = smul.addr %s369, 8
      %s371 = scalar_lea.vmem %s3, %s370
      %p372 = pneg %p126
      %p373 = pneg %p123
      %p374 = pneg %p147
      %p375 = pneg %p144
      %p376 = pneg %p168
      %p377 = pneg %p165
      %p378 = pneg %p189
      %p379 = pneg %p186
      %p380 = pneg %p210
      %p381 = pneg %p207
      %p382 = pneg %p236
      %p383 = pneg %p233
      %s384 = smul.u32 80, %s19
      %p385 = scmp.lt.s32.totalorder %s384, 399
      %s386 = scalar_select %p385, %s384, 399
      %s387 = smul.addr %s386, 4
      %s388 = scalar_lea.vmem %s8, %s387
      %s389 = smul.u32 80, %s19
      %s390 = ssub.s32 405, %s389
      %p391 = scmp.lt.s32.totalorder %s390, 80
      %s392 = scalar_select %p391, %s390, 80
      %s393 = smul.u32 4, %s392
      %p394 = scmp.lt.s32.totalorder %s389, 404
      %s395 = scalar_select %p394, %s389, 404
      %s396 = smul.addr %s395, 4
      %s397 = scalar_lea.vmem %s0, %s396
      %s398 = smul.u32 80, %s19
      %s399 = ssub.s32 405, %s398
      %p400 = scmp.lt.s32.totalorder %s399, 80
      %s401 = scalar_select %p400, %s399, 80
      %s402 = smul.u32 4, %s401
      %s403 = sadd.s32 %s19, 1
      %s404 = smul.u32 %s403, 16
      %s405 = smul.u32 5, %s404
      %p406 = scmp.lt.s32.totalorder %s405, 404
      %s407 = scalar_select %p406, %s405, 404
      %s408 = smul.addr %s407, 4
      %s409 = scalar_lea.vmem %s1, %s408
      %s410 = sadd.s32 %s19, 1
      %s411 = smul.u32 %s410, 16
      %s412 = smul.u32 5, %s411
      %s413 = smul.u32 80, %s19
      %s414 = ssub.s32 405, %s413
      %p415 = scmp.lt.s32.totalorder %s414, 80
      %s416 = scalar_select %p415, %s414, 80
      %s417 = smul.u32 8, %s416
      %p418 = scmp.lt.s32.totalorder %s413, 404
      %s419 = scalar_select %p418, %s413, 404
      %s420 = smul.addr %s419, 8
      %s421 = scalar_lea.vmem %s2, %s420
      %s422 = smul.u32 80, %s19
      %s423 = ssub.s32 405, %s422
      %p424 = scmp.lt.s32.totalorder %s423, 80
      %s425 = scalar_select %p424, %s423, 80
      %s426 = smul.u32 8, %s425
      %s427 = sadd.s32 %s19, 1
      %s428 = smul.u32 %s427, 16
      %s429 = smul.u32 5, %s428
      %p430 = scmp.lt.s32.totalorder %s429, 404
      %s431 = scalar_select %p430, %s429, 404
      %s432 = smul.addr %s431, 8
      %s433 = scalar_lea.vmem %s3, %s432
      %s434 = sadd.s32 %s19, 1
      %s435 = smul.u32 %s434, 16
      %s436 = smul.u32 5, %s435
      %s437 = smul.u32 80, %s19
      %p438 = scmp.lt.s32.totalorder %s437, 399
      %s439 = scalar_select %p438, %s437, 399
      %s440 = smul.addr %s439, 4
      %s441 = scalar_lea.vmem %s8, %s440
      %s442 = smul.u32 80, %s19
      %v444 = vld [vmem:[%s397] sm:$0xf]
      %v445 = vld [vmem:[%s397 + $0x4] sm:$0xf]
      %v446 = vld [vmem:[%s397 + $0x8] sm:$0xf]
      %v447 = vld [vmem:[%s397 + $0xc] sm:$0xf]
      %v448 = vld [vmem:[%s397 + $0x10] sm:$0xf]
      %v449 = vld [vmem:[%s397 + $0x14] sm:$0xf]
      %v450 = vld [vmem:[%s397 + $0x18] sm:$0xf]
      %v451 = vld [vmem:[%s397 + $0x1c] sm:$0xf]
      %v452 = vld [vmem:[%s397 + $0x20] sm:$0xf]
      %v453 = vld [vmem:[%s397 + $0x24] sm:$0xf]
      %v454 = vld [vmem:[%s397 + $0x28] sm:$0xf]
      %v455 = vld [vmem:[%s397 + $0x2c] sm:$0xf]
      %v456 = vld [vmem:[%s397 + $0x30] sm:$0xf]
      %v457 = vld [vmem:[%s397 + $0x34] sm:$0xf]
      %v458 = vld [vmem:[%s397 + $0x38] sm:$0xf]
      %v459 = vld [vmem:[%s397 + $0x3c] sm:$0xf]
      %v460 = vld [vmem:[%s397 + $0x40] sm:$0xf]
      %v461 = vld [vmem:[%s397 + $0x44] sm:$0xf]
      %v462 = vld [vmem:[%s397 + $0x48] sm:$0xf]
      %v463 = vld [vmem:[%s397 + $0x4c] sm:$0xf]
      %v464 = vld [vmem:[%s397 + $0x50] sm:$0xf]
      %v465 = vld [vmem:[%s397 + $0x54] sm:$0xf]
      %v466 = vld [vmem:[%s397 + $0x58] sm:$0xf]
      %v467 = vld [vmem:[%s397 + $0x5c] sm:$0xf]
      %v468 = vld [vmem:[%s397 + $0x60] sm:$0xf]
      %v469 = vld [vmem:[%s397 + $0x64] sm:$0xf]
      %v470 = vld [vmem:[%s397 + $0x68] sm:$0xf]
      %v471 = vld [vmem:[%s397 + $0x6c] sm:$0xf]
      %v472 = vld [vmem:[%s397 + $0x70] sm:$0xf]
      %v473 = vld [vmem:[%s397 + $0x74] sm:$0xf]
      %v474 = vld [vmem:[%s397 + $0x78] sm:$0xf]
      %v475 = vld [vmem:[%s397 + $0x7c] sm:$0xf]
      %v476 = vld [vmem:[%s397 + $0x80] sm:$0xf]
      %v477 = vld [vmem:[%s397 + $0x84] sm:$0xf]
      %v478 = vld [vmem:[%s397 + $0x88] sm:$0xf]
      %v479 = vld [vmem:[%s397 + $0x8c] sm:$0xf]
      %v480 = vld [vmem:[%s397 + $0x90] sm:$0xf]
      %v481 = vld [vmem:[%s397 + $0x94] sm:$0xf]
      %v482 = vld [vmem:[%s397 + $0x98] sm:$0xf]
      %v483 = vld [vmem:[%s397 + $0x9c] sm:$0xf]
      %v484 = vld [vmem:[%s397 + $0xa0] sm:$0xf]
      %v485 = vld [vmem:[%s397 + $0xa4] sm:$0xf]
      %v486 = vld [vmem:[%s397 + $0xa8] sm:$0xf]
      %v487 = vld [vmem:[%s397 + $0xac] sm:$0xf]
      %v488 = vld [vmem:[%s397 + $0xb0] sm:$0xf]
      %v489 = vld [vmem:[%s397 + $0xb4] sm:$0xf]
      %v490 = vld [vmem:[%s397 + $0xb8] sm:$0xf]
      %v491 = vld [vmem:[%s397 + $0xbc] sm:$0xf]
      %v492 = vld [vmem:[%s397 + $0xc0] sm:$0xf]
      %v493 = vld [vmem:[%s397 + $0xc4] sm:$0xf]
      %v494 = vld [vmem:[%s397 + $0xc8] sm:$0xf]
      %v495 = vld [vmem:[%s397 + $0xcc] sm:$0xf]
      %v496 = vld [vmem:[%s397 + $0xd0] sm:$0xf]
      %v497 = vld [vmem:[%s397 + $0xd4] sm:$0xf]
      %v498 = vld [vmem:[%s397 + $0xd8] sm:$0xf]
      %v499 = vld [vmem:[%s397 + $0xdc] sm:$0xf]
      %v500 = vld [vmem:[%s397 + $0xe0] sm:$0xf]
      %v501 = vld [vmem:[%s397 + $0xe4] sm:$0xf]
      %v502 = vld [vmem:[%s397 + $0xe8] sm:$0xf]
      %v503 = vld [vmem:[%s397 + $0xec] sm:$0xf]
      %v504 = vld [vmem:[%s397 + $0xf0] sm:$0xf]
      %v505 = vld [vmem:[%s397 + $0xf4] sm:$0xf]
      %v506 = vld [vmem:[%s397 + $0xf8] sm:$0xf]
      %v507 = vld [vmem:[%s397 + $0xfc] sm:$0xf]
      %v508 = vld [vmem:[%s397 + $0x100] sm:$0xf]
      %v509 = vld [vmem:[%s397 + $0x104] sm:$0xf]
      %v510 = vld [vmem:[%s397 + $0x108] sm:$0xf]
      %v511 = vld [vmem:[%s397 + $0x10c] sm:$0xf]
      %v512 = vld [vmem:[%s397 + $0x110] sm:$0xf]
      %v513 = vld [vmem:[%s397 + $0x114] sm:$0xf]
      %v514 = vld [vmem:[%s397 + $0x118] sm:$0xf]
      %v515 = vld [vmem:[%s397 + $0x11c] sm:$0xf]
      %v516 = vld [vmem:[%s397 + $0x120] sm:$0xf]
      %v517 = vld [vmem:[%s397 + $0x124] sm:$0xf]
      %v518 = vld [vmem:[%s397 + $0x128] sm:$0xf]
      %v519 = vld [vmem:[%s397 + $0x12c] sm:$0xf]
      %v520 = vld [vmem:[%s397 + $0x130] sm:$0xf]
      %v521 = vld [vmem:[%s397 + $0x134] sm:$0xf]
      %v522 = vld [vmem:[%s397 + $0x138] sm:$0xf]
      %v523 = vld [vmem:[%s397 + $0x13c] sm:$0xf]
      %v524 = vld [vmem:[%s409] sm:$0xf]
      %v525 = vld [vmem:[%s409 + $0x4] sm:$0xf]
      %v526 = vld [vmem:[%s409 + $0x8] sm:$0xf]
      %v527 = vld [vmem:[%s409 + $0xc] sm:$0xf]
      %v528 = vld [vmem:[%s409 + $0x10] sm:$0xf]
      %v609 = vunpack.c.l.b16 %v444
      %v610 = vunpack.c.l.b16 %v445
      %v611 = vunpack.c.l.b16 %v446
      %v612 = vunpack.c.l.b16 %v447
      %v613 = vunpack.c.l.b16 %v448
      %v614 = vunpack.c.l.b16 %v449
      %v615 = vunpack.c.l.b16 %v450
      %v616 = vunpack.c.l.b16 %v451
      %v617 = vunpack.c.l.b16 %v452
      %v618 = vunpack.c.l.b16 %v453
      %v619 = vunpack.c.l.b16 %v454
      %v620 = vunpack.c.l.b16 %v455
      %v621 = vunpack.c.l.b16 %v456
      %v622 = vunpack.c.l.b16 %v457
      %v623 = vunpack.c.l.b16 %v458
      %v624 = vunpack.c.l.b16 %v459
      %v625 = vunpack.c.l.b16 %v460
      %v626 = vunpack.c.l.b16 %v461
      %v627 = vunpack.c.l.b16 %v462
      %v628 = vunpack.c.l.b16 %v463
      %v629 = vunpack.c.l.b16 %v464
      %v630 = vunpack.c.l.b16 %v465
      %v631 = vunpack.c.l.b16 %v466
      %v632 = vunpack.c.l.b16 %v467
      %v633 = vunpack.c.l.b16 %v468
      %v634 = vunpack.c.l.b16 %v469
      %v635 = vunpack.c.l.b16 %v470
      %v636 = vunpack.c.l.b16 %v471
      %v637 = vunpack.c.l.b16 %v472
      %v638 = vunpack.c.l.b16 %v473
      %v639 = vunpack.c.l.b16 %v474
      %v640 = vunpack.c.l.b16 %v475
      %v641 = vunpack.c.l.b16 %v476
      %v642 = vunpack.c.l.b16 %v477
      %v643 = vunpack.c.l.b16 %v478
      %v644 = vunpack.c.l.b16 %v479
      %v645 = vunpack.c.l.b16 %v480
      %v646 = vunpack.c.l.b16 %v481
      %v647 = vunpack.c.l.b16 %v482
      %v648 = vunpack.c.l.b16 %v483
      %v649 = vunpack.c.l.b16 %v484
      %v650 = vunpack.c.l.b16 %v485
      %v651 = vunpack.c.l.b16 %v486
      %v652 = vunpack.c.l.b16 %v487
      %v653 = vunpack.c.l.b16 %v488
      %v654 = vunpack.c.l.b16 %v489
      %v655 = vunpack.c.l.b16 %v490
      %v656 = vunpack.c.l.b16 %v491
      %v657 = vunpack.c.l.b16 %v492
      %v658 = vunpack.c.l.b16 %v493
      %v659 = vunpack.c.l.b16 %v494
      %v660 = vunpack.c.l.b16 %v495
      %v661 = vunpack.c.l.b16 %v496
      %v662 = vunpack.c.l.b16 %v497
      %v663 = vunpack.c.l.b16 %v498
      %v664 = vunpack.c.l.b16 %v499
      %v665 = vunpack.c.l.b16 %v500
      %v666 = vunpack.c.l.b16 %v501
      %v667 = vunpack.c.l.b16 %v502
      %v668 = vunpack.c.l.b16 %v503
      %v669 = vunpack.c.l.b16 %v504
      %v670 = vunpack.c.l.b16 %v505
      %v671 = vunpack.c.l.b16 %v506
      %v672 = vunpack.c.l.b16 %v507
      %v673 = vunpack.c.l.b16 %v508
      %v674 = vunpack.c.l.b16 %v509
      %v675 = vunpack.c.l.b16 %v510
      %v676 = vunpack.c.l.b16 %v511
      %v677 = vunpack.c.l.b16 %v512
      %v678 = vunpack.c.l.b16 %v513
      %v679 = vunpack.c.l.b16 %v514
      %v680 = vunpack.c.l.b16 %v515
      %v681 = vunpack.c.l.b16 %v516
      %v682 = vunpack.c.l.b16 %v517
      %v683 = vunpack.c.l.b16 %v518
      %v684 = vunpack.c.l.b16 %v519
      %v685 = vunpack.c.l.b16 %v520
      %v686 = vunpack.c.l.b16 %v521
      %v687 = vunpack.c.l.b16 %v522
      %v688 = vunpack.c.l.b16 %v523
      %v689 = vpack.c.b16 %v610, %v609
      %v690 = vpack.c.b16 %v612, %v611
      %v691 = vpack.c.b16 %v614, %v613
      %v692 = vpack.c.b16 %v616, %v615
      %v693 = vpack.c.b16 %v618, %v617
      %v694 = vpack.c.b16 %v620, %v619
      %v695 = vpack.c.b16 %v622, %v621
      %v696 = vpack.c.b16 %v624, %v623
      %v697 = vpack.c.b16 %v626, %v625
      %v698 = vpack.c.b16 %v628, %v627
      %v699 = vpack.c.b16 %v630, %v629
      %v700 = vpack.c.b16 %v632, %v631
      %v701 = vpack.c.b16 %v634, %v633
      %v702 = vpack.c.b16 %v636, %v635
      %v703 = vpack.c.b16 %v638, %v637
      %v704 = vpack.c.b16 %v640, %v639
      %v705 = vpack.c.b16 %v642, %v641
      %v706 = vpack.c.b16 %v644, %v643
      %v707 = vpack.c.b16 %v646, %v645
      %v708 = vpack.c.b16 %v648, %v647
      %v709 = vpack.c.b16 %v650, %v649
      %v710 = vpack.c.b16 %v652, %v651
      %v711 = vpack.c.b16 %v654, %v653
      %v712 = vpack.c.b16 %v656, %v655
      %v713 = vpack.c.b16 %v658, %v657
      %v714 = vpack.c.b16 %v660, %v659
      %v715 = vpack.c.b16 %v662, %v661
      %v716 = vpack.c.b16 %v664, %v663
      %v717 = vpack.c.b16 %v666, %v665
      %v718 = vpack.c.b16 %v668, %v667
      %v719 = vpack.c.b16 %v670, %v669
      %v720 = vpack.c.b16 %v672, %v671
      %v721 = vpack.c.b16 %v674, %v673
      %v722 = vpack.c.b16 %v676, %v675
      %v723 = vpack.c.b16 %v678, %v677
      %v724 = vpack.c.b16 %v680, %v679
      %v725 = vpack.c.b16 %v682, %v681
      %v726 = vpack.c.b16 %v684, %v683
      %v727 = vpack.c.b16 %v686, %v685
      %v728 = vpack.c.b16 %v688, %v687
      %v734 = vunpack.c.l.b16 %v524
      %v735 = vunpack.c.l.b16 %v525
      %v736 = vunpack.c.l.b16 %v526
      %v737 = vunpack.c.l.b16 %v527
      %v738 = vunpack.c.l.b16 %v528
      %v739 = vpack.c.b16 %v735, %v734
      %v740 = vpack.c.b16 %v737, %v736
      %v741 = vpack.c.b16 %v738, %v738
      %v742 = vld [vmem:[%s421] sm:$0xff]
      %v743 = vld [vmem:[%s421 + $0x8] sm:$0xff]
      %v744 = vld [vmem:[%s421 + $0x10] sm:$0xff]
      %v745 = vld [vmem:[%s421 + $0x18] sm:$0xff]
      %v746 = vld [vmem:[%s421 + $0x20] sm:$0xff]
      %v747 = vld [vmem:[%s421 + $0x28] sm:$0xff]
      %v748 = vld [vmem:[%s421 + $0x30] sm:$0xff]
      %v749 = vld [vmem:[%s421 + $0x38] sm:$0xff]
      %v750 = vld [vmem:[%s421 + $0x40] sm:$0xff]
      %v751 = vld [vmem:[%s421 + $0x48] sm:$0xff]
      %v752 = vld [vmem:[%s421 + $0x50] sm:$0xff]
      %v753 = vld [vmem:[%s421 + $0x58] sm:$0xff]
      %v754 = vld [vmem:[%s421 + $0x60] sm:$0xff]
      %v755 = vld [vmem:[%s421 + $0x68] sm:$0xff]
      %v756 = vld [vmem:[%s421 + $0x70] sm:$0xff]
      %v757 = vld [vmem:[%s421 + $0x78] sm:$0xff]
      %v758 = vld [vmem:[%s421 + $0x80] sm:$0xff]
      %v759 = vld [vmem:[%s421 + $0x88] sm:$0xff]
      %v760 = vld [vmem:[%s421 + $0x90] sm:$0xff]
      %v761 = vld [vmem:[%s421 + $0x98] sm:$0xff]
      %v762 = vld [vmem:[%s421 + $0xa0] sm:$0xff]
      %v763 = vld [vmem:[%s421 + $0xa8] sm:$0xff]
      %v764 = vld [vmem:[%s421 + $0xb0] sm:$0xff]
      %v765 = vld [vmem:[%s421 + $0xb8] sm:$0xff]
      %v766 = vld [vmem:[%s421 + $0xc0] sm:$0xff]
      %v767 = vld [vmem:[%s421 + $0xc8] sm:$0xff]
      %v768 = vld [vmem:[%s421 + $0xd0] sm:$0xff]
      %v769 = vld [vmem:[%s421 + $0xd8] sm:$0xff]
      %v770 = vld [vmem:[%s421 + $0xe0] sm:$0xff]
      %v771 = vld [vmem:[%s421 + $0xe8] sm:$0xff]
      %v772 = vld [vmem:[%s421 + $0xf0] sm:$0xff]
      %v773 = vld [vmem:[%s421 + $0xf8] sm:$0xff]
      %v774 = vld [vmem:[%s421 + $0x100] sm:$0xff]
      %v775 = vld [vmem:[%s421 + $0x108] sm:$0xff]
      %v776 = vld [vmem:[%s421 + $0x110] sm:$0xff]
      %v777 = vld [vmem:[%s421 + $0x118] sm:$0xff]
      %v778 = vld [vmem:[%s421 + $0x120] sm:$0xff]
      %v779 = vld [vmem:[%s421 + $0x128] sm:$0xff]
      %v780 = vld [vmem:[%s421 + $0x130] sm:$0xff]
      %v781 = vld [vmem:[%s421 + $0x138] sm:$0xff]
      %v782 = vld [vmem:[%s421 + $0x140] sm:$0xff]
      %v783 = vld [vmem:[%s421 + $0x148] sm:$0xff]
      %v784 = vld [vmem:[%s421 + $0x150] sm:$0xff]
      %v785 = vld [vmem:[%s421 + $0x158] sm:$0xff]
      %v786 = vld [vmem:[%s421 + $0x160] sm:$0xff]
      %v787 = vld [vmem:[%s421 + $0x168] sm:$0xff]
      %v788 = vld [vmem:[%s421 + $0x170] sm:$0xff]
      %v789 = vld [vmem:[%s421 + $0x178] sm:$0xff]
      %v790 = vld [vmem:[%s421 + $0x180] sm:$0xff]
      %v791 = vld [vmem:[%s421 + $0x188] sm:$0xff]
      %v792 = vld [vmem:[%s421 + $0x190] sm:$0xff]
      %v793 = vld [vmem:[%s421 + $0x198] sm:$0xff]
      %v794 = vld [vmem:[%s421 + $0x1a0] sm:$0xff]
      %v795 = vld [vmem:[%s421 + $0x1a8] sm:$0xff]
      %v796 = vld [vmem:[%s421 + $0x1b0] sm:$0xff]
      %v797 = vld [vmem:[%s421 + $0x1b8] sm:$0xff]
      %v798 = vld [vmem:[%s421 + $0x1c0] sm:$0xff]
      %v799 = vld [vmem:[%s421 + $0x1c8] sm:$0xff]
      %v800 = vld [vmem:[%s421 + $0x1d0] sm:$0xff]
      %v801 = vld [vmem:[%s421 + $0x1d8] sm:$0xff]
      %v802 = vld [vmem:[%s421 + $0x1e0] sm:$0xff]
      %v803 = vld [vmem:[%s421 + $0x1e8] sm:$0xff]
      %v804 = vld [vmem:[%s421 + $0x1f0] sm:$0xff]
      %v805 = vld [vmem:[%s421 + $0x1f8] sm:$0xff]
      %v806 = vld [vmem:[%s421 + $0x200] sm:$0xff]
      %v807 = vld [vmem:[%s421 + $0x208] sm:$0xff]
      %v808 = vld [vmem:[%s421 + $0x210] sm:$0xff]
      %v809 = vld [vmem:[%s421 + $0x218] sm:$0xff]
      %v810 = vld [vmem:[%s421 + $0x220] sm:$0xff]
      %v811 = vld [vmem:[%s421 + $0x228] sm:$0xff]
      %v812 = vld [vmem:[%s421 + $0x230] sm:$0xff]
      %v813 = vld [vmem:[%s421 + $0x238] sm:$0xff]
      %v814 = vld [vmem:[%s421 + $0x240] sm:$0xff]
      %v815 = vld [vmem:[%s421 + $0x248] sm:$0xff]
      %v816 = vld [vmem:[%s421 + $0x250] sm:$0xff]
      %v817 = vld [vmem:[%s421 + $0x258] sm:$0xff]
      %v818 = vld [vmem:[%s421 + $0x260] sm:$0xff]
      %v819 = vld [vmem:[%s421 + $0x268] sm:$0xff]
      %v820 = vld [vmem:[%s421 + $0x270] sm:$0xff]
      %v821 = vld [vmem:[%s421 + $0x278] sm:$0xff]
      %v822 = vld [vmem:[%s433] sm:$0xff]
      %v823 = vld [vmem:[%s433 + $0x8] sm:$0xff]
      %v824 = vld [vmem:[%s433 + $0x10] sm:$0xff]
      %v825 = vld [vmem:[%s433 + $0x18] sm:$0xff]
      %v826 = vld [vmem:[%s433 + $0x20] sm:$0xff]
      %v827 = vld [vmem:[%s4] sm:$0xf]
      %v828 = vld [vmem:[%s5] sm:$0x1]
      %v830 = vperm.slane %v828, 0
      %vm832 = vcmask 64512
      %v834 = vsel %vm832, %v689, 0
      %v837 = vsel %vm832, %v690, 0
      %v840 = vsel %vm832, %v691, 0
      %v843 = vsel %vm832, %v692, 0
      %v846 = vsel %vm832, %v693, 0
      %v849 = vsel %vm832, %v694, 0
      %v852 = vsel %vm832, %v695, 0
      %v855 = vsel %vm832, %v696, 0
      %v858 = vsel %vm832, %v697, 0
      %v861 = vsel %vm832, %v698, 0
      %v864 = vsel %vm832, %v699, 0
      %v867 = vsel %vm832, %v700, 0
      %v870 = vsel %vm832, %v701, 0
      %v873 = vsel %vm832, %v702, 0
      %v876 = vsel %vm832, %v703, 0
      %v879 = vsel %vm832, %v704, 0
      %v882 = vsel %vm832, %v705, 0
      %v885 = vsel %vm832, %v706, 0
      %v888 = vsel %vm832, %v707, 0
      %v891 = vsel %vm832, %v708, 0
      %v894 = vsel %vm832, %v709, 0
      %v897 = vsel %vm832, %v710, 0
      %v900 = vsel %vm832, %v711, 0
      %v903 = vsel %vm832, %v712, 0
      %v906 = vsel %vm832, %v713, 0
      %v909 = vsel %vm832, %v714, 0
      %v912 = vsel %vm832, %v715, 0
      %v915 = vsel %vm832, %v716, 0
      %v918 = vsel %vm832, %v717, 0
      %v921 = vsel %vm832, %v718, 0
      %v924 = vsel %vm832, %v719, 0
      %v927 = vsel %vm832, %v720, 0
      %v930 = vsel %vm832, %v721, 0
      %v933 = vsel %vm832, %v722, 0
      %v936 = vsel %vm832, %v723, 0
      %v939 = vsel %vm832, %v724, 0
      %v942 = vsel %vm832, %v725, 0
      %v945 = vsel %vm832, %v726, 0
      %v948 = vsel %vm832, %v727, 0
      %v951 = vsel %vm832, %v728, 0
      %v954 = vsel %vm832, %v739, 0
      %v957 = vsel %vm832, %v740, 0
      %v960 = vsel %vm832, %v741, 0
      %vm962 = vcmask 1043456
      %v964 = vsel %vm962, %v827, 0
      %966 = vmatpush.bf16.msra.mxu0 0
      %967 = vmatpush.bf16.msra.mxu0 0
      %968 = vmatpush.bf16.msra.mxu0 0
      %969 = vmatpush.bf16.msra.mxu0 0
      %970 = vmatpush.bf16.msra.mxu0 0
      %971 = vmatpush.bf16.msra.mxu0 0
      %972 = vmatpush.bf16.msra.mxu0 0
      %973 = vmatpush.bf16.msra.mxu0 %v964
      %974 = vmatmul.bf16.gmra.mxu0 %v834
      %v975 = vpop.f32.mrf.mxu0
      %v976 = vadd.f32 %v830, %v975
      %v977 = vpop.f32.mrf.mxu0
      %v978 = vadd.f32 %v830, %v977
      %979 = vmatmul.bf16.gmra.mxu0 %v837
      %v980 = vpop.f32.mrf.mxu0
      %v981 = vadd.f32 %v830, %v980
      %v982 = vpop.f32.mrf.mxu0
      %v983 = vadd.f32 %v830, %v982
      %984 = vmatmul.bf16.gmra.mxu0 %v840
      %v985 = vpop.f32.mrf.mxu0
      %v986 = vadd.f32 %v830, %v985
      %v987 = vpop.f32.mrf.mxu0
      %v988 = vadd.f32 %v830, %v987
      %989 = vmatmul.bf16.gmra.mxu0 %v843
      %v990 = vpop.f32.mrf.mxu0
      %v991 = vadd.f32 %v830, %v990
      %v992 = vpop.f32.mrf.mxu0
      %v993 = vadd.f32 %v830, %v992
      %994 = vmatmul.bf16.gmra.mxu0 %v846
      %v995 = vpop.f32.mrf.mxu0
      %v996 = vadd.f32 %v830, %v995
      %v997 = vpop.f32.mrf.mxu0
      %v998 = vadd.f32 %v830, %v997
      %999 = vmatmul.bf16.gmra.mxu0 %v849
      %v1000 = vpop.f32.mrf.mxu0
      %v1001 = vadd.f32 %v830, %v1000
      %v1002 = vpop.f32.mrf.mxu0
      %v1003 = vadd.f32 %v830, %v1002
      %1004 = vmatmul.bf16.gmra.mxu0 %v852
      %v1005 = vpop.f32.mrf.mxu0
      %v1006 = vadd.f32 %v830, %v1005
      %v1007 = vpop.f32.mrf.mxu0
      %v1008 = vadd.f32 %v830, %v1007
      %1009 = vmatmul.bf16.gmra.mxu0 %v855
      %v1010 = vpop.f32.mrf.mxu0
      %v1011 = vadd.f32 %v830, %v1010
      %v1012 = vpop.f32.mrf.mxu0
      %v1013 = vadd.f32 %v830, %v1012
      %1014 = vmatmul.bf16.gmra.mxu0 %v858
      %v1015 = vpop.f32.mrf.mxu0
      %v1016 = vadd.f32 %v830, %v1015
      %v1017 = vpop.f32.mrf.mxu0
      %v1018 = vadd.f32 %v830, %v1017
      %1019 = vmatmul.bf16.gmra.mxu0 %v861
      %v1020 = vpop.f32.mrf.mxu0
      %v1021 = vadd.f32 %v830, %v1020
      %v1022 = vpop.f32.mrf.mxu0
      %v1023 = vadd.f32 %v830, %v1022
      %1024 = vmatmul.bf16.gmra.mxu0 %v864
      %v1025 = vpop.f32.mrf.mxu0
      %v1026 = vadd.f32 %v830, %v1025
      %v1027 = vpop.f32.mrf.mxu0
      %v1028 = vadd.f32 %v830, %v1027
      %1029 = vmatmul.bf16.gmra.mxu0 %v867
      %v1030 = vpop.f32.mrf.mxu0
      %v1031 = vadd.f32 %v830, %v1030
      %v1032 = vpop.f32.mrf.mxu0
      %v1033 = vadd.f32 %v830, %v1032
      %1034 = vmatmul.bf16.gmra.mxu0 %v870
      %v1035 = vpop.f32.mrf.mxu0
      %v1036 = vadd.f32 %v830, %v1035
      %v1037 = vpop.f32.mrf.mxu0
      %v1038 = vadd.f32 %v830, %v1037
      %1039 = vmatmul.bf16.gmra.mxu0 %v873
      %v1040 = vpop.f32.mrf.mxu0
      %v1041 = vadd.f32 %v830, %v1040
      %v1042 = vpop.f32.mrf.mxu0
      %v1043 = vadd.f32 %v830, %v1042
      %1044 = vmatmul.bf16.gmra.mxu0 %v876
      %v1045 = vpop.f32.mrf.mxu0
      %v1046 = vadd.f32 %v830, %v1045
      %v1047 = vpop.f32.mrf.mxu0
      %v1048 = vadd.f32 %v830, %v1047
      %1049 = vmatmul.bf16.gmra.mxu0 %v879
      %v1050 = vpop.f32.mrf.mxu0
      %v1051 = vadd.f32 %v830, %v1050
      %v1052 = vpop.f32.mrf.mxu0
      %v1053 = vadd.f32 %v830, %v1052
      %1054 = vmatmul.bf16.gmra.mxu0 %v882
      %v1055 = vpop.f32.mrf.mxu0
      %v1056 = vadd.f32 %v830, %v1055
      %v1057 = vpop.f32.mrf.mxu0
      %v1058 = vadd.f32 %v830, %v1057
      %1059 = vmatmul.bf16.gmra.mxu0 %v885
      %v1060 = vpop.f32.mrf.mxu0
      %v1061 = vadd.f32 %v830, %v1060
      %v1062 = vpop.f32.mrf.mxu0
      %v1063 = vadd.f32 %v830, %v1062
      %1064 = vmatmul.bf16.gmra.mxu0 %v888
      %v1065 = vpop.f32.mrf.mxu0
      %v1066 = vadd.f32 %v830, %v1065
      %v1067 = vpop.f32.mrf.mxu0
      %v1068 = vadd.f32 %v830, %v1067
      %1069 = vmatmul.bf16.gmra.mxu0 %v891
      %v1070 = vpop.f32.mrf.mxu0
      %v1071 = vadd.f32 %v830, %v1070
      %v1072 = vpop.f32.mrf.mxu0
      %v1073 = vadd.f32 %v830, %v1072
      %1074 = vmatmul.bf16.gmra.mxu0 %v894
      %v1075 = vpop.f32.mrf.mxu0
      %v1076 = vadd.f32 %v830, %v1075
      %v1077 = vpop.f32.mrf.mxu0
      %v1078 = vadd.f32 %v830, %v1077
      %1079 = vmatmul.bf16.gmra.mxu0 %v897
      %v1080 = vpop.f32.mrf.mxu0
      %v1081 = vadd.f32 %v830, %v1080
      %v1082 = vpop.f32.mrf.mxu0
      %v1083 = vadd.f32 %v830, %v1082
      %1084 = vmatmul.bf16.gmra.mxu0 %v900
      %v1085 = vpop.f32.mrf.mxu0
      %v1086 = vadd.f32 %v830, %v1085
      %v1087 = vpop.f32.mrf.mxu0
      %v1088 = vadd.f32 %v830, %v1087
      %1089 = vmatmul.bf16.gmra.mxu0 %v903
      %v1090 = vpop.f32.mrf.mxu0
      %v1091 = vadd.f32 %v830, %v1090
      %v1092 = vpop.f32.mrf.mxu0
      %v1093 = vadd.f32 %v830, %v1092
      %1094 = vmatmul.bf16.gmra.mxu0 %v906
      %v1095 = vpop.f32.mrf.mxu0
      %v1096 = vadd.f32 %v830, %v1095
      %v1097 = vpop.f32.mrf.mxu0
      %v1098 = vadd.f32 %v830, %v1097
      %1099 = vmatmul.bf16.gmra.mxu0 %v909
      %v1100 = vpop.f32.mrf.mxu0
      %v1101 = vadd.f32 %v830, %v1100
      %v1102 = vpop.f32.mrf.mxu0
      %v1103 = vadd.f32 %v830, %v1102
      %1104 = vmatmul.bf16.gmra.mxu0 %v912
      %v1105 = vpop.f32.mrf.mxu0
      %v1106 = vadd.f32 %v830, %v1105
      %v1107 = vpop.f32.mrf.mxu0
      %v1108 = vadd.f32 %v830, %v1107
      %1109 = vmatmul.bf16.gmra.mxu0 %v915
      %v1110 = vpop.f32.mrf.mxu0
      %v1111 = vadd.f32 %v830, %v1110
      %v1112 = vpop.f32.mrf.mxu0
      %v1113 = vadd.f32 %v830, %v1112
      %1114 = vmatmul.bf16.gmra.mxu0 %v918
      %v1115 = vpop.f32.mrf.mxu0
      %v1116 = vadd.f32 %v830, %v1115
      %v1117 = vpop.f32.mrf.mxu0
      %v1118 = vadd.f32 %v830, %v1117
      %1119 = vmatmul.bf16.gmra.mxu0 %v921
      %v1120 = vpop.f32.mrf.mxu0
      %v1121 = vadd.f32 %v830, %v1120
      %v1122 = vpop.f32.mrf.mxu0
      %v1123 = vadd.f32 %v830, %v1122
      %1124 = vmatmul.bf16.gmra.mxu0 %v924
      %v1125 = vpop.f32.mrf.mxu0
      %v1126 = vadd.f32 %v830, %v1125
      %v1127 = vpop.f32.mrf.mxu0
      %v1128 = vadd.f32 %v830, %v1127
      %1129 = vmatmul.bf16.gmra.mxu0 %v927
      %v1130 = vpop.f32.mrf.mxu0
      %v1131 = vadd.f32 %v830, %v1130
      %v1132 = vpop.f32.mrf.mxu0
      %v1133 = vadd.f32 %v830, %v1132
      %1134 = vmatmul.bf16.gmra.mxu0 %v930
      %v1135 = vpop.f32.mrf.mxu0
      %v1136 = vadd.f32 %v830, %v1135
      %v1137 = vpop.f32.mrf.mxu0
      %v1138 = vadd.f32 %v830, %v1137
      %1139 = vmatmul.bf16.gmra.mxu0 %v933
      %v1140 = vpop.f32.mrf.mxu0
      %v1141 = vadd.f32 %v830, %v1140
      %v1142 = vpop.f32.mrf.mxu0
      %v1143 = vadd.f32 %v830, %v1142
      %1144 = vmatmul.bf16.gmra.mxu0 %v936
      %v1145 = vpop.f32.mrf.mxu0
      %v1146 = vadd.f32 %v830, %v1145
      %v1147 = vpop.f32.mrf.mxu0
      %v1148 = vadd.f32 %v830, %v1147
      %1149 = vmatmul.bf16.gmra.mxu0 %v939
      %v1150 = vpop.f32.mrf.mxu0
      %v1151 = vadd.f32 %v830, %v1150
      %v1152 = vpop.f32.mrf.mxu0
      %v1153 = vadd.f32 %v830, %v1152
      %1154 = vmatmul.bf16.gmra.mxu0 %v942
      %v1155 = vpop.f32.mrf.mxu0
      %v1156 = vadd.f32 %v830, %v1155
      %v1157 = vpop.f32.mrf.mxu0
      %v1158 = vadd.f32 %v830, %v1157
      %1159 = vmatmul.bf16.gmra.mxu0 %v945
      %v1160 = vpop.f32.mrf.mxu0
      %v1161 = vadd.f32 %v830, %v1160
      %v1162 = vpop.f32.mrf.mxu0
      %v1163 = vadd.f32 %v830, %v1162
      %1164 = vmatmul.bf16.gmra.mxu0 %v948
      %v1165 = vpop.f32.mrf.mxu0
      %v1166 = vadd.f32 %v830, %v1165
      %v1167 = vpop.f32.mrf.mxu0
      %v1168 = vadd.f32 %v830, %v1167
      %1169 = vmatmul.bf16.gmra.mxu0 %v951
      %v1170 = vpop.f32.mrf.mxu0
      %v1171 = vadd.f32 %v830, %v1170
      %v1172 = vpop.f32.mrf.mxu0
      %v1173 = vadd.f32 %v830, %v1172
      %1174 = vmatmul.bf16.gmra.mxu0 %v954
      %v1175 = vpop.f32.mrf.mxu0
      %v1176 = vadd.f32 %v830, %v1175
      %v1177 = vpop.f32.mrf.mxu0
      %v1178 = vadd.f32 %v830, %v1177
      %1179 = vmatmul.bf16.gmra.mxu0 %v957
      %v1180 = vpop.f32.mrf.mxu0
      %v1181 = vadd.f32 %v830, %v1180
      %v1182 = vpop.f32.mrf.mxu0
      %v1183 = vadd.f32 %v830, %v1182
      %1184 = vmatmul.bf16.gmra.mxu0 %v960
      %v1185 = vpop.f32.mrf.mxu0
      %v1186 = vadd.f32 %v830, %v1185
      %v1187 = vpop.f32.mrf.mxu0
      %1188 = vdwg.mxu0
      %v1189 = vmax.f32 %v976, 0.0
      %v1190 = vmax.f32 %v978, 0.0
      %v1191 = vmax.f32 %v981, 0.0
      %v1192 = vmax.f32 %v983, 0.0
      %v1193 = vmax.f32 %v986, 0.0
      %v1194 = vmax.f32 %v988, 0.0
      %v1195 = vmax.f32 %v991, 0.0
      %v1196 = vmax.f32 %v993, 0.0
      %v1197 = vmax.f32 %v996, 0.0
      %v1198 = vmax.f32 %v998, 0.0
      %v1199 = vmax.f32 %v1001, 0.0
      %v1200 = vmax.f32 %v1003, 0.0
      %v1201 = vmax.f32 %v1006, 0.0
      %v1202 = vmax.f32 %v1008, 0.0
      %v1203 = vmax.f32 %v1011, 0.0
      %v1204 = vmax.f32 %v1013, 0.0
      %v1205 = vmax.f32 %v1016, 0.0
      %v1206 = vmax.f32 %v1018, 0.0
      %v1207 = vmax.f32 %v1021, 0.0
      %v1208 = vmax.f32 %v1023, 0.0
      %v1209 = vmax.f32 %v1026, 0.0
      %v1210 = vmax.f32 %v1028, 0.0
      %v1211 = vmax.f32 %v1031, 0.0
      %v1212 = vmax.f32 %v1033, 0.0
      %v1213 = vmax.f32 %v1036, 0.0
      %v1214 = vmax.f32 %v1038, 0.0
      %v1215 = vmax.f32 %v1041, 0.0
      %v1216 = vmax.f32 %v1043, 0.0
      %v1217 = vmax.f32 %v1046, 0.0
      %v1218 = vmax.f32 %v1048, 0.0
      %v1219 = vmax.f32 %v1051, 0.0
      %v1220 = vmax.f32 %v1053, 0.0
      %v1221 = vmax.f32 %v1056, 0.0
      %v1222 = vmax.f32 %v1058, 0.0
      %v1223 = vmax.f32 %v1061, 0.0
      %v1224 = vmax.f32 %v1063, 0.0
      %v1225 = vmax.f32 %v1066, 0.0
      %v1226 = vmax.f32 %v1068, 0.0
      %v1227 = vmax.f32 %v1071, 0.0
      %v1228 = vmax.f32 %v1073, 0.0
      %v1229 = vmax.f32 %v1076, 0.0
      %v1230 = vmax.f32 %v1078, 0.0
      %v1231 = vmax.f32 %v1081, 0.0
      %v1232 = vmax.f32 %v1083, 0.0
      %v1233 = vmax.f32 %v1086, 0.0
      %v1234 = vmax.f32 %v1088, 0.0
      %v1235 = vmax.f32 %v1091, 0.0
      %v1236 = vmax.f32 %v1093, 0.0
      %v1237 = vmax.f32 %v1096, 0.0
      %v1238 = vmax.f32 %v1098, 0.0
      %v1239 = vmax.f32 %v1101, 0.0
      %v1240 = vmax.f32 %v1103, 0.0
      %v1241 = vmax.f32 %v1106, 0.0
      %v1242 = vmax.f32 %v1108, 0.0
      %v1243 = vmax.f32 %v1111, 0.0
      %v1244 = vmax.f32 %v1113, 0.0
      %v1245 = vmax.f32 %v1116, 0.0
      %v1246 = vmax.f32 %v1118, 0.0
      %v1247 = vmax.f32 %v1121, 0.0
      %v1248 = vmax.f32 %v1123, 0.0
      %v1249 = vmax.f32 %v1126, 0.0
      %v1250 = vmax.f32 %v1128, 0.0
      %v1251 = vmax.f32 %v1131, 0.0
      %v1252 = vmax.f32 %v1133, 0.0
      %v1253 = vmax.f32 %v1136, 0.0
      %v1254 = vmax.f32 %v1138, 0.0
      %v1255 = vmax.f32 %v1141, 0.0
      %v1256 = vmax.f32 %v1143, 0.0
      %v1257 = vmax.f32 %v1146, 0.0
      %v1258 = vmax.f32 %v1148, 0.0
      %v1259 = vmax.f32 %v1151, 0.0
      %v1260 = vmax.f32 %v1153, 0.0
      %v1261 = vmax.f32 %v1156, 0.0
      %v1262 = vmax.f32 %v1158, 0.0
      %v1263 = vmax.f32 %v1161, 0.0
      %v1264 = vmax.f32 %v1163, 0.0
      %v1265 = vmax.f32 %v1166, 0.0
      %v1266 = vmax.f32 %v1168, 0.0
      %v1267 = vmax.f32 %v1171, 0.0
      %v1268 = vmax.f32 %v1173, 0.0
      %v1269 = vmax.f32 %v1176, 0.0
      %v1270 = vmax.f32 %v1178, 0.0
      %v1271 = vmax.f32 %v1181, 0.0
      %v1272 = vmax.f32 %v1183, 0.0
      %v1273 = vmax.f32 %v1186, 0.0
      %1275 = vset.pattern.permute.xlu0 0
      %1276 = vperm.xlu0 %1275, %v742
      %v1277 = vpop.permute.xlu0 %1276
      %1280 = vset.pattern.permute.xlu0 0
      %1281 = vperm.xlu0 %1280, %v743
      %v1282 = vpop.permute.xlu0 %1281
      %1285 = vset.pattern.permute.xlu0 0
      %1286 = vperm.xlu0 %1285, %v744
      %v1287 = vpop.permute.xlu0 %1286
      %1290 = vset.pattern.permute.xlu0 0
      %1291 = vperm.xlu0 %1290, %v745
      %v1292 = vpop.permute.xlu0 %1291
      %1295 = vset.pattern.permute.xlu0 0
      %1296 = vperm.xlu0 %1295, %v746
      %v1297 = vpop.permute.xlu0 %1296
      %1300 = vset.pattern.permute.xlu0 0
      %1301 = vperm.xlu0 %1300, %v747
      %v1302 = vpop.permute.xlu0 %1301
      %1305 = vset.pattern.permute.xlu0 0
      %1306 = vperm.xlu0 %1305, %v748
      %v1307 = vpop.permute.xlu0 %1306
      %1310 = vset.pattern.permute.xlu0 0
      %1311 = vperm.xlu0 %1310, %v749
      %v1312 = vpop.permute.xlu0 %1311
      %1315 = vset.pattern.permute.xlu0 0
      %1316 = vperm.xlu0 %1315, %v750
      %v1317 = vpop.permute.xlu0 %1316
      %1320 = vset.pattern.permute.xlu0 0
      %1321 = vperm.xlu0 %1320, %v751
      %v1322 = vpop.permute.xlu0 %1321
      %1325 = vset.pattern.permute.xlu0 0
      %1326 = vperm.xlu0 %1325, %v752
      %v1327 = vpop.permute.xlu0 %1326
      %1330 = vset.pattern.permute.xlu0 0
      %1331 = vperm.xlu0 %1330, %v753
      %v1332 = vpop.permute.xlu0 %1331
      %1335 = vset.pattern.permute.xlu0 0
      %1336 = vperm.xlu0 %1335, %v754
      %v1337 = vpop.permute.xlu0 %1336
      %1340 = vset.pattern.permute.xlu0 0
      %1341 = vperm.xlu0 %1340, %v755
      %v1342 = vpop.permute.xlu0 %1341
      %1345 = vset.pattern.permute.xlu0 0
      %1346 = vperm.xlu0 %1345, %v756
      %v1347 = vpop.permute.xlu0 %1346
      %1350 = vset.pattern.permute.xlu0 0
      %1351 = vperm.xlu0 %1350, %v757
      %v1352 = vpop.permute.xlu0 %1351
      %1355 = vset.pattern.permute.xlu0 0
      %1356 = vperm.xlu0 %1355, %v758
      %v1357 = vpop.permute.xlu0 %1356
      %1360 = vset.pattern.permute.xlu0 0
      %1361 = vperm.xlu0 %1360, %v759
      %v1362 = vpop.permute.xlu0 %1361
      %1365 = vset.pattern.permute.xlu0 0
      %1366 = vperm.xlu0 %1365, %v760
      %v1367 = vpop.permute.xlu0 %1366
      %1370 = vset.pattern.permute.xlu0 0
      %1371 = vperm.xlu0 %1370, %v761
      %v1372 = vpop.permute.xlu0 %1371
      %1375 = vset.pattern.permute.xlu0 0
      %1376 = vperm.xlu0 %1375, %v762
      %v1377 = vpop.permute.xlu0 %1376
      %1380 = vset.pattern.permute.xlu0 0
      %1381 = vperm.xlu0 %1380, %v763
      %v1382 = vpop.permute.xlu0 %1381
      %1385 = vset.pattern.permute.xlu0 0
      %1386 = vperm.xlu0 %1385, %v764
      %v1387 = vpop.permute.xlu0 %1386
      %1390 = vset.pattern.permute.xlu0 0
      %1391 = vperm.xlu0 %1390, %v765
      %v1392 = vpop.permute.xlu0 %1391
      %1395 = vset.pattern.permute.xlu0 0
      %1396 = vperm.xlu0 %1395, %v766
      %v1397 = vpop.permute.xlu0 %1396
      %1400 = vset.pattern.permute.xlu0 0
      %1401 = vperm.xlu0 %1400, %v767
      %v1402 = vpop.permute.xlu0 %1401
      %1405 = vset.pattern.permute.xlu0 0
      %1406 = vperm.xlu0 %1405, %v768
      %v1407 = vpop.permute.xlu0 %1406
      %1410 = vset.pattern.permute.xlu0 0
      %1411 = vperm.xlu0 %1410, %v769
      %v1412 = vpop.permute.xlu0 %1411
      %1415 = vset.pattern.permute.xlu0 0
      %1416 = vperm.xlu0 %1415, %v770
      %v1417 = vpop.permute.xlu0 %1416
      %1420 = vset.pattern.permute.xlu0 0
      %1421 = vperm.xlu0 %1420, %v771
      %v1422 = vpop.permute.xlu0 %1421
      %1425 = vset.pattern.permute.xlu0 0
      %1426 = vperm.xlu0 %1425, %v772
      %v1427 = vpop.permute.xlu0 %1426
      %1430 = vset.pattern.permute.xlu0 0
      %1431 = vperm.xlu0 %1430, %v773
      %v1432 = vpop.permute.xlu0 %1431
      %1435 = vset.pattern.permute.xlu0 0
      %1436 = vperm.xlu0 %1435, %v774
      %v1437 = vpop.permute.xlu0 %1436
      %1440 = vset.pattern.permute.xlu0 0
      %1441 = vperm.xlu0 %1440, %v775
      %v1442 = vpop.permute.xlu0 %1441
      %1445 = vset.pattern.permute.xlu0 0
      %1446 = vperm.xlu0 %1445, %v776
      %v1447 = vpop.permute.xlu0 %1446
      %1450 = vset.pattern.permute.xlu0 0
      %1451 = vperm.xlu0 %1450, %v777
      %v1452 = vpop.permute.xlu0 %1451
      %1455 = vset.pattern.permute.xlu0 0
      %1456 = vperm.xlu0 %1455, %v778
      %v1457 = vpop.permute.xlu0 %1456
      %1460 = vset.pattern.permute.xlu0 0
      %1461 = vperm.xlu0 %1460, %v779
      %v1462 = vpop.permute.xlu0 %1461
      %1465 = vset.pattern.permute.xlu0 0
      %1466 = vperm.xlu0 %1465, %v780
      %v1467 = vpop.permute.xlu0 %1466
      %1470 = vset.pattern.permute.xlu0 0
      %1471 = vperm.xlu0 %1470, %v781
      %v1472 = vpop.permute.xlu0 %1471
      %1475 = vset.pattern.permute.xlu0 0
      %1476 = vperm.xlu0 %1475, %v782
      %v1477 = vpop.permute.xlu0 %1476
      %1480 = vset.pattern.permute.xlu0 0
      %1481 = vperm.xlu0 %1480, %v783
      %v1482 = vpop.permute.xlu0 %1481
      %1485 = vset.pattern.permute.xlu0 0
      %1486 = vperm.xlu0 %1485, %v784
      %v1487 = vpop.permute.xlu0 %1486
      %1490 = vset.pattern.permute.xlu0 0
      %1491 = vperm.xlu0 %1490, %v785
      %v1492 = vpop.permute.xlu0 %1491
      %1495 = vset.pattern.permute.xlu0 0
      %1496 = vperm.xlu0 %1495, %v786
      %v1497 = vpop.permute.xlu0 %1496
      %1500 = vset.pattern.permute.xlu0 0
      %1501 = vperm.xlu0 %1500, %v787
      %v1502 = vpop.permute.xlu0 %1501
      %1505 = vset.pattern.permute.xlu0 0
      %1506 = vperm.xlu0 %1505, %v788
      %v1507 = vpop.permute.xlu0 %1506
      %1510 = vset.pattern.permute.xlu0 0
      %1511 = vperm.xlu0 %1510, %v789
      %v1512 = vpop.permute.xlu0 %1511
      %1515 = vset.pattern.permute.xlu0 0
      %1516 = vperm.xlu0 %1515, %v790
      %v1517 = vpop.permute.xlu0 %1516
      %1520 = vset.pattern.permute.xlu0 0
      %1521 = vperm.xlu0 %1520, %v791
      %v1522 = vpop.permute.xlu0 %1521
      %1525 = vset.pattern.permute.xlu0 0
      %1526 = vperm.xlu0 %1525, %v792
      %v1527 = vpop.permute.xlu0 %1526
      %1530 = vset.pattern.permute.xlu0 0
      %1531 = vperm.xlu0 %1530, %v793
      %v1532 = vpop.permute.xlu0 %1531
      %1535 = vset.pattern.permute.xlu0 0
      %1536 = vperm.xlu0 %1535, %v794
      %v1537 = vpop.permute.xlu0 %1536
      %1540 = vset.pattern.permute.xlu0 0
      %1541 = vperm.xlu0 %1540, %v795
      %v1542 = vpop.permute.xlu0 %1541
      %1545 = vset.pattern.permute.xlu0 0
      %1546 = vperm.xlu0 %1545, %v796
      %v1547 = vpop.permute.xlu0 %1546
      %1550 = vset.pattern.permute.xlu0 0
      %1551 = vperm.xlu0 %1550, %v797
      %v1552 = vpop.permute.xlu0 %1551
      %1555 = vset.pattern.permute.xlu0 0
      %1556 = vperm.xlu0 %1555, %v798
      %v1557 = vpop.permute.xlu0 %1556
      %1560 = vset.pattern.permute.xlu0 0
      %1561 = vperm.xlu0 %1560, %v799
      %v1562 = vpop.permute.xlu0 %1561
      %1565 = vset.pattern.permute.xlu0 0
      %1566 = vperm.xlu0 %1565, %v800
      %v1567 = vpop.permute.xlu0 %1566
      %1570 = vset.pattern.permute.xlu0 0
      %1571 = vperm.xlu0 %1570, %v801
      %v1572 = vpop.permute.xlu0 %1571
      %1575 = vset.pattern.permute.xlu0 0
      %1576 = vperm.xlu0 %1575, %v802
      %v1577 = vpop.permute.xlu0 %1576
      %1580 = vset.pattern.permute.xlu0 0
      %1581 = vperm.xlu0 %1580, %v803
      %v1582 = vpop.permute.xlu0 %1581
      %1585 = vset.pattern.permute.xlu0 0
      %1586 = vperm.xlu0 %1585, %v804
      %v1587 = vpop.permute.xlu0 %1586
      %1590 = vset.pattern.permute.xlu0 0
      %1591 = vperm.xlu0 %1590, %v805
      %v1592 = vpop.permute.xlu0 %1591
      %1595 = vset.pattern.permute.xlu0 0
      %1596 = vperm.xlu0 %1595, %v806
      %v1597 = vpop.permute.xlu0 %1596
      %1600 = vset.pattern.permute.xlu0 0
      %1601 = vperm.xlu0 %1600, %v807
      %v1602 = vpop.permute.xlu0 %1601
      %1605 = vset.pattern.permute.xlu0 0
      %1606 = vperm.xlu0 %1605, %v808
      %v1607 = vpop.permute.xlu0 %1606
      %1610 = vset.pattern.permute.xlu0 0
      %1611 = vperm.xlu0 %1610, %v809
      %v1612 = vpop.permute.xlu0 %1611
      %1615 = vset.pattern.permute.xlu0 0
      %1616 = vperm.xlu0 %1615, %v810
      %v1617 = vpop.permute.xlu0 %1616
      %1620 = vset.pattern.permute.xlu0 0
      %1621 = vperm.xlu0 %1620, %v811
      %v1622 = vpop.permute.xlu0 %1621
      %1625 = vset.pattern.permute.xlu0 0
      %1626 = vperm.xlu0 %1625, %v812
      %v1627 = vpop.permute.xlu0 %1626
      %1630 = vset.pattern.permute.xlu0 0
      %1631 = vperm.xlu0 %1630, %v813
      %v1632 = vpop.permute.xlu0 %1631
      %1635 = vset.pattern.permute.xlu0 0
      %1636 = vperm.xlu0 %1635, %v814
      %v1637 = vpop.permute.xlu0 %1636
      %1640 = vset.pattern.permute.xlu0 0
      %1641 = vperm.xlu0 %1640, %v815
      %v1642 = vpop.permute.xlu0 %1641
      %1645 = vset.pattern.permute.xlu0 0
      %1646 = vperm.xlu0 %1645, %v816
      %v1647 = vpop.permute.xlu0 %1646
      %1650 = vset.pattern.permute.xlu0 0
      %1651 = vperm.xlu0 %1650, %v817
      %v1652 = vpop.permute.xlu0 %1651
      %1655 = vset.pattern.permute.xlu0 0
      %1656 = vperm.xlu0 %1655, %v818
      %v1657 = vpop.permute.xlu0 %1656
      %1660 = vset.pattern.permute.xlu0 0
      %1661 = vperm.xlu0 %1660, %v819
      %v1662 = vpop.permute.xlu0 %1661
      %1665 = vset.pattern.permute.xlu0 0
      %1666 = vperm.xlu0 %1665, %v820
      %v1667 = vpop.permute.xlu0 %1666
      %1670 = vset.pattern.permute.xlu0 0
      %1671 = vperm.xlu0 %1670, %v821
      %v1672 = vpop.permute.xlu0 %1671
      %1675 = vset.pattern.permute.xlu0 0
      %1676 = vperm.xlu0 %1675, %v822
      %v1677 = vpop.permute.xlu0 %1676
      %1680 = vset.pattern.permute.xlu0 0
      %1681 = vperm.xlu0 %1680, %v823
      %v1682 = vpop.permute.xlu0 %1681
      %1685 = vset.pattern.permute.xlu0 0
      %1686 = vperm.xlu0 %1685, %v824
      %v1687 = vpop.permute.xlu0 %1686
      %1690 = vset.pattern.permute.xlu0 0
      %1691 = vperm.xlu0 %1690, %v825
      %v1692 = vpop.permute.xlu0 %1691
      %1695 = vset.pattern.permute.xlu0 0
      %1696 = vperm.xlu0 %1695, %v826
      %v1697 = vpop.permute.xlu0 %1696
      %v1699 = vmul.f32 %v1189, %v1277
      %v1700 = vmul.f32 %v1190, %v1282
      %v1701 = vmul.f32 %v1191, %v1287
      %v1702 = vmul.f32 %v1192, %v1292
      %v1703 = vmul.f32 %v1193, %v1297
      %v1704 = vmul.f32 %v1194, %v1302
      %v1705 = vmul.f32 %v1195, %v1307
      %v1706 = vmul.f32 %v1196, %v1312
      %v1707 = vmul.f32 %v1197, %v1317
      %v1708 = vmul.f32 %v1198, %v1322
      %v1709 = vmul.f32 %v1199, %v1327
      %v1710 = vmul.f32 %v1200, %v1332
      %v1711 = vmul.f32 %v1201, %v1337
      %v1712 = vmul.f32 %v1202, %v1342
      %v1713 = vmul.f32 %v1203, %v1347
      %v1714 = vmul.f32 %v1204, %v1352
      %v1715 = vmul.f32 %v1205, %v1357
      %v1716 = vmul.f32 %v1206, %v1362
      %v1717 = vmul.f32 %v1207, %v1367
      %v1718 = vmul.f32 %v1208, %v1372
      %v1719 = vmul.f32 %v1209, %v1377
      %v1720 = vmul.f32 %v1210, %v1382
      %v1721 = vmul.f32 %v1211, %v1387
      %v1722 = vmul.f32 %v1212, %v1392
      %v1723 = vmul.f32 %v1213, %v1397
      %v1724 = vmul.f32 %v1214, %v1402
      %v1725 = vmul.f32 %v1215, %v1407
      %v1726 = vmul.f32 %v1216, %v1412
      %v1727 = vmul.f32 %v1217, %v1417
      %v1728 = vmul.f32 %v1218, %v1422
      %v1729 = vmul.f32 %v1219, %v1427
      %v1730 = vmul.f32 %v1220, %v1432
      %v1731 = vmul.f32 %v1221, %v1437
      %v1732 = vmul.f32 %v1222, %v1442
      %v1733 = vmul.f32 %v1223, %v1447
      %v1734 = vmul.f32 %v1224, %v1452
      %v1735 = vmul.f32 %v1225, %v1457
      %v1736 = vmul.f32 %v1226, %v1462
      %v1737 = vmul.f32 %v1227, %v1467
      %v1738 = vmul.f32 %v1228, %v1472
      %v1739 = vmul.f32 %v1229, %v1477
      %v1740 = vmul.f32 %v1230, %v1482
      %v1741 = vmul.f32 %v1231, %v1487
      %v1742 = vmul.f32 %v1232, %v1492
      %v1743 = vmul.f32 %v1233, %v1497
      %v1744 = vmul.f32 %v1234, %v1502
      %v1745 = vmul.f32 %v1235, %v1507
      %v1746 = vmul.f32 %v1236, %v1512
      %v1747 = vmul.f32 %v1237, %v1517
      %v1748 = vmul.f32 %v1238, %v1522
      %v1749 = vmul.f32 %v1239, %v1527
      %v1750 = vmul.f32 %v1240, %v1532
      %v1751 = vmul.f32 %v1241, %v1537
      %v1752 = vmul.f32 %v1242, %v1542
      %v1753 = vmul.f32 %v1243, %v1547
      %v1754 = vmul.f32 %v1244, %v1552
      %v1755 = vmul.f32 %v1245, %v1557
      %v1756 = vmul.f32 %v1246, %v1562
      %v1757 = vmul.f32 %v1247, %v1567
      %v1758 = vmul.f32 %v1248, %v1572
      %v1759 = vmul.f32 %v1249, %v1577
      %v1760 = vmul.f32 %v1250, %v1582
      %v1761 = vmul.f32 %v1251, %v1587
      %v1762 = vmul.f32 %v1252, %v1592
      %v1763 = vmul.f32 %v1253, %v1597
      %v1764 = vmul.f32 %v1254, %v1602
      %v1765 = vmul.f32 %v1255, %v1607
      %v1766 = vmul.f32 %v1256, %v1612
      %v1767 = vmul.f32 %v1257, %v1617
      %v1768 = vmul.f32 %v1258, %v1622
      %v1769 = vmul.f32 %v1259, %v1627
      %v1770 = vmul.f32 %v1260, %v1632
      %v1771 = vmul.f32 %v1261, %v1637
      %v1772 = vmul.f32 %v1262, %v1642
      %v1773 = vmul.f32 %v1263, %v1647
      %v1774 = vmul.f32 %v1264, %v1652
      %v1775 = vmul.f32 %v1265, %v1657
      %v1776 = vmul.f32 %v1266, %v1662
      %v1777 = vmul.f32 %v1267, %v1667
      %v1778 = vmul.f32 %v1268, %v1672
      %v1779 = vmul.f32 %v1269, %v1677
      %v1780 = vmul.f32 %v1270, %v1682
      %v1781 = vmul.f32 %v1271, %v1687
      %v1782 = vmul.f32 %v1272, %v1692
      %v1783 = vmul.f32 %v1273, %v1697
      %v1784 = vpack.c.bf16 %v1699, %v1699
      %v1785 = vpack.c.bf16 %v1700, %v1700
      %v1786 = vpack.c.bf16 %v1701, %v1701
      %v1787 = vpack.c.bf16 %v1702, %v1702
      %v1788 = vpack.c.bf16 %v1703, %v1703
      %v1789 = vpack.c.bf16 %v1704, %v1704
      %v1790 = vpack.c.bf16 %v1705, %v1705
      %v1791 = vpack.c.bf16 %v1706, %v1706
      %v1792 = vpack.c.bf16 %v1707, %v1707
      %v1793 = vpack.c.bf16 %v1708, %v1708
      %v1794 = vpack.c.bf16 %v1709, %v1709
      %v1795 = vpack.c.bf16 %v1710, %v1710
      %v1796 = vpack.c.bf16 %v1711, %v1711
      %v1797 = vpack.c.bf16 %v1712, %v1712
      %v1798 = vpack.c.bf16 %v1713, %v1713
      %v1799 = vpack.c.bf16 %v1714, %v1714
      %v1800 = vpack.c.bf16 %v1715, %v1715
      %v1801 = vpack.c.bf16 %v1716, %v1716
      %v1802 = vpack.c.bf16 %v1717, %v1717
      %v1803 = vpack.c.bf16 %v1718, %v1718
      %v1804 = vpack.c.bf16 %v1719, %v1719
      %v1805 = vpack.c.bf16 %v1720, %v1720
      %v1806 = vpack.c.bf16 %v1721, %v1721
      %v1807 = vpack.c.bf16 %v1722, %v1722
      %v1808 = vpack.c.bf16 %v1723, %v1723
      %v1809 = vpack.c.bf16 %v1724, %v1724
      %v1810 = vpack.c.bf16 %v1725, %v1725
      %v1811 = vpack.c.bf16 %v1726, %v1726
      %v1812 = vpack.c.bf16 %v1727, %v1727
      %v1813 = vpack.c.bf16 %v1728, %v1728
      %v1814 = vpack.c.bf16 %v1729, %v1729
      %v1815 = vpack.c.bf16 %v1730, %v1730
      %v1816 = vpack.c.bf16 %v1731, %v1731
      %v1817 = vpack.c.bf16 %v1732, %v1732
      %v1818 = vpack.c.bf16 %v1733, %v1733
      %v1819 = vpack.c.bf16 %v1734, %v1734
      %v1820 = vpack.c.bf16 %v1735, %v1735
      %v1821 = vpack.c.bf16 %v1736, %v1736
      %v1822 = vpack.c.bf16 %v1737, %v1737
      %v1823 = vpack.c.bf16 %v1738, %v1738
      %v1824 = vpack.c.bf16 %v1739, %v1739
      %v1825 = vpack.c.bf16 %v1740, %v1740
      %v1826 = vpack.c.bf16 %v1741, %v1741
      %v1827 = vpack.c.bf16 %v1742, %v1742
      %v1828 = vpack.c.bf16 %v1743, %v1743
      %v1829 = vpack.c.bf16 %v1744, %v1744
      %v1830 = vpack.c.bf16 %v1745, %v1745
      %v1831 = vpack.c.bf16 %v1746, %v1746
      %v1832 = vpack.c.bf16 %v1747, %v1747
      %v1833 = vpack.c.bf16 %v1748, %v1748
      %v1834 = vpack.c.bf16 %v1749, %v1749
      %v1835 = vpack.c.bf16 %v1750, %v1750
      %v1836 = vpack.c.bf16 %v1751, %v1751
      %v1837 = vpack.c.bf16 %v1752, %v1752
      %v1838 = vpack.c.bf16 %v1753, %v1753
      %v1839 = vpack.c.bf16 %v1754, %v1754
      %v1840 = vpack.c.bf16 %v1755, %v1755
      %v1841 = vpack.c.bf16 %v1756, %v1756
      %v1842 = vpack.c.bf16 %v1757, %v1757
      %v1843 = vpack.c.bf16 %v1758, %v1758
      %v1844 = vpack.c.bf16 %v1759, %v1759
      %v1845 = vpack.c.bf16 %v1760, %v1760
      %v1846 = vpack.c.bf16 %v1761, %v1761
      %v1847 = vpack.c.bf16 %v1762, %v1762
      %v1848 = vpack.c.bf16 %v1763, %v1763
      %v1849 = vpack.c.bf16 %v1764, %v1764
      %v1850 = vpack.c.bf16 %v1765, %v1765
      %v1851 = vpack.c.bf16 %v1766, %v1766
      %v1852 = vpack.c.bf16 %v1767, %v1767
      %v1853 = vpack.c.bf16 %v1768, %v1768
      %v1854 = vpack.c.bf16 %v1769, %v1769
      %v1855 = vpack.c.bf16 %v1770, %v1770
      %v1856 = vpack.c.bf16 %v1771, %v1771
      %v1857 = vpack.c.bf16 %v1772, %v1772
      %v1858 = vpack.c.bf16 %v1773, %v1773
      %v1859 = vpack.c.bf16 %v1774, %v1774
      %v1860 = vpack.c.bf16 %v1775, %v1775
      %v1861 = vpack.c.bf16 %v1776, %v1776
      %v1862 = vpack.c.bf16 %v1777, %v1777
      %v1863 = vpack.c.bf16 %v1778, %v1778
      %v1864 = vpack.c.bf16 %v1779, %v1779
      %v1865 = vpack.c.bf16 %v1780, %v1780
      %v1866 = vpack.c.bf16 %v1781, %v1781
      %v1867 = vpack.c.bf16 %v1782, %v1782
      %v1868 = vpack.c.bf16 %v1783, %v1783
      %v1949 = vunpack.c.l.b16 %v1784
      %v1950 = vunpack.c.l.b16 %v1785
      %v1951 = vunpack.c.l.b16 %v1786
      %v1952 = vunpack.c.l.b16 %v1787
      %v1953 = vunpack.c.l.b16 %v1788
      %v1954 = vunpack.c.l.b16 %v1789
      %v1955 = vunpack.c.l.b16 %v1790
      %v1956 = vunpack.c.l.b16 %v1791
      %v1957 = vunpack.c.l.b16 %v1792
      %v1958 = vunpack.c.l.b16 %v1793
      %v1959 = vunpack.c.l.b16 %v1794
      %v1960 = vunpack.c.l.b16 %v1795
      %v1961 = vunpack.c.l.b16 %v1796
      %v1962 = vunpack.c.l.b16 %v1797
      %v1963 = vunpack.c.l.b16 %v1798
      %v1964 = vunpack.c.l.b16 %v1799
      %v1965 = vunpack.c.l.b16 %v1800
      %v1966 = vunpack.c.l.b16 %v1801
      %v1967 = vunpack.c.l.b16 %v1802
      %v1968 = vunpack.c.l.b16 %v1803
      %v1969 = vunpack.c.l.b16 %v1804
      %v1970 = vunpack.c.l.b16 %v1805
      %v1971 = vunpack.c.l.b16 %v1806
      %v1972 = vunpack.c.l.b16 %v1807
      %v1973 = vunpack.c.l.b16 %v1808
      %v1974 = vunpack.c.l.b16 %v1809
      %v1975 = vunpack.c.l.b16 %v1810
      %v1976 = vunpack.c.l.b16 %v1811
      %v1977 = vunpack.c.l.b16 %v1812
      %v1978 = vunpack.c.l.b16 %v1813
      %v1979 = vunpack.c.l.b16 %v1814
      %v1980 = vunpack.c.l.b16 %v1815
      %v1981 = vunpack.c.l.b16 %v1816
      %v1982 = vunpack.c.l.b16 %v1817
      %v1983 = vunpack.c.l.b16 %v1818
      %v1984 = vunpack.c.l.b16 %v1819
      %v1985 = vunpack.c.l.b16 %v1820
      %v1986 = vunpack.c.l.b16 %v1821
      %v1987 = vunpack.c.l.b16 %v1822
      %v1988 = vunpack.c.l.b16 %v1823
      %v1989 = vunpack.c.l.b16 %v1824
      %v1990 = vunpack.c.l.b16 %v1825
      %v1991 = vunpack.c.l.b16 %v1826
      %v1992 = vunpack.c.l.b16 %v1827
      %v1993 = vunpack.c.l.b16 %v1828
      %v1994 = vunpack.c.l.b16 %v1829
      %v1995 = vunpack.c.l.b16 %v1830
      %v1996 = vunpack.c.l.b16 %v1831
      %v1997 = vunpack.c.l.b16 %v1832
      %v1998 = vunpack.c.l.b16 %v1833
      %v1999 = vunpack.c.l.b16 %v1834
      %v2000 = vunpack.c.l.b16 %v1835
      %v2001 = vunpack.c.l.b16 %v1836
      %v2002 = vunpack.c.l.b16 %v1837
      %v2003 = vunpack.c.l.b16 %v1838
      %v2004 = vunpack.c.l.b16 %v1839
      %v2005 = vunpack.c.l.b16 %v1840
      %v2006 = vunpack.c.l.b16 %v1841
      %v2007 = vunpack.c.l.b16 %v1842
      %v2008 = vunpack.c.l.b16 %v1843
      %v2009 = vunpack.c.l.b16 %v1844
      %v2010 = vunpack.c.l.b16 %v1845
      %v2011 = vunpack.c.l.b16 %v1846
      %v2012 = vunpack.c.l.b16 %v1847
      %v2013 = vunpack.c.l.b16 %v1848
      %v2014 = vunpack.c.l.b16 %v1849
      %v2015 = vunpack.c.l.b16 %v1850
      %v2016 = vunpack.c.l.b16 %v1851
      %v2017 = vunpack.c.l.b16 %v1852
      %v2018 = vunpack.c.l.b16 %v1853
      %v2019 = vunpack.c.l.b16 %v1854
      %v2020 = vunpack.c.l.b16 %v1855
      %v2021 = vunpack.c.l.b16 %v1856
      %v2022 = vunpack.c.l.b16 %v1857
      %v2023 = vunpack.c.l.b16 %v1858
      %v2024 = vunpack.c.l.b16 %v1859
      %v2025 = vunpack.c.l.b16 %v1860
      %v2026 = vunpack.c.l.b16 %v1861
      %v2027 = vunpack.c.l.b16 %v1862
      %v2028 = vunpack.c.l.b16 %v1863
      %v2029 = vpack.c.b16 %v1950, %v1949
      %v2030 = vpack.c.b16 %v1952, %v1951
      %v2031 = vpack.c.b16 %v1954, %v1953
      %v2032 = vpack.c.b16 %v1956, %v1955
      %v2033 = vpack.c.b16 %v1958, %v1957
      %v2034 = vpack.c.b16 %v1960, %v1959
      %v2035 = vpack.c.b16 %v1962, %v1961
      %v2036 = vpack.c.b16 %v1964, %v1963
      %v2037 = vpack.c.b16 %v1966, %v1965
      %v2038 = vpack.c.b16 %v1968, %v1967
      %v2039 = vpack.c.b16 %v1970, %v1969
      %v2040 = vpack.c.b16 %v1972, %v1971
      %v2041 = vpack.c.b16 %v1974, %v1973
      %v2042 = vpack.c.b16 %v1976, %v1975
      %v2043 = vpack.c.b16 %v1978, %v1977
      %v2044 = vpack.c.b16 %v1980, %v1979
      %v2045 = vpack.c.b16 %v1982, %v1981
      %v2046 = vpack.c.b16 %v1984, %v1983
      %v2047 = vpack.c.b16 %v1986, %v1985
      %v2048 = vpack.c.b16 %v1988, %v1987
      %v2049 = vpack.c.b16 %v1990, %v1989
      %v2050 = vpack.c.b16 %v1992, %v1991
      %v2051 = vpack.c.b16 %v1994, %v1993
      %v2052 = vpack.c.b16 %v1996, %v1995
      %v2053 = vpack.c.b16 %v1998, %v1997
      %v2054 = vpack.c.b16 %v2000, %v1999
      %v2055 = vpack.c.b16 %v2002, %v2001
      %v2056 = vpack.c.b16 %v2004, %v2003
      %v2057 = vpack.c.b16 %v2006, %v2005
      %v2058 = vpack.c.b16 %v2008, %v2007
      %v2059 = vpack.c.b16 %v2010, %v2009
      %v2060 = vpack.c.b16 %v2012, %v2011
      %v2061 = vpack.c.b16 %v2014, %v2013
      %v2062 = vpack.c.b16 %v2016, %v2015
      %v2063 = vpack.c.b16 %v2018, %v2017
      %v2064 = vpack.c.b16 %v2020, %v2019
      %v2065 = vpack.c.b16 %v2022, %v2021
      %v2066 = vpack.c.b16 %v2024, %v2023
      %v2067 = vpack.c.b16 %v2026, %v2025
      %v2068 = vpack.c.b16 %v2028, %v2027
      %v2070 = vunpack.c.l.b16 %v1864
      %v2071 = vpack.c.b16 %v2070, %v2070
      %vm2072 = vsmask.f32 7424
      %v2074 = vshrl.u32 %v2029, 16
      %v2076 = vshll.u32 %v2029, 16
      %v2078 = vrot.slane %v2076, 1
      %v2079 = vor.u32 %v2074, %v2078
      %v2081 = vshll.u32 %v2030, 16
      %v2083 = vrot.slane %v2081, 1
      %v2084 = vsel %vm2072, %v2079, %v2083
      %v2085 = vshrl.u32 %v2030, 16
      %v2087 = vor.u32 %v2085, %v2083
      %v2089 = vshll.u32 %v2031, 16
      %v2091 = vrot.slane %v2089, 1
      %v2092 = vsel %vm2072, %v2087, %v2091
      %v2093 = vshrl.u32 %v2031, 16
      %v2095 = vor.u32 %v2093, %v2091
      %v2097 = vshll.u32 %v2032, 16
      %v2099 = vrot.slane %v2097, 1
      %v2100 = vsel %vm2072, %v2095, %v2099
      %v2101 = vshrl.u32 %v2032, 16
      %v2103 = vor.u32 %v2101, %v2099
      %v2105 = vshll.u32 %v2033, 16
      %v2107 = vrot.slane %v2105, 1
      %v2108 = vsel %vm2072, %v2103, %v2107
      %v2109 = vshrl.u32 %v2033, 16
      %v2111 = vor.u32 %v2109, %v2107
      %v2113 = vshll.u32 %v2034, 16
      %v2115 = vrot.slane %v2113, 1
      %v2116 = vsel %vm2072, %v2111, %v2115
      %v2117 = vshrl.u32 %v2034, 16
      %v2119 = vor.u32 %v2117, %v2115
      %v2121 = vshll.u32 %v2035, 16
      %v2123 = vrot.slane %v2121, 1
      %v2124 = vsel %vm2072, %v2119, %v2123
      %v2125 = vshrl.u32 %v2035, 16
      %v2127 = vor.u32 %v2125, %v2123
      %v2129 = vshll.u32 %v2036, 16
      %v2131 = vrot.slane %v2129, 1
      %v2132 = vsel %vm2072, %v2127, %v2131
      %v2133 = vshrl.u32 %v2036, 16
      %v2135 = vor.u32 %v2133, %v2131
      %v2137 = vshll.u32 %v2037, 16
      %v2139 = vrot.slane %v2137, 1
      %v2140 = vsel %vm2072, %v2135, %v2139
      %v2141 = vshrl.u32 %v2037, 16
      %v2143 = vor.u32 %v2141, %v2139
      %v2145 = vshll.u32 %v2038, 16
      %v2147 = vrot.slane %v2145, 1
      %v2148 = vsel %vm2072, %v2143, %v2147
      %v2149 = vshrl.u32 %v2038, 16
      %v2151 = vor.u32 %v2149, %v2147
      %v2153 = vshll.u32 %v2039, 16
      %v2155 = vrot.slane %v2153, 1
      %v2156 = vsel %vm2072, %v2151, %v2155
      %v2157 = vshrl.u32 %v2039, 16
      %v2159 = vor.u32 %v2157, %v2155
      %v2161 = vshll.u32 %v2040, 16
      %v2163 = vrot.slane %v2161, 1
      %v2164 = vsel %vm2072, %v2159, %v2163
      %v2165 = vshrl.u32 %v2040, 16
      %v2167 = vor.u32 %v2165, %v2163
      %v2169 = vshll.u32 %v2041, 16
      %v2171 = vrot.slane %v2169, 1
      %v2172 = vsel %vm2072, %v2167, %v2171
      %v2173 = vshrl.u32 %v2041, 16
      %v2175 = vor.u32 %v2173, %v2171
      %v2177 = vshll.u32 %v2042, 16
      %v2179 = vrot.slane %v2177, 1
      %v2180 = vsel %vm2072, %v2175, %v2179
      %v2181 = vshrl.u32 %v2042, 16
      %v2183 = vor.u32 %v2181, %v2179
      %v2185 = vshll.u32 %v2043, 16
      %v2187 = vrot.slane %v2185, 1
      %v2188 = vsel %vm2072, %v2183, %v2187
      %v2189 = vshrl.u32 %v2043, 16
      %v2191 = vor.u32 %v2189, %v2187
      %v2193 = vshll.u32 %v2044, 16
      %v2195 = vrot.slane %v2193, 1
      %v2196 = vsel %vm2072, %v2191, %v2195
      %v2197 = vshrl.u32 %v2044, 16
      %v2199 = vor.u32 %v2197, %v2195
      %v2201 = vshll.u32 %v2045, 16
      %v2203 = vrot.slane %v2201, 1
      %v2204 = vsel %vm2072, %v2199, %v2203
      %v2205 = vshrl.u32 %v2045, 16
      %v2207 = vor.u32 %v2205, %v2203
      %v2209 = vshll.u32 %v2046, 16
      %v2211 = vrot.slane %v2209, 1
      %v2212 = vsel %vm2072, %v2207, %v2211
      %v2213 = vshrl.u32 %v2046, 16
      %v2215 = vor.u32 %v2213, %v2211
      %v2217 = vshll.u32 %v2047, 16
      %v2219 = vrot.slane %v2217, 1
      %v2220 = vsel %vm2072, %v2215, %v2219
      %v2221 = vshrl.u32 %v2047, 16
      %v2223 = vor.u32 %v2221, %v2219
      %v2225 = vshll.u32 %v2048, 16
      %v2227 = vrot.slane %v2225, 1
      %v2228 = vsel %vm2072, %v2223, %v2227
      %v2229 = vshrl.u32 %v2048, 16
      %v2231 = vor.u32 %v2229, %v2227
      %v2233 = vshll.u32 %v2049, 16
      %v2235 = vrot.slane %v2233, 1
      %v2236 = vsel %vm2072, %v2231, %v2235
      %v2237 = vshrl.u32 %v2049, 16
      %v2239 = vor.u32 %v2237, %v2235
      %v2241 = vshll.u32 %v2050, 16
      %v2243 = vrot.slane %v2241, 1
      %v2244 = vsel %vm2072, %v2239, %v2243
      %v2245 = vshrl.u32 %v2050, 16
      %v2247 = vor.u32 %v2245, %v2243
      %v2249 = vshll.u32 %v2051, 16
      %v2251 = vrot.slane %v2249, 1
      %v2252 = vsel %vm2072, %v2247, %v2251
      %v2253 = vshrl.u32 %v2051, 16
      %v2255 = vor.u32 %v2253, %v2251
      %v2257 = vshll.u32 %v2052, 16
      %v2259 = vrot.slane %v2257, 1
      %v2260 = vsel %vm2072, %v2255, %v2259
      %v2261 = vshrl.u32 %v2052, 16
      %v2263 = vor.u32 %v2261, %v2259
      %v2265 = vshll.u32 %v2053, 16
      %v2267 = vrot.slane %v2265, 1
      %v2268 = vsel %vm2072, %v2263, %v2267
      %v2269 = vshrl.u32 %v2053, 16
      %v2271 = vor.u32 %v2269, %v2267
      %v2273 = vshll.u32 %v2054, 16
      %v2275 = vrot.slane %v2273, 1
      %v2276 = vsel %vm2072, %v2271, %v2275
      %v2277 = vshrl.u32 %v2054, 16
      %v2279 = vor.u32 %v2277, %v2275
      %v2281 = vshll.u32 %v2055, 16
      %v2283 = vrot.slane %v2281, 1
      %v2284 = vsel %vm2072, %v2279, %v2283
      %v2285 = vshrl.u32 %v2055, 16
      %v2287 = vor.u32 %v2285, %v2283
      %v2289 = vshll.u32 %v2056, 16
      %v2291 = vrot.slane %v2289, 1
      %v2292 = vsel %vm2072, %v2287, %v2291
      %v2293 = vshrl.u32 %v2056, 16
      %v2295 = vor.u32 %v2293, %v2291
      %v2297 = vshll.u32 %v2057, 16
      %v2299 = vrot.slane %v2297, 1
      %v2300 = vsel %vm2072, %v2295, %v2299
      %v2301 = vshrl.u32 %v2057, 16
      %v2303 = vor.u32 %v2301, %v2299
      %v2305 = vshll.u32 %v2058, 16
      %v2307 = vrot.slane %v2305, 1
      %v2308 = vsel %vm2072, %v2303, %v2307
      %v2309 = vshrl.u32 %v2058, 16
      %v2311 = vor.u32 %v2309, %v2307
      %v2313 = vshll.u32 %v2059, 16
      %v2315 = vrot.slane %v2313, 1
      %v2316 = vsel %vm2072, %v2311, %v2315
      %v2317 = vshrl.u32 %v2059, 16
      %v2319 = vor.u32 %v2317, %v2315
      %v2321 = vshll.u32 %v2060, 16
      %v2323 = vrot.slane %v2321, 1
      %v2324 = vsel %vm2072, %v2319, %v2323
      %v2325 = vshrl.u32 %v2060, 16
      %v2327 = vor.u32 %v2325, %v2323
      %v2329 = vshll.u32 %v2061, 16
      %v2331 = vrot.slane %v2329, 1
      %v2332 = vsel %vm2072, %v2327, %v2331
      %v2333 = vshrl.u32 %v2061, 16
      %v2335 = vor.u32 %v2333, %v2331
      %v2337 = vshll.u32 %v2062, 16
      %v2339 = vrot.slane %v2337, 1
      %v2340 = vsel %vm2072, %v2335, %v2339
      %v2341 = vshrl.u32 %v2062, 16
      %v2343 = vor.u32 %v2341, %v2339
      %v2345 = vshll.u32 %v2063, 16
      %v2347 = vrot.slane %v2345, 1
      %v2348 = vsel %vm2072, %v2343, %v2347
      %v2349 = vshrl.u32 %v2063, 16
      %v2351 = vor.u32 %v2349, %v2347
      %v2353 = vshll.u32 %v2064, 16
      %v2355 = vrot.slane %v2353, 1
      %v2356 = vsel %vm2072, %v2351, %v2355
      %v2357 = vshrl.u32 %v2064, 16
      %v2359 = vor.u32 %v2357, %v2355
      %v2361 = vshll.u32 %v2065, 16
      %v2363 = vrot.slane %v2361, 1
      %v2364 = vsel %vm2072, %v2359, %v2363
      %v2365 = vshrl.u32 %v2065, 16
      %v2367 = vor.u32 %v2365, %v2363
      %v2369 = vshll.u32 %v2066, 16
      %v2371 = vrot.slane %v2369, 1
      %v2372 = vsel %vm2072, %v2367, %v2371
      %v2373 = vshrl.u32 %v2066, 16
      %v2375 = vor.u32 %v2373, %v2371
      %v2377 = vshll.u32 %v2067, 16
      %v2379 = vrot.slane %v2377, 1
      %v2380 = vsel %vm2072, %v2375, %v2379
      %v2381 = vshrl.u32 %v2067, 16
      %v2383 = vor.u32 %v2381, %v2379
      %v2385 = vshll.u32 %v2068, 16
      %v2387 = vrot.slane %v2385, 1
      %v2388 = vsel %vm2072, %v2383, %v2387
      %v2389 = vshrl.u32 %v2068, 16
      %v2391 = vor.u32 %v2389, %v2387
      %v2393 = vshll.u32 %v2071, 16
      %v2395 = vrot.slane %v2393, 1
      %v2396 = vsel %vm2072, %v2391, %v2395
      %2397 = vrot.lane.b32.xlu0 %v2084, 16
      %v2398 = vpop.permute.xlu0 %2397
      %2399 = vrot.lane.b32.xlu0 %v2092, 16
      %v2400 = vpop.permute.xlu0 %2399
      %2401 = vrot.lane.b32.xlu0 %v2100, 16
      %v2402 = vpop.permute.xlu0 %2401
      %2403 = vrot.lane.b32.xlu0 %v2108, 16
      %v2404 = vpop.permute.xlu0 %2403
      %2405 = vrot.lane.b32.xlu0 %v2116, 16
      %v2406 = vpop.permute.xlu0 %2405
      %2407 = vrot.lane.b32.xlu0 %v2124, 16
      %v2408 = vpop.permute.xlu0 %2407
      %2409 = vrot.lane.b32.xlu0 %v2132, 16
      %v2410 = vpop.permute.xlu0 %2409
      %2411 = vrot.lane.b32.xlu0 %v2140, 16
      %v2412 = vpop.permute.xlu0 %2411
      %2413 = vrot.lane.b32.xlu0 %v2148, 16
      %v2414 = vpop.permute.xlu0 %2413
      %2415 = vrot.lane.b32.xlu0 %v2156, 16
      %v2416 = vpop.permute.xlu0 %2415
      %2417 = vrot.lane.b32.xlu0 %v2164, 16
      %v2418 = vpop.permute.xlu0 %2417
      %2419 = vrot.lane.b32.xlu0 %v2172, 16
      %v2420 = vpop.permute.xlu0 %2419
      %2421 = vrot.lane.b32.xlu0 %v2180, 16
      %v2422 = vpop.permute.xlu0 %2421
      %2423 = vrot.lane.b32.xlu0 %v2188, 16
      %v2424 = vpop.permute.xlu0 %2423
      %2425 = vrot.lane.b32.xlu0 %v2196, 16
      %v2426 = vpop.permute.xlu0 %2425
      %2427 = vrot.lane.b32.xlu0 %v2204, 16
      %v2428 = vpop.permute.xlu0 %2427
      %2429 = vrot.lane.b32.xlu0 %v2212, 16
      %v2430 = vpop.permute.xlu0 %2429
      %2431 = vrot.lane.b32.xlu0 %v2220, 16
      %v2432 = vpop.permute.xlu0 %2431
      %2433 = vrot.lane.b32.xlu0 %v2228, 16
      %v2434 = vpop.permute.xlu0 %2433
      %2435 = vrot.lane.b32.xlu0 %v2236, 16
      %v2436 = vpop.permute.xlu0 %2435
      %2437 = vrot.lane.b32.xlu0 %v2244, 16
      %v2438 = vpop.permute.xlu0 %2437
      %2439 = vrot.lane.b32.xlu0 %v2252, 16
      %v2440 = vpop.permute.xlu0 %2439
      %2441 = vrot.lane.b32.xlu0 %v2260, 16
      %v2442 = vpop.permute.xlu0 %2441
      %2443 = vrot.lane.b32.xlu0 %v2268, 16
      %v2444 = vpop.permute.xlu0 %2443
      %2445 = vrot.lane.b32.xlu0 %v2276, 16
      %v2446 = vpop.permute.xlu0 %2445
      %2447 = vrot.lane.b32.xlu0 %v2284, 16
      %v2448 = vpop.permute.xlu0 %2447
      %2449 = vrot.lane.b32.xlu0 %v2292, 16
      %v2450 = vpop.permute.xlu0 %2449
      %2451 = vrot.lane.b32.xlu0 %v2300, 16
      %v2452 = vpop.permute.xlu0 %2451
      %2453 = vrot.lane.b32.xlu0 %v2308, 16
      %v2454 = vpop.permute.xlu0 %2453
      %2455 = vrot.lane.b32.xlu0 %v2316, 16
      %v2456 = vpop.permute.xlu0 %2455
      %2457 = vrot.lane.b32.xlu0 %v2324, 16
      %v2458 = vpop.permute.xlu0 %2457
      %2459 = vrot.lane.b32.xlu0 %v2332, 16
      %v2460 = vpop.permute.xlu0 %2459
      %2461 = vrot.lane.b32.xlu0 %v2340, 16
      %v2462 = vpop.permute.xlu0 %2461
      %2463 = vrot.lane.b32.xlu0 %v2348, 16
      %v2464 = vpop.permute.xlu0 %2463
      %2465 = vrot.lane.b32.xlu0 %v2356, 16
      %v2466 = vpop.permute.xlu0 %2465
      %2467 = vrot.lane.b32.xlu0 %v2364, 16
      %v2468 = vpop.permute.xlu0 %2467
      %2469 = vrot.lane.b32.xlu0 %v2372, 16
      %v2470 = vpop.permute.xlu0 %2469
      %2471 = vrot.lane.b32.xlu0 %v2380, 16
      %v2472 = vpop.permute.xlu0 %2471
      %2473 = vrot.lane.b32.xlu0 %v2388, 16
      %v2474 = vpop.permute.xlu0 %2473
      %2475 = vrot.lane.b32.xlu0 %v2396, 16
      %v2476 = vpop.permute.xlu0 %2475
      %vm2477 = vcmask 1046528
      %v2478 = vrot.slane %v2029, 1
      %v2479 = vrot.slane %v2030, 1
      %v2480 = vsel %vm2477, %v2478, %v2479
      %v2481 = vrot.slane %v2031, 1
      %v2482 = vsel %vm2477, %v2479, %v2481
      %v2483 = vrot.slane %v2032, 1
      %v2484 = vsel %vm2477, %v2481, %v2483
      %v2485 = vrot.slane %v2033, 1
      %v2486 = vsel %vm2477, %v2483, %v2485
      %v2487 = vrot.slane %v2034, 1
      %v2488 = vsel %vm2477, %v2485, %v2487
      %v2489 = vrot.slane %v2035, 1
      %v2490 = vsel %vm2477, %v2487, %v2489
      %v2491 = vrot.slane %v2036, 1
      %v2492 = vsel %vm2477, %v2489, %v2491
      %v2493 = vrot.slane %v2037, 1
      %v2494 = vsel %vm2477, %v2491, %v2493
      %v2495 = vrot.slane %v2038, 1
      %v2496 = vsel %vm2477, %v2493, %v2495
      %v2497 = vrot.slane %v2039, 1
      %v2498 = vsel %vm2477, %v2495, %v2497
      %v2499 = vrot.slane %v2040, 1
      %v2500 = vsel %vm2477, %v2497, %v2499
      %v2501 = vrot.slane %v2041, 1
      %v2502 = vsel %vm2477, %v2499, %v2501
      %v2503 = vrot.slane %v2042, 1
      %v2504 = vsel %vm2477, %v2501, %v2503
      %v2505 = vrot.slane %v2043, 1
      %v2506 = vsel %vm2477, %v2503, %v2505
      %v2507 = vrot.slane %v2044, 1
      %v2508 = vsel %vm2477, %v2505, %v2507
      %v2509 = vrot.slane %v2045, 1
      %v2510 = vsel %vm2477, %v2507, %v2509
      %v2511 = vrot.slane %v2046, 1
      %v2512 = vsel %vm2477, %v2509, %v2511
      %v2513 = vrot.slane %v2047, 1
      %v2514 = vsel %vm2477, %v2511, %v2513
      %v2515 = vrot.slane %v2048, 1
      %v2516 = vsel %vm2477, %v2513, %v2515
      %v2517 = vrot.slane %v2049, 1
      %v2518 = vsel %vm2477, %v2515, %v2517
      %v2519 = vrot.slane %v2050, 1
      %v2520 = vsel %vm2477, %v2517, %v2519
      %v2521 = vrot.slane %v2051, 1
      %v2522 = vsel %vm2477, %v2519, %v2521
      %v2523 = vrot.slane %v2052, 1
      %v2524 = vsel %vm2477, %v2521, %v2523
      %v2525 = vrot.slane %v2053, 1
      %v2526 = vsel %vm2477, %v2523, %v2525
      %v2527 = vrot.slane %v2054, 1
      %v2528 = vsel %vm2477, %v2525, %v2527
      %v2529 = vrot.slane %v2055, 1
      %v2530 = vsel %vm2477, %v2527, %v2529
      %v2531 = vrot.slane %v2056, 1
      %v2532 = vsel %vm2477, %v2529, %v2531
      %v2533 = vrot.slane %v2057, 1
      %v2534 = vsel %vm2477, %v2531, %v2533
      %v2535 = vrot.slane %v2058, 1
      %v2536 = vsel %vm2477, %v2533, %v2535
      %v2537 = vrot.slane %v2059, 1
      %v2538 = vsel %vm2477, %v2535, %v2537
      %v2539 = vrot.slane %v2060, 1
      %v2540 = vsel %vm2477, %v2537, %v2539
      %v2541 = vrot.slane %v2061, 1
      %v2542 = vsel %vm2477, %v2539, %v2541
      %v2543 = vrot.slane %v2062, 1
      %v2544 = vsel %vm2477, %v2541, %v2543
      %v2545 = vrot.slane %v2063, 1
      %v2546 = vsel %vm2477, %v2543, %v2545
      %v2547 = vrot.slane %v2064, 1
      %v2548 = vsel %vm2477, %v2545, %v2547
      %v2549 = vrot.slane %v2065, 1
      %v2550 = vsel %vm2477, %v2547, %v2549
      %v2551 = vrot.slane %v2066, 1
      %v2552 = vsel %vm2477, %v2549, %v2551
      %v2553 = vrot.slane %v2067, 1
      %v2554 = vsel %vm2477, %v2551, %v2553
      %v2555 = vrot.slane %v2068, 1
      %v2556 = vsel %vm2477, %v2553, %v2555
      %v2557 = vrot.slane %v2071, 1
      %v2558 = vsel %vm2477, %v2555, %v2557
      %2559 = vrot.lane.b32.xlu0 %v2480, 32
      %v2560 = vpop.permute.xlu0 %2559
      %2561 = vrot.lane.b32.xlu0 %v2482, 32
      %v2562 = vpop.permute.xlu0 %2561
      %2563 = vrot.lane.b32.xlu0 %v2484, 32
      %v2564 = vpop.permute.xlu0 %2563
      %2565 = vrot.lane.b32.xlu0 %v2486, 32
      %v2566 = vpop.permute.xlu0 %2565
      %2567 = vrot.lane.b32.xlu0 %v2488, 32
      %v2568 = vpop.permute.xlu0 %2567
      %2569 = vrot.lane.b32.xlu0 %v2490, 32
      %v2570 = vpop.permute.xlu0 %2569
      %2571 = vrot.lane.b32.xlu0 %v2492, 32
      %v2572 = vpop.permute.xlu0 %2571
      %2573 = vrot.lane.b32.xlu0 %v2494, 32
      %v2574 = vpop.permute.xlu0 %2573
      %2575 = vrot.lane.b32.xlu0 %v2496, 32
      %v2576 = vpop.permute.xlu0 %2575
      %2577 = vrot.lane.b32.xlu0 %v2498, 32
      %v2578 = vpop.permute.xlu0 %2577
      %2579 = vrot.lane.b32.xlu0 %v2500, 32
      %v2580 = vpop.permute.xlu0 %2579
      %2581 = vrot.lane.b32.xlu0 %v2502, 32
      %v2582 = vpop.permute.xlu0 %2581
      %2583 = vrot.lane.b32.xlu0 %v2504, 32
      %v2584 = vpop.permute.xlu0 %2583
      %2585 = vrot.lane.b32.xlu0 %v2506, 32
      %v2586 = vpop.permute.xlu0 %2585
      %2587 = vrot.lane.b32.xlu0 %v2508, 32
      %v2588 = vpop.permute.xlu0 %2587
      %2589 = vrot.lane.b32.xlu0 %v2510, 32
      %v2590 = vpop.permute.xlu0 %2589
      %2591 = vrot.lane.b32.xlu0 %v2512, 32
      %v2592 = vpop.permute.xlu0 %2591
      %2593 = vrot.lane.b32.xlu0 %v2514, 32
      %v2594 = vpop.permute.xlu0 %2593
      %2595 = vrot.lane.b32.xlu0 %v2516, 32
      %v2596 = vpop.permute.xlu0 %2595
      %2597 = vrot.lane.b32.xlu0 %v2518, 32
      %v2598 = vpop.permute.xlu0 %2597
      %2599 = vrot.lane.b32.xlu0 %v2520, 32
      %v2600 = vpop.permute.xlu0 %2599
      %2601 = vrot.lane.b32.xlu0 %v2522, 32
      %v2602 = vpop.permute.xlu0 %2601
      %2603 = vrot.lane.b32.xlu0 %v2524, 32
      %v2604 = vpop.permute.xlu0 %2603
      %2605 = vrot.lane.b32.xlu0 %v2526, 32
      %v2606 = vpop.permute.xlu0 %2605
      %2607 = vrot.lane.b32.xlu0 %v2528, 32
      %v2608 = vpop.permute.xlu0 %2607
      %2609 = vrot.lane.b32.xlu0 %v2530, 32
      %v2610 = vpop.permute.xlu0 %2609
      %2611 = vrot.lane.b32.xlu0 %v2532, 32
      %v2612 = vpop.permute.xlu0 %2611
      %2613 = vrot.lane.b32.xlu0 %v2534, 32
      %v2614 = vpop.permute.xlu0 %2613
      %2615 = vrot.lane.b32.xlu0 %v2536, 32
      %v2616 = vpop.permute.xlu0 %2615
      %2617 = vrot.lane.b32.xlu0 %v2538, 32
      %v2618 = vpop.permute.xlu0 %2617
      %2619 = vrot.lane.b32.xlu0 %v2540, 32
      %v2620 = vpop.permute.xlu0 %2619
      %2621 = vrot.lane.b32.xlu0 %v2542, 32
      %v2622 = vpop.permute.xlu0 %2621
      %2623 = vrot.lane.b32.xlu0 %v2544, 32
      %v2624 = vpop.permute.xlu0 %2623
      %2625 = vrot.lane.b32.xlu0 %v2546, 32
      %v2626 = vpop.permute.xlu0 %2625
      %2627 = vrot.lane.b32.xlu0 %v2548, 32
      %v2628 = vpop.permute.xlu0 %2627
      %2629 = vrot.lane.b32.xlu0 %v2550, 32
      %v2630 = vpop.permute.xlu0 %2629
      %2631 = vrot.lane.b32.xlu0 %v2552, 32
      %v2632 = vpop.permute.xlu0 %2631
      %2633 = vrot.lane.b32.xlu0 %v2554, 32
      %v2634 = vpop.permute.xlu0 %2633
      %2635 = vrot.lane.b32.xlu0 %v2556, 32
      %v2636 = vpop.permute.xlu0 %2635
      %2637 = vrot.lane.b32.xlu0 %v2558, 32
      %v2638 = vpop.permute.xlu0 %2637
      %v2641 = vunpack.c.l.b16 %v1865
      %v2642 = vunpack.c.l.b16 %v1866
      %v2643 = vpack.c.b16 %v2641, %v2070
      %v2644 = vpack.c.b16 %v2642, %v2642
      %v2645 = vrot.slane %v2643, 1
      %v2646 = vsel %vm2477, %v2555, %v2645
      %v2647 = vrot.slane %v2644, 1
      %v2648 = vsel %vm2477, %v2645, %v2647
      %2649 = vrot.lane.b32.xlu0 %v2482, 48
      %v2650 = vpop.permute.xlu0 %2649
      %2651 = vrot.lane.b32.xlu0 %v2484, 48
      %v2652 = vpop.permute.xlu0 %2651
      %2653 = vrot.lane.b32.xlu0 %v2486, 48
      %v2654 = vpop.permute.xlu0 %2653
      %2655 = vrot.lane.b32.xlu0 %v2488, 48
      %v2656 = vpop.permute.xlu0 %2655
      %2657 = vrot.lane.b32.xlu0 %v2490, 48
      %v2658 = vpop.permute.xlu0 %2657
      %2659 = vrot.lane.b32.xlu0 %v2492, 48
      %v2660 = vpop.permute.xlu0 %2659
      %2661 = vrot.lane.b32.xlu0 %v2494, 48
      %v2662 = vpop.permute.xlu0 %2661
      %2663 = vrot.lane.b32.xlu0 %v2496, 48
      %v2664 = vpop.permute.xlu0 %2663
      %2665 = vrot.lane.b32.xlu0 %v2498, 48
      %v2666 = vpop.permute.xlu0 %2665
      %2667 = vrot.lane.b32.xlu0 %v2500, 48
      %v2668 = vpop.permute.xlu0 %2667
      %2669 = vrot.lane.b32.xlu0 %v2502, 48
      %v2670 = vpop.permute.xlu0 %2669
      %2671 = vrot.lane.b32.xlu0 %v2504, 48
      %v2672 = vpop.permute.xlu0 %2671
      %2673 = vrot.lane.b32.xlu0 %v2506, 48
      %v2674 = vpop.permute.xlu0 %2673
      %2675 = vrot.lane.b32.xlu0 %v2508, 48
      %v2676 = vpop.permute.xlu0 %2675
      %2677 = vrot.lane.b32.xlu0 %v2510, 48
      %v2678 = vpop.permute.xlu0 %2677
      %2679 = vrot.lane.b32.xlu0 %v2512, 48
      %v2680 = vpop.permute.xlu0 %2679
      %2681 = vrot.lane.b32.xlu0 %v2514, 48
      %v2682 = vpop.permute.xlu0 %2681
      %2683 = vrot.lane.b32.xlu0 %v2516, 48
      %v2684 = vpop.permute.xlu0 %2683
      %2685 = vrot.lane.b32.xlu0 %v2518, 48
      %v2686 = vpop.permute.xlu0 %2685
      %2687 = vrot.lane.b32.xlu0 %v2520, 48
      %v2688 = vpop.permute.xlu0 %2687
      %2689 = vrot.lane.b32.xlu0 %v2522, 48
      %v2690 = vpop.permute.xlu0 %2689
      %2691 = vrot.lane.b32.xlu0 %v2524, 48
      %v2692 = vpop.permute.xlu0 %2691
      %2693 = vrot.lane.b32.xlu0 %v2526, 48
      %v2694 = vpop.permute.xlu0 %2693
      %2695 = vrot.lane.b32.xlu0 %v2528, 48
      %v2696 = vpop.permute.xlu0 %2695
      %2697 = vrot.lane.b32.xlu0 %v2530, 48
      %v2698 = vpop.permute.xlu0 %2697
      %2699 = vrot.lane.b32.xlu0 %v2532, 48
      %v2700 = vpop.permute.xlu0 %2699
      %2701 = vrot.lane.b32.xlu0 %v2534, 48
      %v2702 = vpop.permute.xlu0 %2701
      %2703 = vrot.lane.b32.xlu0 %v2536, 48
      %v2704 = vpop.permute.xlu0 %2703
      %2705 = vrot.lane.b32.xlu0 %v2538, 48
      %v2706 = vpop.permute.xlu0 %2705
      %2707 = vrot.lane.b32.xlu0 %v2540, 48
      %v2708 = vpop.permute.xlu0 %2707
      %2709 = vrot.lane.b32.xlu0 %v2542, 48
      %v2710 = vpop.permute.xlu0 %2709
      %2711 = vrot.lane.b32.xlu0 %v2544, 48
      %v2712 = vpop.permute.xlu0 %2711
      %2713 = vrot.lane.b32.xlu0 %v2546, 48
      %v2714 = vpop.permute.xlu0 %2713
      %2715 = vrot.lane.b32.xlu0 %v2548, 48
      %v2716 = vpop.permute.xlu0 %2715
      %2717 = vrot.lane.b32.xlu0 %v2550, 48
      %v2718 = vpop.permute.xlu0 %2717
      %2719 = vrot.lane.b32.xlu0 %v2552, 48
      %v2720 = vpop.permute.xlu0 %2719
      %2721 = vrot.lane.b32.xlu0 %v2554, 48
      %v2722 = vpop.permute.xlu0 %2721
      %2723 = vrot.lane.b32.xlu0 %v2556, 48
      %v2724 = vpop.permute.xlu0 %2723
      %2725 = vrot.lane.b32.xlu0 %v2646, 48
      %v2726 = vpop.permute.xlu0 %2725
      %2727 = vrot.lane.b32.xlu0 %v2648, 48
      %v2728 = vpop.permute.xlu0 %2727
      %vm2729 = vsmask.f32 6400
      %v2730 = vrot.slane %v2085, 1
      %v2731 = vrot.slane %v2081, 2
      %v2732 = vor.u32 %v2730, %v2731
      %v2733 = vrot.slane %v2093, 1
      %v2734 = vrot.slane %v2089, 2
      %v2735 = vor.u32 %v2733, %v2734
      %v2736 = vsel %vm2729, %v2732, %v2735
      %v2737 = vrot.slane %v2101, 1
      %v2738 = vrot.slane %v2097, 2
      %v2739 = vor.u32 %v2737, %v2738
      %v2740 = vsel %vm2729, %v2735, %v2739
      %v2741 = vrot.slane %v2109, 1
      %v2742 = vrot.slane %v2105, 2
      %v2743 = vor.u32 %v2741, %v2742
      %v2744 = vsel %vm2729, %v2739, %v2743
      %v2745 = vrot.slane %v2117, 1
      %v2746 = vrot.slane %v2113, 2
      %v2747 = vor.u32 %v2745, %v2746
      %v2748 = vsel %vm2729, %v2743, %v2747
      %v2749 = vrot.slane %v2125, 1
      %v2750 = vrot.slane %v2121, 2
      %v2751 = vor.u32 %v2749, %v2750
      %v2752 = vsel %vm2729, %v2747, %v2751
      %v2753 = vrot.slane %v2133, 1
      %v2754 = vrot.slane %v2129, 2
      %v2755 = vor.u32 %v2753, %v2754
      %v2756 = vsel %vm2729, %v2751, %v2755
      %v2757 = vrot.slane %v2141, 1
      %v2758 = vrot.slane %v2137, 2
      %v2759 = vor.u32 %v2757, %v2758
      %v2760 = vsel %vm2729, %v2755, %v2759
      %v2761 = vrot.slane %v2149, 1
      %v2762 = vrot.slane %v2145, 2
      %v2763 = vor.u32 %v2761, %v2762
      %v2764 = vsel %vm2729, %v2759, %v2763
      %v2765 = vrot.slane %v2157, 1
      %v2766 = vrot.slane %v2153, 2
      %v2767 = vor.u32 %v2765, %v2766
      %v2768 = vsel %vm2729, %v2763, %v2767
      %v2769 = vrot.slane %v2165, 1
      %v2770 = vrot.slane %v2161, 2
      %v2771 = vor.u32 %v2769, %v2770
      %v2772 = vsel %vm2729, %v2767, %v2771
      %v2773 = vrot.slane %v2173, 1
      %v2774 = vrot.slane %v2169, 2
      %v2775 = vor.u32 %v2773, %v2774
      %v2776 = vsel %vm2729, %v2771, %v2775
      %v2777 = vrot.slane %v2181, 1
      %v2778 = vrot.slane %v2177, 2
      %v2779 = vor.u32 %v2777, %v2778
      %v2780 = vsel %vm2729, %v2775, %v2779
      %v2781 = vrot.slane %v2189, 1
      %v2782 = vrot.slane %v2185, 2
      %v2783 = vor.u32 %v2781, %v2782
      %v2784 = vsel %vm2729, %v2779, %v2783
      %v2785 = vrot.slane %v2197, 1
      %v2786 = vrot.slane %v2193, 2
      %v2787 = vor.u32 %v2785, %v2786
      %v2788 = vsel %vm2729, %v2783, %v2787
      %v2789 = vrot.slane %v2205, 1
      %v2790 = vrot.slane %v2201, 2
      %v2791 = vor.u32 %v2789, %v2790
      %v2792 = vsel %vm2729, %v2787, %v2791
      %v2793 = vrot.slane %v2213, 1
      %v2794 = vrot.slane %v2209, 2
      %v2795 = vor.u32 %v2793, %v2794
      %v2796 = vsel %vm2729, %v2791, %v2795
      %v2797 = vrot.slane %v2221, 1
      %v2798 = vrot.slane %v2217, 2
      %v2799 = vor.u32 %v2797, %v2798
      %v2800 = vsel %vm2729, %v2795, %v2799
      %v2801 = vrot.slane %v2229, 1
      %v2802 = vrot.slane %v2225, 2
      %v2803 = vor.u32 %v2801, %v2802
      %v2804 = vsel %vm2729, %v2799, %v2803
      %v2805 = vrot.slane %v2237, 1
      %v2806 = vrot.slane %v2233, 2
      %v2807 = vor.u32 %v2805, %v2806
      %v2808 = vsel %vm2729, %v2803, %v2807
      %v2809 = vrot.slane %v2245, 1
      %v2810 = vrot.slane %v2241, 2
      %v2811 = vor.u32 %v2809, %v2810
      %v2812 = vsel %vm2729, %v2807, %v2811
      %v2813 = vrot.slane %v2253, 1
      %v2814 = vrot.slane %v2249, 2
      %v2815 = vor.u32 %v2813, %v2814
      %v2816 = vsel %vm2729, %v2811, %v2815
      %v2817 = vrot.slane %v2261, 1
      %v2818 = vrot.slane %v2257, 2
      %v2819 = vor.u32 %v2817, %v2818
      %v2820 = vsel %vm2729, %v2815, %v2819
      %v2821 = vrot.slane %v2269, 1
      %v2822 = vrot.slane %v2265, 2
      %v2823 = vor.u32 %v2821, %v2822
      %v2824 = vsel %vm2729, %v2819, %v2823
      %v2825 = vrot.slane %v2277, 1
      %v2826 = vrot.slane %v2273, 2
      %v2827 = vor.u32 %v2825, %v2826
      %v2828 = vsel %vm2729, %v2823, %v2827
      %v2829 = vrot.slane %v2285, 1
      %v2830 = vrot.slane %v2281, 2
      %v2831 = vor.u32 %v2829, %v2830
      %v2832 = vsel %vm2729, %v2827, %v2831
      %v2833 = vrot.slane %v2293, 1
      %v2834 = vrot.slane %v2289, 2
      %v2835 = vor.u32 %v2833, %v2834
      %v2836 = vsel %vm2729, %v2831, %v2835
      %v2837 = vrot.slane %v2301, 1
      %v2838 = vrot.slane %v2297, 2
      %v2839 = vor.u32 %v2837, %v2838
      %v2840 = vsel %vm2729, %v2835, %v2839
      %v2841 = vrot.slane %v2309, 1
      %v2842 = vrot.slane %v2305, 2
      %v2843 = vor.u32 %v2841, %v2842
      %v2844 = vsel %vm2729, %v2839, %v2843
      %v2845 = vrot.slane %v2317, 1
      %v2846 = vrot.slane %v2313, 2
      %v2847 = vor.u32 %v2845, %v2846
      %v2848 = vsel %vm2729, %v2843, %v2847
      %v2849 = vrot.slane %v2325, 1
      %v2850 = vrot.slane %v2321, 2
      %v2851 = vor.u32 %v2849, %v2850
      %v2852 = vsel %vm2729, %v2847, %v2851
      %v2853 = vrot.slane %v2333, 1
      %v2854 = vrot.slane %v2329, 2
      %v2855 = vor.u32 %v2853, %v2854
      %v2856 = vsel %vm2729, %v2851, %v2855
      %v2857 = vrot.slane %v2341, 1
      %v2858 = vrot.slane %v2337, 2
      %v2859 = vor.u32 %v2857, %v2858
      %v2860 = vsel %vm2729, %v2855, %v2859
      %v2861 = vrot.slane %v2349, 1
      %v2862 = vrot.slane %v2345, 2
      %v2863 = vor.u32 %v2861, %v2862
      %v2864 = vsel %vm2729, %v2859, %v2863
      %v2865 = vrot.slane %v2357, 1
      %v2866 = vrot.slane %v2353, 2
      %v2867 = vor.u32 %v2865, %v2866
      %v2868 = vsel %vm2729, %v2863, %v2867
      %v2869 = vrot.slane %v2365, 1
      %v2870 = vrot.slane %v2361, 2
      %v2871 = vor.u32 %v2869, %v2870
      %v2872 = vsel %vm2729, %v2867, %v2871
      %v2873 = vrot.slane %v2373, 1
      %v2874 = vrot.slane %v2369, 2
      %v2875 = vor.u32 %v2873, %v2874
      %v2876 = vsel %vm2729, %v2871, %v2875
      %v2877 = vrot.slane %v2381, 1
      %v2878 = vrot.slane %v2377, 2
      %v2879 = vor.u32 %v2877, %v2878
      %v2880 = vsel %vm2729, %v2875, %v2879
      %v2881 = vrot.slane %v2389, 1
      %v2882 = vrot.slane %v2385, 2
      %v2883 = vor.u32 %v2881, %v2882
      %v2884 = vsel %vm2729, %v2879, %v2883
      %v2886 = vshrl.u32 %v2643, 16
      %v2888 = vrot.slane %v2886, 1
      %v2889 = vshll.u32 %v2643, 16
      %v2891 = vrot.slane %v2889, 2
      %v2892 = vor.u32 %v2888, %v2891
      %v2893 = vsel %vm2729, %v2883, %v2892
      %v2895 = vshrl.u32 %v2644, 16
      %v2897 = vrot.slane %v2895, 1
      %v2898 = vshll.u32 %v2644, 16
      %v2900 = vrot.slane %v2898, 2
      %v2901 = vor.u32 %v2897, %v2900
      %v2902 = vsel %vm2729, %v2892, %v2901
      %2903 = vrot.lane.b32.xlu0 %v2736, 64
      %v2904 = vpop.permute.xlu0 %2903
      %2905 = vrot.lane.b32.xlu0 %v2740, 64
      %v2906 = vpop.permute.xlu0 %2905
      %2907 = vrot.lane.b32.xlu0 %v2744, 64
      %v2908 = vpop.permute.xlu0 %2907
      %2909 = vrot.lane.b32.xlu0 %v2748, 64
      %v2910 = vpop.permute.xlu0 %2909
      %2911 = vrot.lane.b32.xlu0 %v2752, 64
      %v2912 = vpop.permute.xlu0 %2911
      %2913 = vrot.lane.b32.xlu0 %v2756, 64
      %v2914 = vpop.permute.xlu0 %2913
      %2915 = vrot.lane.b32.xlu0 %v2760, 64
      %v2916 = vpop.permute.xlu0 %2915
      %2917 = vrot.lane.b32.xlu0 %v2764, 64
      %v2918 = vpop.permute.xlu0 %2917
      %2919 = vrot.lane.b32.xlu0 %v2768, 64
      %v2920 = vpop.permute.xlu0 %2919
      %2921 = vrot.lane.b32.xlu0 %v2772, 64
      %v2922 = vpop.permute.xlu0 %2921
      %2923 = vrot.lane.b32.xlu0 %v2776, 64
      %v2924 = vpop.permute.xlu0 %2923
      %2925 = vrot.lane.b32.xlu0 %v2780, 64
      %v2926 = vpop.permute.xlu0 %2925
      %2927 = vrot.lane.b32.xlu0 %v2784, 64
      %v2928 = vpop.permute.xlu0 %2927
      %2929 = vrot.lane.b32.xlu0 %v2788, 64
      %v2930 = vpop.permute.xlu0 %2929
      %2931 = vrot.lane.b32.xlu0 %v2792, 64
      %v2932 = vpop.permute.xlu0 %2931
      %2933 = vrot.lane.b32.xlu0 %v2796, 64
      %v2934 = vpop.permute.xlu0 %2933
      %2935 = vrot.lane.b32.xlu0 %v2800, 64
      %v2936 = vpop.permute.xlu0 %2935
      %2937 = vrot.lane.b32.xlu0 %v2804, 64
      %v2938 = vpop.permute.xlu0 %2937
      %2939 = vrot.lane.b32.xlu0 %v2808, 64
      %v2940 = vpop.permute.xlu0 %2939
      %2941 = vrot.lane.b32.xlu0 %v2812, 64
      %v2942 = vpop.permute.xlu0 %2941
      %2943 = vrot.lane.b32.xlu0 %v2816, 64
      %v2944 = vpop.permute.xlu0 %2943
      %2945 = vrot.lane.b32.xlu0 %v2820, 64
      %v2946 = vpop.permute.xlu0 %2945
      %2947 = vrot.lane.b32.xlu0 %v2824, 64
      %v2948 = vpop.permute.xlu0 %2947
      %2949 = vrot.lane.b32.xlu0 %v2828, 64
      %v2950 = vpop.permute.xlu0 %2949
      %2951 = vrot.lane.b32.xlu0 %v2832, 64
      %v2952 = vpop.permute.xlu0 %2951
      %2953 = vrot.lane.b32.xlu0 %v2836, 64
      %v2954 = vpop.permute.xlu0 %2953
      %2955 = vrot.lane.b32.xlu0 %v2840, 64
      %v2956 = vpop.permute.xlu0 %2955
      %2957 = vrot.lane.b32.xlu0 %v2844, 64
      %v2958 = vpop.permute.xlu0 %2957
      %2959 = vrot.lane.b32.xlu0 %v2848, 64
      %v2960 = vpop.permute.xlu0 %2959
      %2961 = vrot.lane.b32.xlu0 %v2852, 64
      %v2962 = vpop.permute.xlu0 %2961
      %2963 = vrot.lane.b32.xlu0 %v2856, 64
      %v2964 = vpop.permute.xlu0 %2963
      %2965 = vrot.lane.b32.xlu0 %v2860, 64
      %v2966 = vpop.permute.xlu0 %2965
      %2967 = vrot.lane.b32.xlu0 %v2864, 64
      %v2968 = vpop.permute.xlu0 %2967
      %2969 = vrot.lane.b32.xlu0 %v2868, 64
      %v2970 = vpop.permute.xlu0 %2969
      %2971 = vrot.lane.b32.xlu0 %v2872, 64
      %v2972 = vpop.permute.xlu0 %2971
      %2973 = vrot.lane.b32.xlu0 %v2876, 64
      %v2974 = vpop.permute.xlu0 %2973
      %2975 = vrot.lane.b32.xlu0 %v2880, 64
      %v2976 = vpop.permute.xlu0 %2975
      %2977 = vrot.lane.b32.xlu0 %v2884, 64
      %v2978 = vpop.permute.xlu0 %2977
      %2979 = vrot.lane.b32.xlu0 %v2893, 64
      %v2980 = vpop.permute.xlu0 %2979
      %2981 = vrot.lane.b32.xlu0 %v2902, 64
      %v2982 = vpop.permute.xlu0 %2981
      %vm2983 = vcmask 1045504
      %v2984 = vrot.slane %v2030, 2
      %v2985 = vrot.slane %v2031, 2
      %v2986 = vsel %vm2983, %v2984, %v2985
      %v2987 = vrot.slane %v2032, 2
      %v2988 = vsel %vm2983, %v2985, %v2987
      %v2989 = vrot.slane %v2033, 2
      %v2990 = vsel %vm2983, %v2987, %v2989
      %v2991 = vrot.slane %v2034, 2
      %v2992 = vsel %vm2983, %v2989, %v2991
      %v2993 = vrot.slane %v2035, 2
      %v2994 = vsel %vm2983, %v2991, %v2993
      %v2995 = vrot.slane %v2036, 2
      %v2996 = vsel %vm2983, %v2993, %v2995
      %v2997 = vrot.slane %v2037, 2
      %v2998 = vsel %vm2983, %v2995, %v2997
      %v2999 = vrot.slane %v2038, 2
      %v3000 = vsel %vm2983, %v2997, %v2999
      %v3001 = vrot.slane %v2039, 2
      %v3002 = vsel %vm2983, %v2999, %v3001
      %v3003 = vrot.slane %v2040, 2
      %v3004 = vsel %vm2983, %v3001, %v3003
      %v3005 = vrot.slane %v2041, 2
      %v3006 = vsel %vm2983, %v3003, %v3005
      %v3007 = vrot.slane %v2042, 2
      %v3008 = vsel %vm2983, %v3005, %v3007
      %v3009 = vrot.slane %v2043, 2
      %v3010 = vsel %vm2983, %v3007, %v3009
      %v3011 = vrot.slane %v2044, 2
      %v3012 = vsel %vm2983, %v3009, %v3011
      %v3013 = vrot.slane %v2045, 2
      %v3014 = vsel %vm2983, %v3011, %v3013
      %v3015 = vrot.slane %v2046, 2
      %v3016 = vsel %vm2983, %v3013, %v3015
      %v3017 = vrot.slane %v2047, 2
      %v3018 = vsel %vm2983, %v3015, %v3017
      %v3019 = vrot.slane %v2048, 2
      %v3020 = vsel %vm2983, %v3017, %v3019
      %v3021 = vrot.slane %v2049, 2
      %v3022 = vsel %vm2983, %v3019, %v3021
      %v3023 = vrot.slane %v2050, 2
      %v3024 = vsel %vm2983, %v3021, %v3023
      %v3025 = vrot.slane %v2051, 2
      %v3026 = vsel %vm2983, %v3023, %v3025
      %v3027 = vrot.slane %v2052, 2
      %v3028 = vsel %vm2983, %v3025, %v3027
      %v3029 = vrot.slane %v2053, 2
      %v3030 = vsel %vm2983, %v3027, %v3029
      %v3031 = vrot.slane %v2054, 2
      %v3032 = vsel %vm2983, %v3029, %v3031
      %v3033 = vrot.slane %v2055, 2
      %v3034 = vsel %vm2983, %v3031, %v3033
      %v3035 = vrot.slane %v2056, 2
      %v3036 = vsel %vm2983, %v3033, %v3035
      %v3037 = vrot.slane %v2057, 2
      %v3038 = vsel %vm2983, %v3035, %v3037
      %v3039 = vrot.slane %v2058, 2
      %v3040 = vsel %vm2983, %v3037, %v3039
      %v3041 = vrot.slane %v2059, 2
      %v3042 = vsel %vm2983, %v3039, %v3041
      %v3043 = vrot.slane %v2060, 2
      %v3044 = vsel %vm2983, %v3041, %v3043
      %v3045 = vrot.slane %v2061, 2
      %v3046 = vsel %vm2983, %v3043, %v3045
      %v3047 = vrot.slane %v2062, 2
      %v3048 = vsel %vm2983, %v3045, %v3047
      %v3049 = vrot.slane %v2063, 2
      %v3050 = vsel %vm2983, %v3047, %v3049
      %v3051 = vrot.slane %v2064, 2
      %v3052 = vsel %vm2983, %v3049, %v3051
      %v3053 = vrot.slane %v2065, 2
      %v3054 = vsel %vm2983, %v3051, %v3053
      %v3055 = vrot.slane %v2066, 2
      %v3056 = vsel %vm2983, %v3053, %v3055
      %v3057 = vrot.slane %v2067, 2
      %v3058 = vsel %vm2983, %v3055, %v3057
      %v3059 = vrot.slane %v2068, 2
      %v3060 = vsel %vm2983, %v3057, %v3059
      %v3061 = vrot.slane %v2643, 2
      %v3062 = vsel %vm2983, %v3059, %v3061
      %v3063 = vrot.slane %v2644, 2
      %v3064 = vsel %vm2983, %v3061, %v3063
      %3065 = vrot.lane.b32.xlu0 %v2986, 80
      %v3066 = vpop.permute.xlu0 %3065
      %3067 = vrot.lane.b32.xlu0 %v2988, 80
      %v3068 = vpop.permute.xlu0 %3067
      %3069 = vrot.lane.b32.xlu0 %v2990, 80
      %v3070 = vpop.permute.xlu0 %3069
      %3071 = vrot.lane.b32.xlu0 %v2992, 80
      %v3072 = vpop.permute.xlu0 %3071
      %3073 = vrot.lane.b32.xlu0 %v2994, 80
      %v3074 = vpop.permute.xlu0 %3073
      %3075 = vrot.lane.b32.xlu0 %v2996, 80
      %v3076 = vpop.permute.xlu0 %3075
      %3077 = vrot.lane.b32.xlu0 %v2998, 80
      %v3078 = vpop.permute.xlu0 %3077
      %3079 = vrot.lane.b32.xlu0 %v3000, 80
      %v3080 = vpop.permute.xlu0 %3079
      %3081 = vrot.lane.b32.xlu0 %v3002, 80
      %v3082 = vpop.permute.xlu0 %3081
      %3083 = vrot.lane.b32.xlu0 %v3004, 80
      %v3084 = vpop.permute.xlu0 %3083
      %3085 = vrot.lane.b32.xlu0 %v3006, 80
      %v3086 = vpop.permute.xlu0 %3085
      %3087 = vrot.lane.b32.xlu0 %v3008, 80
      %v3088 = vpop.permute.xlu0 %3087
      %3089 = vrot.lane.b32.xlu0 %v3010, 80
      %v3090 = vpop.permute.xlu0 %3089
      %3091 = vrot.lane.b32.xlu0 %v3012, 80
      %v3092 = vpop.permute.xlu0 %3091
      %3093 = vrot.lane.b32.xlu0 %v3014, 80
      %v3094 = vpop.permute.xlu0 %3093
      %3095 = vrot.lane.b32.xlu0 %v3016, 80
      %v3096 = vpop.permute.xlu0 %3095
      %3097 = vrot.lane.b32.xlu0 %v3018, 80
      %v3098 = vpop.permute.xlu0 %3097
      %3099 = vrot.lane.b32.xlu0 %v3020, 80
      %v3100 = vpop.permute.xlu0 %3099
      %3101 = vrot.lane.b32.xlu0 %v3022, 80
      %v3102 = vpop.permute.xlu0 %3101
      %3103 = vrot.lane.b32.xlu0 %v3024, 80
      %v3104 = vpop.permute.xlu0 %3103
      %3105 = vrot.lane.b32.xlu0 %v3026, 80
      %v3106 = vpop.permute.xlu0 %3105
      %3107 = vrot.lane.b32.xlu0 %v3028, 80
      %v3108 = vpop.permute.xlu0 %3107
      %3109 = vrot.lane.b32.xlu0 %v3030, 80
      %v3110 = vpop.permute.xlu0 %3109
      %3111 = vrot.lane.b32.xlu0 %v3032, 80
      %v3112 = vpop.permute.xlu0 %3111
      %3113 = vrot.lane.b32.xlu0 %v3034, 80
      %v3114 = vpop.permute.xlu0 %3113
      %3115 = vrot.lane.b32.xlu0 %v3036, 80
      %v3116 = vpop.permute.xlu0 %3115
      %3117 = vrot.lane.b32.xlu0 %v3038, 80
      %v3118 = vpop.permute.xlu0 %3117
      %3119 = vrot.lane.b32.xlu0 %v3040, 80
      %v3120 = vpop.permute.xlu0 %3119
      %3121 = vrot.lane.b32.xlu0 %v3042, 80
      %v3122 = vpop.permute.xlu0 %3121
      %3123 = vrot.lane.b32.xlu0 %v3044, 80
      %v3124 = vpop.permute.xlu0 %3123
      %3125 = vrot.lane.b32.xlu0 %v3046, 80
      %v3126 = vpop.permute.xlu0 %3125
      %3127 = vrot.lane.b32.xlu0 %v3048, 80
      %v3128 = vpop.permute.xlu0 %3127
      %3129 = vrot.lane.b32.xlu0 %v3050, 80
      %v3130 = vpop.permute.xlu0 %3129
      %3131 = vrot.lane.b32.xlu0 %v3052, 80
      %v3132 = vpop.permute.xlu0 %3131
      %3133 = vrot.lane.b32.xlu0 %v3054, 80
      %v3134 = vpop.permute.xlu0 %3133
      %3135 = vrot.lane.b32.xlu0 %v3056, 80
      %v3136 = vpop.permute.xlu0 %3135
      %3137 = vrot.lane.b32.xlu0 %v3058, 80
      %v3138 = vpop.permute.xlu0 %3137
      %3139 = vrot.lane.b32.xlu0 %v3060, 80
      %v3140 = vpop.permute.xlu0 %3139
      %3141 = vrot.lane.b32.xlu0 %v3062, 80
      %v3142 = vpop.permute.xlu0 %3141
      %3143 = vrot.lane.b32.xlu0 %v3064, 80
      %v3144 = vpop.permute.xlu0 %3143
      %v3147 = vunpack.c.l.b16 %v1867
      %v3148 = vunpack.c.l.b16 %v1868
      %v3149 = vpack.c.b16 %v3147, %v2642
      %v3150 = vpack.c.b16 %v3148, %v3148
      %v3151 = vrot.slane %v3149, 2
      %v3152 = vsel %vm2983, %v3061, %v3151
      %v3153 = vrot.slane %v3150, 2
      %v3154 = vsel %vm2983, %v3151, %v3153
      %3155 = vrot.lane.b32.xlu0 %v2988, 96
      %v3156 = vpop.permute.xlu0 %3155
      %3157 = vrot.lane.b32.xlu0 %v2990, 96
      %v3158 = vpop.permute.xlu0 %3157
      %3159 = vrot.lane.b32.xlu0 %v2992, 96
      %v3160 = vpop.permute.xlu0 %3159
      %3161 = vrot.lane.b32.xlu0 %v2994, 96
      %v3162 = vpop.permute.xlu0 %3161
      %3163 = vrot.lane.b32.xlu0 %v2996, 96
      %v3164 = vpop.permute.xlu0 %3163
      %3165 = vrot.lane.b32.xlu0 %v2998, 96
      %v3166 = vpop.permute.xlu0 %3165
      %3167 = vrot.lane.b32.xlu0 %v3000, 96
      %v3168 = vpop.permute.xlu0 %3167
      %3169 = vrot.lane.b32.xlu0 %v3002, 96
      %v3170 = vpop.permute.xlu0 %3169
      %3171 = vrot.lane.b32.xlu0 %v3004, 96
      %v3172 = vpop.permute.xlu0 %3171
      %3173 = vrot.lane.b32.xlu0 %v3006, 96
      %v3174 = vpop.permute.xlu0 %3173
      %3175 = vrot.lane.b32.xlu0 %v3008, 96
      %v3176 = vpop.permute.xlu0 %3175
      %3177 = vrot.lane.b32.xlu0 %v3010, 96
      %v3178 = vpop.permute.xlu0 %3177
      %3179 = vrot.lane.b32.xlu0 %v3012, 96
      %v3180 = vpop.permute.xlu0 %3179
      %3181 = vrot.lane.b32.xlu0 %v3014, 96
      %v3182 = vpop.permute.xlu0 %3181
      %3183 = vrot.lane.b32.xlu0 %v3016, 96
      %v3184 = vpop.permute.xlu0 %3183
      %3185 = vrot.lane.b32.xlu0 %v3018, 96
      %v3186 = vpop.permute.xlu0 %3185
      %3187 = vrot.lane.b32.xlu0 %v3020, 96
      %v3188 = vpop.permute.xlu0 %3187
      %3189 = vrot.lane.b32.xlu0 %v3022, 96
      %v3190 = vpop.permute.xlu0 %3189
      %3191 = vrot.lane.b32.xlu0 %v3024, 96
      %v3192 = vpop.permute.xlu0 %3191
      %3193 = vrot.lane.b32.xlu0 %v3026, 96
      %v3194 = vpop.permute.xlu0 %3193
      %3195 = vrot.lane.b32.xlu0 %v3028, 96
      %v3196 = vpop.permute.xlu0 %3195
      %3197 = vrot.lane.b32.xlu0 %v3030, 96
      %v3198 = vpop.permute.xlu0 %3197
      %3199 = vrot.lane.b32.xlu0 %v3032, 96
      %v3200 = vpop.permute.xlu0 %3199
      %3201 = vrot.lane.b32.xlu0 %v3034, 96
      %v3202 = vpop.permute.xlu0 %3201
      %3203 = vrot.lane.b32.xlu0 %v3036, 96
      %v3204 = vpop.permute.xlu0 %3203
      %3205 = vrot.lane.b32.xlu0 %v3038, 96
      %v3206 = vpop.permute.xlu0 %3205
      %3207 = vrot.lane.b32.xlu0 %v3040, 96
      %v3208 = vpop.permute.xlu0 %3207
      %3209 = vrot.lane.b32.xlu0 %v3042, 96
      %v3210 = vpop.permute.xlu0 %3209
      %3211 = vrot.lane.b32.xlu0 %v3044, 96
      %v3212 = vpop.permute.xlu0 %3211
      %3213 = vrot.lane.b32.xlu0 %v3046, 96
      %v3214 = vpop.permute.xlu0 %3213
      %3215 = vrot.lane.b32.xlu0 %v3048, 96
      %v3216 = vpop.permute.xlu0 %3215
      %3217 = vrot.lane.b32.xlu0 %v3050, 96
      %v3218 = vpop.permute.xlu0 %3217
      %3219 = vrot.lane.b32.xlu0 %v3052, 96
      %v3220 = vpop.permute.xlu0 %3219
      %3221 = vrot.lane.b32.xlu0 %v3054, 96
      %v3222 = vpop.permute.xlu0 %3221
      %3223 = vrot.lane.b32.xlu0 %v3056, 96
      %v3224 = vpop.permute.xlu0 %3223
      %3225 = vrot.lane.b32.xlu0 %v3058, 96
      %v3226 = vpop.permute.xlu0 %3225
      %3227 = vrot.lane.b32.xlu0 %v3060, 96
      %v3228 = vpop.permute.xlu0 %3227
      %3229 = vrot.lane.b32.xlu0 %v3062, 96
      %v3230 = vpop.permute.xlu0 %3229
      %3231 = vrot.lane.b32.xlu0 %v3152, 96
      %v3232 = vpop.permute.xlu0 %3231
      %3233 = vrot.lane.b32.xlu0 %v3154, 96
      %v3234 = vpop.permute.xlu0 %3233
      %vm3235 = vsmask.f32 5376
      %v3236 = vrot.slane %v2093, 2
      %v3237 = vrot.slane %v2089, 3
      %v3238 = vor.u32 %v3236, %v3237
      %v3239 = vrot.slane %v2101, 2
      %v3240 = vrot.slane %v2097, 3
      %v3241 = vor.u32 %v3239, %v3240
      %v3242 = vsel %vm3235, %v3238, %v3241
      %v3243 = vrot.slane %v2109, 2
      %v3244 = vrot.slane %v2105, 3
      %v3245 = vor.u32 %v3243, %v3244
      %v3246 = vsel %vm3235, %v3241, %v3245
      %v3247 = vrot.slane %v2117, 2
      %v3248 = vrot.slane %v2113, 3
      %v3249 = vor.u32 %v3247, %v3248
      %v3250 = vsel %vm3235, %v3245, %v3249
      %v3251 = vrot.slane %v2125, 2
      %v3252 = vrot.slane %v2121, 3
      %v3253 = vor.u32 %v3251, %v3252
      %v3254 = vsel %vm3235, %v3249, %v3253
      %v3255 = vrot.slane %v2133, 2
      %v3256 = vrot.slane %v2129, 3
      %v3257 = vor.u32 %v3255, %v3256
      %v3258 = vsel %vm3235, %v3253, %v3257
      %v3259 = vrot.slane %v2141, 2
      %v3260 = vrot.slane %v2137, 3
      %v3261 = vor.u32 %v3259, %v3260
      %v3262 = vsel %vm3235, %v3257, %v3261
      %v3263 = vrot.slane %v2149, 2
      %v3264 = vrot.slane %v2145, 3
      %v3265 = vor.u32 %v3263, %v3264
      %v3266 = vsel %vm3235, %v3261, %v3265
      %v3267 = vrot.slane %v2157, 2
      %v3268 = vrot.slane %v2153, 3
      %v3269 = vor.u32 %v3267, %v3268
      %v3270 = vsel %vm3235, %v3265, %v3269
      %v3271 = vrot.slane %v2165, 2
      %v3272 = vrot.slane %v2161, 3
      %v3273 = vor.u32 %v3271, %v3272
      %v3274 = vsel %vm3235, %v3269, %v3273
      %v3275 = vrot.slane %v2173, 2
      %v3276 = vrot.slane %v2169, 3
      %v3277 = vor.u32 %v3275, %v3276
      %v3278 = vsel %vm3235, %v3273, %v3277
      %v3279 = vrot.slane %v2181, 2
      %v3280 = vrot.slane %v2177, 3
      %v3281 = vor.u32 %v3279, %v3280
      %v3282 = vsel %vm3235, %v3277, %v3281
      %v3283 = vrot.slane %v2189, 2
      %v3284 = vrot.slane %v2185, 3
      %v3285 = vor.u32 %v3283, %v3284
      %v3286 = vsel %vm3235, %v3281, %v3285
      %v3287 = vrot.slane %v2197, 2
      %v3288 = vrot.slane %v2193, 3
      %v3289 = vor.u32 %v3287, %v3288
      %v3290 = vsel %vm3235, %v3285, %v3289
      %v3291 = vrot.slane %v2205, 2
      %v3292 = vrot.slane %v2201, 3
      %v3293 = vor.u32 %v3291, %v3292
      %v3294 = vsel %vm3235, %v3289, %v3293
      %v3295 = vrot.slane %v2213, 2
      %v3296 = vrot.slane %v2209, 3
      %v3297 = vor.u32 %v3295, %v3296
      %v3298 = vsel %vm3235, %v3293, %v3297
      %v3299 = vrot.slane %v2221, 2
      %v3300 = vrot.slane %v2217, 3
      %v3301 = vor.u32 %v3299, %v3300
      %v3302 = vsel %vm3235, %v3297, %v3301
      %v3303 = vrot.slane %v2229, 2
      %v3304 = vrot.slane %v2225, 3
      %v3305 = vor.u32 %v3303, %v3304
      %v3306 = vsel %vm3235, %v3301, %v3305
      %v3307 = vrot.slane %v2237, 2
      %v3308 = vrot.slane %v2233, 3
      %v3309 = vor.u32 %v3307, %v3308
      %v3310 = vsel %vm3235, %v3305, %v3309
      %v3311 = vrot.slane %v2245, 2
      %v3312 = vrot.slane %v2241, 3
      %v3313 = vor.u32 %v3311, %v3312
      %v3314 = vsel %vm3235, %v3309, %v3313
      %v3315 = vrot.slane %v2253, 2
      %v3316 = vrot.slane %v2249, 3
      %v3317 = vor.u32 %v3315, %v3316
      %v3318 = vsel %vm3235, %v3313, %v3317
      %v3319 = vrot.slane %v2261, 2
      %v3320 = vrot.slane %v2257, 3
      %v3321 = vor.u32 %v3319, %v3320
      %v3322 = vsel %vm3235, %v3317, %v3321
      %v3323 = vrot.slane %v2269, 2
      %v3324 = vrot.slane %v2265, 3
      %v3325 = vor.u32 %v3323, %v3324
      %v3326 = vsel %vm3235, %v3321, %v3325
      %v3327 = vrot.slane %v2277, 2
      %v3328 = vrot.slane %v2273, 3
      %v3329 = vor.u32 %v3327, %v3328
      %v3330 = vsel %vm3235, %v3325, %v3329
      %v3331 = vrot.slane %v2285, 2
      %v3332 = vrot.slane %v2281, 3
      %v3333 = vor.u32 %v3331, %v3332
      %v3334 = vsel %vm3235, %v3329, %v3333
      %v3335 = vrot.slane %v2293, 2
      %v3336 = vrot.slane %v2289, 3
      %v3337 = vor.u32 %v3335, %v3336
      %v3338 = vsel %vm3235, %v3333, %v3337
      %v3339 = vrot.slane %v2301, 2
      %v3340 = vrot.slane %v2297, 3
      %v3341 = vor.u32 %v3339, %v3340
      %v3342 = vsel %vm3235, %v3337, %v3341
      %v3343 = vrot.slane %v2309, 2
      %v3344 = vrot.slane %v2305, 3
      %v3345 = vor.u32 %v3343, %v3344
      %v3346 = vsel %vm3235, %v3341, %v3345
      %v3347 = vrot.slane %v2317, 2
      %v3348 = vrot.slane %v2313, 3
      %v3349 = vor.u32 %v3347, %v3348
      %v3350 = vsel %vm3235, %v3345, %v3349
      %v3351 = vrot.slane %v2325, 2
      %v3352 = vrot.slane %v2321, 3
      %v3353 = vor.u32 %v3351, %v3352
      %v3354 = vsel %vm3235, %v3349, %v3353
      %v3355 = vrot.slane %v2333, 2
      %v3356 = vrot.slane %v2329, 3
      %v3357 = vor.u32 %v3355, %v3356
      %v3358 = vsel %vm3235, %v3353, %v3357
      %v3359 = vrot.slane %v2341, 2
      %v3360 = vrot.slane %v2337, 3
      %v3361 = vor.u32 %v3359, %v3360
      %v3362 = vsel %vm3235, %v3357, %v3361
      %v3363 = vrot.slane %v2349, 2
      %v3364 = vrot.slane %v2345, 3
      %v3365 = vor.u32 %v3363, %v3364
      %v3366 = vsel %vm3235, %v3361, %v3365
      %v3367 = vrot.slane %v2357, 2
      %v3368 = vrot.slane %v2353, 3
      %v3369 = vor.u32 %v3367, %v3368
      %v3370 = vsel %vm3235, %v3365, %v3369
      %v3371 = vrot.slane %v2365, 2
      %v3372 = vrot.slane %v2361, 3
      %v3373 = vor.u32 %v3371, %v3372
      %v3374 = vsel %vm3235, %v3369, %v3373
      %v3375 = vrot.slane %v2373, 2
      %v3376 = vrot.slane %v2369, 3
      %v3377 = vor.u32 %v3375, %v3376
      %v3378 = vsel %vm3235, %v3373, %v3377
      %v3379 = vrot.slane %v2381, 2
      %v3380 = vrot.slane %v2377, 3
      %v3381 = vor.u32 %v3379, %v3380
      %v3382 = vsel %vm3235, %v3377, %v3381
      %v3383 = vrot.slane %v2389, 2
      %v3384 = vrot.slane %v2385, 3
      %v3385 = vor.u32 %v3383, %v3384
      %v3386 = vsel %vm3235, %v3381, %v3385
      %v3387 = vrot.slane %v2886, 2
      %v3388 = vrot.slane %v2889, 3
      %v3389 = vor.u32 %v3387, %v3388
      %v3390 = vsel %vm3235, %v3385, %v3389
      %v3392 = vshrl.u32 %v3149, 16
      %v3394 = vrot.slane %v3392, 2
      %v3395 = vshll.u32 %v3149, 16
      %v3397 = vrot.slane %v3395, 3
      %v3398 = vor.u32 %v3394, %v3397
      %v3399 = vsel %vm3235, %v3389, %v3398
      %v3401 = vshrl.u32 %v3150, 16
      %v3403 = vrot.slane %v3401, 2
      %v3404 = vshll.u32 %v3150, 16
      %v3406 = vrot.slane %v3404, 3
      %v3407 = vor.u32 %v3403, %v3406
      %v3408 = vsel %vm3235, %v3398, %v3407
      %3409 = vrot.lane.b32.xlu0 %v3242, 112
      %v3410 = vpop.permute.xlu0 %3409
      %3411 = vrot.lane.b32.xlu0 %v3246, 112
      %v3412 = vpop.permute.xlu0 %3411
      %3413 = vrot.lane.b32.xlu0 %v3250, 112
      %v3414 = vpop.permute.xlu0 %3413
      %3415 = vrot.lane.b32.xlu0 %v3254, 112
      %v3416 = vpop.permute.xlu0 %3415
      %3417 = vrot.lane.b32.xlu0 %v3258, 112
      %v3418 = vpop.permute.xlu0 %3417
      %3419 = vrot.lane.b32.xlu0 %v3262, 112
      %v3420 = vpop.permute.xlu0 %3419
      %3421 = vrot.lane.b32.xlu0 %v3266, 112
      %v3422 = vpop.permute.xlu0 %3421
      %3423 = vrot.lane.b32.xlu0 %v3270, 112
      %v3424 = vpop.permute.xlu0 %3423
      %3425 = vrot.lane.b32.xlu0 %v3274, 112
      %v3426 = vpop.permute.xlu0 %3425
      %3427 = vrot.lane.b32.xlu0 %v3278, 112
      %v3428 = vpop.permute.xlu0 %3427
      %3429 = vrot.lane.b32.xlu0 %v3282, 112
      %v3430 = vpop.permute.xlu0 %3429
      %3431 = vrot.lane.b32.xlu0 %v3286, 112
      %v3432 = vpop.permute.xlu0 %3431
      %3433 = vrot.lane.b32.xlu0 %v3290, 112
      %v3434 = vpop.permute.xlu0 %3433
      %3435 = vrot.lane.b32.xlu0 %v3294, 112
      %v3436 = vpop.permute.xlu0 %3435
      %3437 = vrot.lane.b32.xlu0 %v3298, 112
      %v3438 = vpop.permute.xlu0 %3437
      %3439 = vrot.lane.b32.xlu0 %v3302, 112
      %v3440 = vpop.permute.xlu0 %3439
      %3441 = vrot.lane.b32.xlu0 %v3306, 112
      %v3442 = vpop.permute.xlu0 %3441
      %3443 = vrot.lane.b32.xlu0 %v3310, 112
      %v3444 = vpop.permute.xlu0 %3443
      %3445 = vrot.lane.b32.xlu0 %v3314, 112
      %v3446 = vpop.permute.xlu0 %3445
      %3447 = vrot.lane.b32.xlu0 %v3318, 112
      %v3448 = vpop.permute.xlu0 %3447
      %3449 = vrot.lane.b32.xlu0 %v3322, 112
      %v3450 = vpop.permute.xlu0 %3449
      %3451 = vrot.lane.b32.xlu0 %v3326, 112
      %v3452 = vpop.permute.xlu0 %3451
      %3453 = vrot.lane.b32.xlu0 %v3330, 112
      %v3454 = vpop.permute.xlu0 %3453
      %3455 = vrot.lane.b32.xlu0 %v3334, 112
      %v3456 = vpop.permute.xlu0 %3455
      %3457 = vrot.lane.b32.xlu0 %v3338, 112
      %v3458 = vpop.permute.xlu0 %3457
      %3459 = vrot.lane.b32.xlu0 %v3342, 112
      %v3460 = vpop.permute.xlu0 %3459
      %3461 = vrot.lane.b32.xlu0 %v3346, 112
      %v3462 = vpop.permute.xlu0 %3461
      %3463 = vrot.lane.b32.xlu0 %v3350, 112
      %v3464 = vpop.permute.xlu0 %3463
      %3465 = vrot.lane.b32.xlu0 %v3354, 112
      %v3466 = vpop.permute.xlu0 %3465
      %3467 = vrot.lane.b32.xlu0 %v3358, 112
      %v3468 = vpop.permute.xlu0 %3467
      %3469 = vrot.lane.b32.xlu0 %v3362, 112
      %v3470 = vpop.permute.xlu0 %3469
      %3471 = vrot.lane.b32.xlu0 %v3366, 112
      %v3472 = vpop.permute.xlu0 %3471
      %3473 = vrot.lane.b32.xlu0 %v3370, 112
      %v3474 = vpop.permute.xlu0 %3473
      %3475 = vrot.lane.b32.xlu0 %v3374, 112
      %v3476 = vpop.permute.xlu0 %3475
      %3477 = vrot.lane.b32.xlu0 %v3378, 112
      %v3478 = vpop.permute.xlu0 %3477
      %3479 = vrot.lane.b32.xlu0 %v3382, 112
      %v3480 = vpop.permute.xlu0 %3479
      %3481 = vrot.lane.b32.xlu0 %v3386, 112
      %v3482 = vpop.permute.xlu0 %3481
      %3483 = vrot.lane.b32.xlu0 %v3390, 112
      %v3484 = vpop.permute.xlu0 %3483
      %3485 = vrot.lane.b32.xlu0 %v3399, 112
      %v3486 = vpop.permute.xlu0 %3485
      %3487 = vrot.lane.b32.xlu0 %v3408, 112
      %v3488 = vpop.permute.xlu0 %3487
      %vm3489 = vcmask 1044480
      %v3490 = vrot.slane %v2031, 3
      %v3491 = vrot.slane %v2032, 3
      %v3492 = vsel %vm3489, %v3490, %v3491
      %v3493 = vrot.slane %v2033, 3
      %v3494 = vsel %vm3489, %v3491, %v3493
      %v3495 = vrot.slane %v2034, 3
      %v3496 = vsel %vm3489, %v3493, %v3495
      %v3497 = vrot.slane %v2035, 3
      %v3498 = vsel %vm3489, %v3495, %v3497
      %v3499 = vrot.slane %v2036, 3
      %v3500 = vsel %vm3489, %v3497, %v3499
      %v3501 = vrot.slane %v2037, 3
      %v3502 = vsel %vm3489, %v3499, %v3501
      %v3503 = vrot.slane %v2038, 3
      %v3504 = vsel %vm3489, %v3501, %v3503
      %v3505 = vrot.slane %v2039, 3
      %v3506 = vsel %vm3489, %v3503, %v3505
      %v3507 = vrot.slane %v2040, 3
      %v3508 = vsel %vm3489, %v3505, %v3507
      %v3509 = vrot.slane %v2041, 3
      %v3510 = vsel %vm3489, %v3507, %v3509
      %v3511 = vrot.slane %v2042, 3
      %v3512 = vsel %vm3489, %v3509, %v3511
      %v3513 = vrot.slane %v2043, 3
      %v3514 = vsel %vm3489, %v3511, %v3513
      %v3515 = vrot.slane %v2044, 3
      %v3516 = vsel %vm3489, %v3513, %v3515
      %v3517 = vrot.slane %v2045, 3
      %v3518 = vsel %vm3489, %v3515, %v3517
      %v3519 = vrot.slane %v2046, 3
      %v3520 = vsel %vm3489, %v3517, %v3519
      %v3521 = vrot.slane %v2047, 3
      %v3522 = vsel %vm3489, %v3519, %v3521
      %v3523 = vrot.slane %v2048, 3
      %v3524 = vsel %vm3489, %v3521, %v3523
      %v3525 = vrot.slane %v2049, 3
      %v3526 = vsel %vm3489, %v3523, %v3525
      %v3527 = vrot.slane %v2050, 3
      %v3528 = vsel %vm3489, %v3525, %v3527
      %v3529 = vrot.slane %v2051, 3
      %v3530 = vsel %vm3489, %v3527, %v3529
      %v3531 = vrot.slane %v2052, 3
      %v3532 = vsel %vm3489, %v3529, %v3531
      %v3533 = vrot.slane %v2053, 3
      %v3534 = vsel %vm3489, %v3531, %v3533
      %v3535 = vrot.slane %v2054, 3
      %v3536 = vsel %vm3489, %v3533, %v3535
      %v3537 = vrot.slane %v2055, 3
      %v3538 = vsel %vm3489, %v3535, %v3537
      %v3539 = vrot.slane %v2056, 3
      %v3540 = vsel %vm3489, %v3537, %v3539
      %v3541 = vrot.slane %v2057, 3
      %v3542 = vsel %vm3489, %v3539, %v3541
      %v3543 = vrot.slane %v2058, 3
      %v3544 = vsel %vm3489, %v3541, %v3543
      %v3545 = vrot.slane %v2059, 3
      %v3546 = vsel %vm3489, %v3543, %v3545
      %v3547 = vrot.slane %v2060, 3
      %v3548 = vsel %vm3489, %v3545, %v3547
      %v3549 = vrot.slane %v2061, 3
      %v3550 = vsel %vm3489, %v3547, %v3549
      %v3551 = vrot.slane %v2062, 3
      %v3552 = vsel %vm3489, %v3549, %v3551
      %v3553 = vrot.slane %v2063, 3
      %v3554 = vsel %vm3489, %v3551, %v3553
      %v3555 = vrot.slane %v2064, 3
      %v3556 = vsel %vm3489, %v3553, %v3555
      %v3557 = vrot.slane %v2065, 3
      %v3558 = vsel %vm3489, %v3555, %v3557
      %v3559 = vrot.slane %v2066, 3
      %v3560 = vsel %vm3489, %v3557, %v3559
      %v3561 = vrot.slane %v2067, 3
      %v3562 = vsel %vm3489, %v3559, %v3561
      %v3563 = vrot.slane %v2068, 3
      %v3564 = vsel %vm3489, %v3561, %v3563
      %v3565 = vrot.slane %v2643, 3
      %v3566 = vsel %vm3489, %v3563, %v3565
      %v3567 = vrot.slane %v3149, 3
      %v3568 = vsel %vm3489, %v3565, %v3567
      %v3569 = vrot.slane %v3150, 3
      %v3570 = vsel %vm3489, %v3567, %v3569
      %vm3571 = vcmask 130048
      %v3573 = vsel %vm3571, %v2029, %v2398
      %v3575 = vsel %vm3571, %v2030, %v2400
      %v3577 = vsel %vm3571, %v2031, %v2402
      %v3579 = vsel %vm3571, %v2032, %v2404
      %v3581 = vsel %vm3571, %v2033, %v2406
      %v3583 = vsel %vm3571, %v2034, %v2408
      %v3585 = vsel %vm3571, %v2035, %v2410
      %v3587 = vsel %vm3571, %v2036, %v2412
      %v3589 = vsel %vm3571, %v2037, %v2414
      %v3591 = vsel %vm3571, %v2038, %v2416
      %v3593 = vsel %vm3571, %v2039, %v2418
      %v3595 = vsel %vm3571, %v2040, %v2420
      %v3597 = vsel %vm3571, %v2041, %v2422
      %v3599 = vsel %vm3571, %v2042, %v2424
      %v3601 = vsel %vm3571, %v2043, %v2426
      %v3603 = vsel %vm3571, %v2044, %v2428
      %v3605 = vsel %vm3571, %v2045, %v2430
      %v3607 = vsel %vm3571, %v2046, %v2432
      %v3609 = vsel %vm3571, %v2047, %v2434
      %v3611 = vsel %vm3571, %v2048, %v2436
      %v3613 = vsel %vm3571, %v2049, %v2438
      %v3615 = vsel %vm3571, %v2050, %v2440
      %v3617 = vsel %vm3571, %v2051, %v2442
      %v3619 = vsel %vm3571, %v2052, %v2444
      %v3621 = vsel %vm3571, %v2053, %v2446
      %v3623 = vsel %vm3571, %v2054, %v2448
      %v3625 = vsel %vm3571, %v2055, %v2450
      %v3627 = vsel %vm3571, %v2056, %v2452
      %v3629 = vsel %vm3571, %v2057, %v2454
      %v3631 = vsel %vm3571, %v2058, %v2456
      %v3633 = vsel %vm3571, %v2059, %v2458
      %v3635 = vsel %vm3571, %v2060, %v2460
      %v3637 = vsel %vm3571, %v2061, %v2462
      %v3639 = vsel %vm3571, %v2062, %v2464
      %v3641 = vsel %vm3571, %v2063, %v2466
      %v3643 = vsel %vm3571, %v2064, %v2468
      %v3645 = vsel %vm3571, %v2065, %v2470
      %v3647 = vsel %vm3571, %v2066, %v2472
      %v3649 = vsel %vm3571, %v2067, %v2474
      %v3651 = vsel %vm3571, %v2068, %v2476
      %vm3652 = vcmask 261120
      %v3654 = vsel %vm3652, %v3573, %v2560
      %v3656 = vsel %vm3652, %v3575, %v2562
      %v3658 = vsel %vm3652, %v3577, %v2564
      %v3660 = vsel %vm3652, %v3579, %v2566
      %v3662 = vsel %vm3652, %v3581, %v2568
      %v3664 = vsel %vm3652, %v3583, %v2570
      %v3666 = vsel %vm3652, %v3585, %v2572
      %v3668 = vsel %vm3652, %v3587, %v2574
      %v3670 = vsel %vm3652, %v3589, %v2576
      %v3672 = vsel %vm3652, %v3591, %v2578
      %v3674 = vsel %vm3652, %v3593, %v2580
      %v3676 = vsel %vm3652, %v3595, %v2582
      %v3678 = vsel %vm3652, %v3597, %v2584
      %v3680 = vsel %vm3652, %v3599, %v2586
      %v3682 = vsel %vm3652, %v3601, %v2588
      %v3684 = vsel %vm3652, %v3603, %v2590
      %v3686 = vsel %vm3652, %v3605, %v2592
      %v3688 = vsel %vm3652, %v3607, %v2594
      %v3690 = vsel %vm3652, %v3609, %v2596
      %v3692 = vsel %vm3652, %v3611, %v2598
      %v3694 = vsel %vm3652, %v3613, %v2600
      %v3696 = vsel %vm3652, %v3615, %v2602
      %v3698 = vsel %vm3652, %v3617, %v2604
      %v3700 = vsel %vm3652, %v3619, %v2606
      %v3702 = vsel %vm3652, %v3621, %v2608
      %v3704 = vsel %vm3652, %v3623, %v2610
      %v3706 = vsel %vm3652, %v3625, %v2612
      %v3708 = vsel %vm3652, %v3627, %v2614
      %v3710 = vsel %vm3652, %v3629, %v2616
      %v3712 = vsel %vm3652, %v3631, %v2618
      %v3714 = vsel %vm3652, %v3633, %v2620
      %v3716 = vsel %vm3652, %v3635, %v2622
      %v3718 = vsel %vm3652, %v3637, %v2624
      %v3720 = vsel %vm3652, %v3639, %v2626
      %v3722 = vsel %vm3652, %v3641, %v2628
      %v3724 = vsel %vm3652, %v3643, %v2630
      %v3726 = vsel %vm3652, %v3645, %v2632
      %v3728 = vsel %vm3652, %v3647, %v2634
      %v3730 = vsel %vm3652, %v3649, %v2636
      %v3732 = vsel %vm3652, %v3651, %v2638
      %vm3733 = vcmask 392192
      %v3735 = vsel %vm3733, %v3654, %v2650
      %v3737 = vsel %vm3733, %v3656, %v2652
      %v3739 = vsel %vm3733, %v3658, %v2654
      %v3741 = vsel %vm3733, %v3660, %v2656
      %v3743 = vsel %vm3733, %v3662, %v2658
      %v3745 = vsel %vm3733, %v3664, %v2660
      %v3747 = vsel %vm3733, %v3666, %v2662
      %v3749 = vsel %vm3733, %v3668, %v2664
      %v3751 = vsel %vm3733, %v3670, %v2666
      %v3753 = vsel %vm3733, %v3672, %v2668
      %v3755 = vsel %vm3733, %v3674, %v2670
      %v3757 = vsel %vm3733, %v3676, %v2672
      %v3759 = vsel %vm3733, %v3678, %v2674
      %v3761 = vsel %vm3733, %v3680, %v2676
      %v3763 = vsel %vm3733, %v3682, %v2678
      %v3765 = vsel %vm3733, %v3684, %v2680
      %v3767 = vsel %vm3733, %v3686, %v2682
      %v3769 = vsel %vm3733, %v3688, %v2684
      %v3771 = vsel %vm3733, %v3690, %v2686
      %v3773 = vsel %vm3733, %v3692, %v2688
      %v3775 = vsel %vm3733, %v3694, %v2690
      %v3777 = vsel %vm3733, %v3696, %v2692
      %v3779 = vsel %vm3733, %v3698, %v2694
      %v3781 = vsel %vm3733, %v3700, %v2696
      %v3783 = vsel %vm3733, %v3702, %v2698
      %v3785 = vsel %vm3733, %v3704, %v2700
      %v3787 = vsel %vm3733, %v3706, %v2702
      %v3789 = vsel %vm3733, %v3708, %v2704
      %v3791 = vsel %vm3733, %v3710, %v2706
      %v3793 = vsel %vm3733, %v3712, %v2708
      %v3795 = vsel %vm3733, %v3714, %v2710
      %v3797 = vsel %vm3733, %v3716, %v2712
      %v3799 = vsel %vm3733, %v3718, %v2714
      %v3801 = vsel %vm3733, %v3720, %v2716
      %v3803 = vsel %vm3733, %v3722, %v2718
      %v3805 = vsel %vm3733, %v3724, %v2720
      %v3807 = vsel %vm3733, %v3726, %v2722
      %v3809 = vsel %vm3733, %v3728, %v2724
      %v3811 = vsel %vm3733, %v3730, %v2726
      %v3813 = vsel %vm3733, %v3732, %v2728
      %vm3814 = vcmask 523264
      %v3816 = vsel %vm3814, %v3735, %v2904
      %v3818 = vsel %vm3814, %v3737, %v2906
      %v3820 = vsel %vm3814, %v3739, %v2908
      %v3822 = vsel %vm3814, %v3741, %v2910
      %v3824 = vsel %vm3814, %v3743, %v2912
      %v3826 = vsel %vm3814, %v3745, %v2914
      %v3828 = vsel %vm3814, %v3747, %v2916
      %v3830 = vsel %vm3814, %v3749, %v2918
      %v3832 = vsel %vm3814, %v3751, %v2920
      %v3834 = vsel %vm3814, %v3753, %v2922
      %v3836 = vsel %vm3814, %v3755, %v2924
      %v3838 = vsel %vm3814, %v3757, %v2926
      %v3840 = vsel %vm3814, %v3759, %v2928
      %v3842 = vsel %vm3814, %v3761, %v2930
      %v3844 = vsel %vm3814, %v3763, %v2932
      %v3846 = vsel %vm3814, %v3765, %v2934
      %v3848 = vsel %vm3814, %v3767, %v2936
      %v3850 = vsel %vm3814, %v3769, %v2938
      %v3852 = vsel %vm3814, %v3771, %v2940
      %v3854 = vsel %vm3814, %v3773, %v2942
      %v3856 = vsel %vm3814, %v3775, %v2944
      %v3858 = vsel %vm3814, %v3777, %v2946
      %v3860 = vsel %vm3814, %v3779, %v2948
      %v3862 = vsel %vm3814, %v3781, %v2950
      %v3864 = vsel %vm3814, %v3783, %v2952
      %v3866 = vsel %vm3814, %v3785, %v2954
      %v3868 = vsel %vm3814, %v3787, %v2956
      %v3870 = vsel %vm3814, %v3789, %v2958
      %v3872 = vsel %vm3814, %v3791, %v2960
      %v3874 = vsel %vm3814, %v3793, %v2962
      %v3876 = vsel %vm3814, %v3795, %v2964
      %v3878 = vsel %vm3814, %v3797, %v2966
      %v3880 = vsel %vm3814, %v3799, %v2968
      %v3882 = vsel %vm3814, %v3801, %v2970
      %v3884 = vsel %vm3814, %v3803, %v2972
      %v3886 = vsel %vm3814, %v3805, %v2974
      %v3888 = vsel %vm3814, %v3807, %v2976
      %v3890 = vsel %vm3814, %v3809, %v2978
      %v3892 = vsel %vm3814, %v3811, %v2980
      %v3894 = vsel %vm3814, %v3813, %v2982
      %vm3895 = vcmask 654336
      %v3897 = vsel %vm3895, %v3816, %v3066
      %v3899 = vsel %vm3895, %v3818, %v3068
      %v3901 = vsel %vm3895, %v3820, %v3070
      %v3903 = vsel %vm3895, %v3822, %v3072
      %v3905 = vsel %vm3895, %v3824, %v3074
      %v3907 = vsel %vm3895, %v3826, %v3076
      %v3909 = vsel %vm3895, %v3828, %v3078
      %v3911 = vsel %vm3895, %v3830, %v3080
      %v3913 = vsel %vm3895, %v3832, %v3082
      %v3915 = vsel %vm3895, %v3834, %v3084
      %v3917 = vsel %vm3895, %v3836, %v3086
      %v3919 = vsel %vm3895, %v3838, %v3088
      %v3921 = vsel %vm3895, %v3840, %v3090
      %v3923 = vsel %vm3895, %v3842, %v3092
      %v3925 = vsel %vm3895, %v3844, %v3094
      %v3927 = vsel %vm3895, %v3846, %v3096
      %v3929 = vsel %vm3895, %v3848, %v3098
      %v3931 = vsel %vm3895, %v3850, %v3100
      %v3933 = vsel %vm3895, %v3852, %v3102
      %v3935 = vsel %vm3895, %v3854, %v3104
      %v3937 = vsel %vm3895, %v3856, %v3106
      %v3939 = vsel %vm3895, %v3858, %v3108
      %v3941 = vsel %vm3895, %v3860, %v3110
      %v3943 = vsel %vm3895, %v3862, %v3112
      %v3945 = vsel %vm3895, %v3864, %v3114
      %v3947 = vsel %vm3895, %v3866, %v3116
      %v3949 = vsel %vm3895, %v3868, %v3118
      %v3951 = vsel %vm3895, %v3870, %v3120
      %v3953 = vsel %vm3895, %v3872, %v3122
      %v3955 = vsel %vm3895, %v3874, %v3124
      %v3957 = vsel %vm3895, %v3876, %v3126
      %v3959 = vsel %vm3895, %v3878, %v3128
      %v3961 = vsel %vm3895, %v3880, %v3130
      %v3963 = vsel %vm3895, %v3882, %v3132
      %v3965 = vsel %vm3895, %v3884, %v3134
      %v3967 = vsel %vm3895, %v3886, %v3136
      %v3969 = vsel %vm3895, %v3888, %v3138
      %v3971 = vsel %vm3895, %v3890, %v3140
      %v3973 = vsel %vm3895, %v3892, %v3142
      %v3975 = vsel %vm3895, %v3894, %v3144
      %vm3976 = vcmask 785408
      %v3978 = vsel %vm3976, %v3897, %v3156
      %v3980 = vsel %vm3976, %v3899, %v3158
      %v3982 = vsel %vm3976, %v3901, %v3160
      %v3984 = vsel %vm3976, %v3903, %v3162
      %v3986 = vsel %vm3976, %v3905, %v3164
      %v3988 = vsel %vm3976, %v3907, %v3166
      %v3990 = vsel %vm3976, %v3909, %v3168
      %v3992 = vsel %vm3976, %v3911, %v3170
      %v3994 = vsel %vm3976, %v3913, %v3172
      %v3996 = vsel %vm3976, %v3915, %v3174
      %v3998 = vsel %vm3976, %v3917, %v3176
      %v4000 = vsel %vm3976, %v3919, %v3178
      %v4002 = vsel %vm3976, %v3921, %v3180
      %v4004 = vsel %vm3976, %v3923, %v3182
      %v4006 = vsel %vm3976, %v3925, %v3184
      %v4008 = vsel %vm3976, %v3927, %v3186
      %v4010 = vsel %vm3976, %v3929, %v3188
      %v4012 = vsel %vm3976, %v3931, %v3190
      %v4014 = vsel %vm3976, %v3933, %v3192
      %v4016 = vsel %vm3976, %v3935, %v3194
      %v4018 = vsel %vm3976, %v3937, %v3196
      %v4020 = vsel %vm3976, %v3939, %v3198
      %v4022 = vsel %vm3976, %v3941, %v3200
      %v4024 = vsel %vm3976, %v3943, %v3202
      %v4026 = vsel %vm3976, %v3945, %v3204
      %v4028 = vsel %vm3976, %v3947, %v3206
      %v4030 = vsel %vm3976, %v3949, %v3208
      %v4032 = vsel %vm3976, %v3951, %v3210
      %v4034 = vsel %vm3976, %v3953, %v3212
      %v4036 = vsel %vm3976, %v3955, %v3214
      %v4038 = vsel %vm3976, %v3957, %v3216
      %v4040 = vsel %vm3976, %v3959, %v3218
      %v4042 = vsel %vm3976, %v3961, %v3220
      %v4044 = vsel %vm3976, %v3963, %v3222
      %v4046 = vsel %vm3976, %v3965, %v3224
      %v4048 = vsel %vm3976, %v3967, %v3226
      %v4050 = vsel %vm3976, %v3969, %v3228
      %v4052 = vsel %vm3976, %v3971, %v3230
      %v4054 = vsel %vm3976, %v3973, %v3232
      %v4056 = vsel %vm3976, %v3975, %v3234
      %vm4057 = vcmask 916480
      %v4059 = vsel %vm4057, %v3978, %v3410
      %v4062 = vsel %vm4057, %v3980, %v3412
      %v4065 = vsel %vm4057, %v3982, %v3414
      %v4068 = vsel %vm4057, %v3984, %v3416
      %v4071 = vsel %vm4057, %v3986, %v3418
      %v4074 = vsel %vm4057, %v3988, %v3420
      %v4077 = vsel %vm4057, %v3990, %v3422
      %v4080 = vsel %vm4057, %v3992, %v3424
      %v4083 = vsel %vm4057, %v3994, %v3426
      %v4086 = vsel %vm4057, %v3996, %v3428
      %v4089 = vsel %vm4057, %v3998, %v3430
      %v4092 = vsel %vm4057, %v4000, %v3432
      %v4095 = vsel %vm4057, %v4002, %v3434
      %v4098 = vsel %vm4057, %v4004, %v3436
      %v4101 = vsel %vm4057, %v4006, %v3438
      %v4104 = vsel %vm4057, %v4008, %v3440
      %v4107 = vsel %vm4057, %v4010, %v3442
      %v4110 = vsel %vm4057, %v4012, %v3444
      %v4113 = vsel %vm4057, %v4014, %v3446
      %v4116 = vsel %vm4057, %v4016, %v3448
      %v4119 = vsel %vm4057, %v4018, %v3450
      %v4122 = vsel %vm4057, %v4020, %v3452
      %v4125 = vsel %vm4057, %v4022, %v3454
      %v4128 = vsel %vm4057, %v4024, %v3456
      %v4131 = vsel %vm4057, %v4026, %v3458
      %v4134 = vsel %vm4057, %v4028, %v3460
      %v4137 = vsel %vm4057, %v4030, %v3462
      %v4140 = vsel %vm4057, %v4032, %v3464
      %v4143 = vsel %vm4057, %v4034, %v3466
      %v4146 = vsel %vm4057, %v4036, %v3468
      %v4149 = vsel %vm4057, %v4038, %v3470
      %v4152 = vsel %vm4057, %v4040, %v3472
      %v4155 = vsel %vm4057, %v4042, %v3474
      %v4158 = vsel %vm4057, %v4044, %v3476
      %v4161 = vsel %vm4057, %v4046, %v3478
      %v4164 = vsel %vm4057, %v4048, %v3480
      %v4167 = vsel %vm4057, %v4050, %v3482
      %v4170 = vsel %vm4057, %v4052, %v3484
      %v4173 = vsel %vm4057, %v4054, %v3486
      %v4176 = vsel %vm4057, %v4056, %v3488
      %v4178 = vld [vmem:[%s6] sm:$0xf]
      %v4179 = vld [vmem:[%s6 + $0x4] sm:$0xf]
      %v4180 = vld [vmem:[%s6 + $0x8] sm:$0xf]
      %v4181 = vld [vmem:[%s6 + $0xc] sm:$0xf]
      %v4182 = vld [vmem:[%s6 + $0x10] sm:$0xf]
      %v4183 = vld [vmem:[%s6 + $0x14] sm:$0xf]
      %v4184 = vld [vmem:[%s6 + $0x18] sm:$0xf]
      %v4185 = vld [vmem:[%s6 + $0x1c] sm:$0xf]
      %v4186 = vld [vmem:[%s6 + $0x20] sm:$0xf]
      %v4187 = vld [vmem:[%s6 + $0x24] sm:$0xf]
      %v4188 = vld [vmem:[%s6 + $0x28] sm:$0xf]
      %v4189 = vld [vmem:[%s6 + $0x2c] sm:$0xf]
      %v4190 = vld [vmem:[%s6 + $0x30] sm:$0xf]
      %v4191 = vld [vmem:[%s6 + $0x34] sm:$0xf]
      %v4192 = vld [vmem:[%s6 + $0x38] sm:$0xf]
      %v4193 = vld [vmem:[%s6 + $0x3c] sm:$0xf]
      %v4194 = vld [vmem:[%s6 + $0x40] sm:$0xf]
      %v4195 = vld [vmem:[%s6 + $0x44] sm:$0xf]
      %v4196 = vld [vmem:[%s7] sm:$0x1]
      %v4198 = vperm.slane %v4196, 0
      %v4218 = vunpack.c.l.b16 %v4178
      %v4219 = vunpack.c.l.b16 %v4179
      %v4220 = vunpack.c.l.b16 %v4180
      %v4221 = vunpack.c.l.b16 %v4181
      %v4222 = vunpack.c.l.b16 %v4182
      %v4223 = vunpack.c.l.b16 %v4183
      %v4224 = vunpack.c.l.b16 %v4184
      %v4225 = vunpack.c.l.b16 %v4185
      %v4226 = vunpack.c.l.b16 %v4186
      %v4227 = vunpack.c.l.b16 %v4187
      %v4228 = vunpack.c.l.b16 %v4188
      %v4229 = vunpack.c.l.b16 %v4189
      %v4230 = vunpack.c.l.b16 %v4190
      %v4231 = vunpack.c.l.b16 %v4191
      %v4232 = vunpack.c.l.b16 %v4192
      %v4233 = vunpack.c.l.b16 %v4193
      %v4234 = vunpack.c.l.b16 %v4194
      %v4235 = vunpack.c.l.b16 %v4195
      %v4236 = vpack.c.b16 %v4219, %v4218
      %v4237 = vpack.c.b16 %v4221, %v4220
      %v4238 = vpack.c.b16 %v4223, %v4222
      %v4239 = vpack.c.b16 %v4225, %v4224
      %v4240 = vpack.c.b16 %v4227, %v4226
      %v4241 = vpack.c.b16 %v4229, %v4228
      %v4242 = vpack.c.b16 %v4231, %v4230
      %v4243 = vpack.c.b16 %v4233, %v4232
      %v4244 = vpack.c.b16 %v4235, %v4234
      %v4255 = vsel %vm3571, %v3492, 0
      %v4258 = vsel %vm3571, %v3494, 0
      %v4261 = vsel %vm3571, %v3496, 0
      %v4264 = vsel %vm3571, %v3498, 0
      %v4267 = vsel %vm3571, %v3500, 0
      %v4270 = vsel %vm3571, %v3502, 0
      %v4273 = vsel %vm3571, %v3504, 0
      %v4276 = vsel %vm3571, %v3506, 0
      %v4279 = vsel %vm3571, %v3508, 0
      %v4282 = vsel %vm3571, %v3510, 0
      %v4285 = vsel %vm3571, %v3512, 0
      %v4288 = vsel %vm3571, %v3514, 0
      %v4291 = vsel %vm3571, %v3516, 0
      %v4294 = vsel %vm3571, %v3518, 0
      %v4297 = vsel %vm3571, %v3520, 0
      %v4300 = vsel %vm3571, %v3522, 0
      %v4303 = vsel %vm3571, %v3524, 0
      %v4306 = vsel %vm3571, %v3526, 0
      %v4309 = vsel %vm3571, %v3528, 0
      %v4312 = vsel %vm3571, %v3530, 0
      %v4315 = vsel %vm3571, %v3532, 0
      %v4318 = vsel %vm3571, %v3534, 0
      %v4321 = vsel %vm3571, %v3536, 0
      %v4324 = vsel %vm3571, %v3538, 0
      %v4327 = vsel %vm3571, %v3540, 0
      %v4330 = vsel %vm3571, %v3542, 0
      %v4333 = vsel %vm3571, %v3544, 0
      %v4336 = vsel %vm3571, %v3546, 0
      %v4339 = vsel %vm3571, %v3548, 0
      %v4342 = vsel %vm3571, %v3550, 0
      %v4345 = vsel %vm3571, %v3552, 0
      %v4348 = vsel %vm3571, %v3554, 0
      %v4351 = vsel %vm3571, %v3556, 0
      %v4354 = vsel %vm3571, %v3558, 0
      %v4357 = vsel %vm3571, %v3560, 0
      %v4360 = vsel %vm3571, %v3562, 0
      %v4363 = vsel %vm3571, %v3564, 0
      %v4366 = vsel %vm3571, %v3566, 0
      %v4369 = vsel %vm3571, %v3568, 0
      %v4372 = vsel %vm3571, %v3570, 0
      %4374 = vmatpush.bf16.msra.mxu0 %v4243
      %4375 = vmatpush.bf16.msra.mxu0 %v4242
      %4376 = vmatpush.bf16.msra.mxu0 %v4241
      %4377 = vmatpush.bf16.msra.mxu0 %v4240
      %4378 = vmatpush.bf16.msra.mxu0 %v4239
      %4379 = vmatpush.bf16.msra.mxu0 %v4238
      %4380 = vmatpush.bf16.msra.mxu0 %v4237
      %4381 = vmatpush.bf16.msra.mxu0 %v4236
      %4382 = vmatmul.bf16.gmra.mxu0 %v4059
      %v4383 = vpop.f32.mrf.mxu0
      %v4384 = vadd.f32 %v4198, %v4383
      %v4385 = vpop.f32.mrf.mxu0
      %v4386 = vadd.f32 %v4198, %v4385
      %4387 = vmatmul.bf16.gmra.mxu0 %v4062
      %v4388 = vpop.f32.mrf.mxu0
      %v4389 = vadd.f32 %v4198, %v4388
      %v4390 = vpop.f32.mrf.mxu0
      %v4391 = vadd.f32 %v4198, %v4390
      %4392 = vmatmul.bf16.gmra.mxu0 %v4065
      %v4393 = vpop.f32.mrf.mxu0
      %v4394 = vadd.f32 %v4198, %v4393
      %v4395 = vpop.f32.mrf.mxu0
      %v4396 = vadd.f32 %v4198, %v4395
      %4397 = vmatmul.bf16.gmra.mxu0 %v4068
      %v4398 = vpop.f32.mrf.mxu0
      %v4399 = vadd.f32 %v4198, %v4398
      %v4400 = vpop.f32.mrf.mxu0
      %v4401 = vadd.f32 %v4198, %v4400
      %4402 = vmatmul.bf16.gmra.mxu0 %v4071
      %v4403 = vpop.f32.mrf.mxu0
      %v4404 = vadd.f32 %v4198, %v4403
      %v4405 = vpop.f32.mrf.mxu0
      %v4406 = vadd.f32 %v4198, %v4405
      %4407 = vmatmul.bf16.gmra.mxu0 %v4074
      %v4408 = vpop.f32.mrf.mxu0
      %v4409 = vadd.f32 %v4198, %v4408
      %v4410 = vpop.f32.mrf.mxu0
      %v4411 = vadd.f32 %v4198, %v4410
      %4412 = vmatmul.bf16.gmra.mxu0 %v4077
      %v4413 = vpop.f32.mrf.mxu0
      %v4414 = vadd.f32 %v4198, %v4413
      %v4415 = vpop.f32.mrf.mxu0
      %v4416 = vadd.f32 %v4198, %v4415
      %4417 = vmatmul.bf16.gmra.mxu0 %v4080
      %v4418 = vpop.f32.mrf.mxu0
      %v4419 = vadd.f32 %v4198, %v4418
      %v4420 = vpop.f32.mrf.mxu0
      %v4421 = vadd.f32 %v4198, %v4420
      %4422 = vmatmul.bf16.gmra.mxu0 %v4083
      %v4423 = vpop.f32.mrf.mxu0
      %v4424 = vadd.f32 %v4198, %v4423
      %v4425 = vpop.f32.mrf.mxu0
      %v4426 = vadd.f32 %v4198, %v4425
      %4427 = vmatmul.bf16.gmra.mxu0 %v4086
      %v4428 = vpop.f32.mrf.mxu0
      %v4429 = vadd.f32 %v4198, %v4428
      %v4430 = vpop.f32.mrf.mxu0
      %v4431 = vadd.f32 %v4198, %v4430
      %4432 = vmatmul.bf16.gmra.mxu0 %v4089
      %v4433 = vpop.f32.mrf.mxu0
      %v4434 = vadd.f32 %v4198, %v4433
      %v4435 = vpop.f32.mrf.mxu0
      %v4436 = vadd.f32 %v4198, %v4435
      %4437 = vmatmul.bf16.gmra.mxu0 %v4092
      %v4438 = vpop.f32.mrf.mxu0
      %v4439 = vadd.f32 %v4198, %v4438
      %v4440 = vpop.f32.mrf.mxu0
      %v4441 = vadd.f32 %v4198, %v4440
      %4442 = vmatmul.bf16.gmra.mxu0 %v4095
      %v4443 = vpop.f32.mrf.mxu0
      %v4444 = vadd.f32 %v4198, %v4443
      %v4445 = vpop.f32.mrf.mxu0
      %v4446 = vadd.f32 %v4198, %v4445
      %4447 = vmatmul.bf16.gmra.mxu0 %v4098
      %v4448 = vpop.f32.mrf.mxu0
      %v4449 = vadd.f32 %v4198, %v4448
      %v4450 = vpop.f32.mrf.mxu0
      %v4451 = vadd.f32 %v4198, %v4450
      %4452 = vmatmul.bf16.gmra.mxu0 %v4101
      %v4453 = vpop.f32.mrf.mxu0
      %v4454 = vadd.f32 %v4198, %v4453
      %v4455 = vpop.f32.mrf.mxu0
      %v4456 = vadd.f32 %v4198, %v4455
      %4457 = vmatmul.bf16.gmra.mxu0 %v4104
      %v4458 = vpop.f32.mrf.mxu0
      %v4459 = vadd.f32 %v4198, %v4458
      %v4460 = vpop.f32.mrf.mxu0
      %v4461 = vadd.f32 %v4198, %v4460
      %4462 = vmatmul.bf16.gmra.mxu0 %v4107
      %v4463 = vpop.f32.mrf.mxu0
      %v4464 = vadd.f32 %v4198, %v4463
      %v4465 = vpop.f32.mrf.mxu0
      %v4466 = vadd.f32 %v4198, %v4465
      %4467 = vmatmul.bf16.gmra.mxu0 %v4110
      %v4468 = vpop.f32.mrf.mxu0
      %v4469 = vadd.f32 %v4198, %v4468
      %v4470 = vpop.f32.mrf.mxu0
      %v4471 = vadd.f32 %v4198, %v4470
      %4472 = vmatmul.bf16.gmra.mxu0 %v4113
      %v4473 = vpop.f32.mrf.mxu0
      %v4474 = vadd.f32 %v4198, %v4473
      %v4475 = vpop.f32.mrf.mxu0
      %v4476 = vadd.f32 %v4198, %v4475
      %4477 = vmatmul.bf16.gmra.mxu0 %v4116
      %v4478 = vpop.f32.mrf.mxu0
      %v4479 = vadd.f32 %v4198, %v4478
      %v4480 = vpop.f32.mrf.mxu0
      %v4481 = vadd.f32 %v4198, %v4480
      %4482 = vmatmul.bf16.gmra.mxu0 %v4119
      %v4483 = vpop.f32.mrf.mxu0
      %v4484 = vadd.f32 %v4198, %v4483
      %v4485 = vpop.f32.mrf.mxu0
      %v4486 = vadd.f32 %v4198, %v4485
      %4487 = vmatmul.bf16.gmra.mxu0 %v4122
      %v4488 = vpop.f32.mrf.mxu0
      %v4489 = vadd.f32 %v4198, %v4488
      %v4490 = vpop.f32.mrf.mxu0
      %v4491 = vadd.f32 %v4198, %v4490
      %4492 = vmatmul.bf16.gmra.mxu0 %v4125
      %v4493 = vpop.f32.mrf.mxu0
      %v4494 = vadd.f32 %v4198, %v4493
      %v4495 = vpop.f32.mrf.mxu0
      %v4496 = vadd.f32 %v4198, %v4495
      %4497 = vmatmul.bf16.gmra.mxu0 %v4128
      %v4498 = vpop.f32.mrf.mxu0
      %v4499 = vadd.f32 %v4198, %v4498
      %v4500 = vpop.f32.mrf.mxu0
      %v4501 = vadd.f32 %v4198, %v4500
      %4502 = vmatmul.bf16.gmra.mxu0 %v4131
      %v4503 = vpop.f32.mrf.mxu0
      %v4504 = vadd.f32 %v4198, %v4503
      %v4505 = vpop.f32.mrf.mxu0
      %v4506 = vadd.f32 %v4198, %v4505
      %4507 = vmatmul.bf16.gmra.mxu0 %v4134
      %v4508 = vpop.f32.mrf.mxu0
      %v4509 = vadd.f32 %v4198, %v4508
      %v4510 = vpop.f32.mrf.mxu0
      %v4511 = vadd.f32 %v4198, %v4510
      %4512 = vmatmul.bf16.gmra.mxu0 %v4137
      %v4513 = vpop.f32.mrf.mxu0
      %v4514 = vadd.f32 %v4198, %v4513
      %v4515 = vpop.f32.mrf.mxu0
      %v4516 = vadd.f32 %v4198, %v4515
      %4517 = vmatmul.bf16.gmra.mxu0 %v4140
      %v4518 = vpop.f32.mrf.mxu0
      %v4519 = vadd.f32 %v4198, %v4518
      %v4520 = vpop.f32.mrf.mxu0
      %v4521 = vadd.f32 %v4198, %v4520
      %4522 = vmatmul.bf16.gmra.mxu0 %v4143
      %v4523 = vpop.f32.mrf.mxu0
      %v4524 = vadd.f32 %v4198, %v4523
      %v4525 = vpop.f32.mrf.mxu0
      %v4526 = vadd.f32 %v4198, %v4525
      %4527 = vmatmul.bf16.gmra.mxu0 %v4146
      %v4528 = vpop.f32.mrf.mxu0
      %v4529 = vadd.f32 %v4198, %v4528
      %v4530 = vpop.f32.mrf.mxu0
      %v4531 = vadd.f32 %v4198, %v4530
      %4532 = vmatmul.bf16.gmra.mxu0 %v4149
      %v4533 = vpop.f32.mrf.mxu0
      %v4534 = vadd.f32 %v4198, %v4533
      %v4535 = vpop.f32.mrf.mxu0
      %v4536 = vadd.f32 %v4198, %v4535
      %4537 = vmatmul.bf16.gmra.mxu0 %v4152
      %v4538 = vpop.f32.mrf.mxu0
      %v4539 = vadd.f32 %v4198, %v4538
      %v4540 = vpop.f32.mrf.mxu0
      %v4541 = vadd.f32 %v4198, %v4540
      %4542 = vmatmul.bf16.gmra.mxu0 %v4155
      %v4543 = vpop.f32.mrf.mxu0
      %v4544 = vadd.f32 %v4198, %v4543
      %v4545 = vpop.f32.mrf.mxu0
      %v4546 = vadd.f32 %v4198, %v4545
      %4547 = vmatmul.bf16.gmra.mxu0 %v4158
      %v4548 = vpop.f32.mrf.mxu0
      %v4549 = vadd.f32 %v4198, %v4548
      %v4550 = vpop.f32.mrf.mxu0
      %v4551 = vadd.f32 %v4198, %v4550
      %4552 = vmatmul.bf16.gmra.mxu0 %v4161
      %v4553 = vpop.f32.mrf.mxu0
      %v4554 = vadd.f32 %v4198, %v4553
      %v4555 = vpop.f32.mrf.mxu0
      %v4556 = vadd.f32 %v4198, %v4555
      %4557 = vmatmul.bf16.gmra.mxu0 %v4164
      %v4558 = vpop.f32.mrf.mxu0
      %v4559 = vadd.f32 %v4198, %v4558
      %v4560 = vpop.f32.mrf.mxu0
      %v4561 = vadd.f32 %v4198, %v4560
      %4562 = vmatmul.bf16.gmra.mxu0 %v4167
      %v4563 = vpop.f32.mrf.mxu0
      %v4564 = vadd.f32 %v4198, %v4563
      %v4565 = vpop.f32.mrf.mxu0
      %v4566 = vadd.f32 %v4198, %v4565
      %4567 = vmatmul.bf16.gmra.mxu0 %v4170
      %v4568 = vpop.f32.mrf.mxu0
      %v4569 = vadd.f32 %v4198, %v4568
      %v4570 = vpop.f32.mrf.mxu0
      %v4571 = vadd.f32 %v4198, %v4570
      %4572 = vmatmul.bf16.gmra.mxu0 %v4173
      %v4573 = vpop.f32.mrf.mxu0
      %v4574 = vadd.f32 %v4198, %v4573
      %v4575 = vpop.f32.mrf.mxu0
      %v4576 = vadd.f32 %v4198, %v4575
      %4577 = vmatmul.bf16.gmra.mxu0 %v4176
      %v4578 = vpop.f32.mrf.mxu0
      %v4579 = vadd.f32 %v4198, %v4578
      %v4580 = vpop.f32.mrf.mxu0
      %v4581 = vadd.f32 %v4198, %v4580
      %4582 = vdwg.mxu0
      %4583 = vmatpush.bf16.msra.mxu0 0
      %4584 = vmatpush.bf16.msra.mxu0 0
      %4585 = vmatpush.bf16.msra.mxu0 0
      %4586 = vmatpush.bf16.msra.mxu0 0
      %4587 = vmatpush.bf16.msra.mxu0 0
      %4588 = vmatpush.bf16.msra.mxu0 0
      %4589 = vmatpush.bf16.msra.mxu0 0
      %4590 = vmatpush.bf16.msra.mxu0 %v4244
      %4591 = vmatmul.bf16.gmra.mxu0 %v4255
      %v4592 = vpop.f32.mrf.mxu0
      %v4593 = vadd.f32 %v4384, %v4592
      %v4594 = vpop.f32.mrf.mxu0
      %v4595 = vadd.f32 %v4386, %v4594
      %4596 = vmatmul.bf16.gmra.mxu0 %v4258
      %v4597 = vpop.f32.mrf.mxu0
      %v4598 = vadd.f32 %v4389, %v4597
      %v4599 = vpop.f32.mrf.mxu0
      %v4600 = vadd.f32 %v4391, %v4599
      %4601 = vmatmul.bf16.gmra.mxu0 %v4261
      %v4602 = vpop.f32.mrf.mxu0
      %v4603 = vadd.f32 %v4394, %v4602
      %v4604 = vpop.f32.mrf.mxu0
      %v4605 = vadd.f32 %v4396, %v4604
      %4606 = vmatmul.bf16.gmra.mxu0 %v4264
      %v4607 = vpop.f32.mrf.mxu0
      %v4608 = vadd.f32 %v4399, %v4607
      %v4609 = vpop.f32.mrf.mxu0
      %v4610 = vadd.f32 %v4401, %v4609
      %4611 = vmatmul.bf16.gmra.mxu0 %v4267
      %v4612 = vpop.f32.mrf.mxu0
      %v4613 = vadd.f32 %v4404, %v4612
      %v4614 = vpop.f32.mrf.mxu0
      %v4615 = vadd.f32 %v4406, %v4614
      %4616 = vmatmul.bf16.gmra.mxu0 %v4270
      %v4617 = vpop.f32.mrf.mxu0
      %v4618 = vadd.f32 %v4409, %v4617
      %v4619 = vpop.f32.mrf.mxu0
      %v4620 = vadd.f32 %v4411, %v4619
      %4621 = vmatmul.bf16.gmra.mxu0 %v4273
      %v4622 = vpop.f32.mrf.mxu0
      %v4623 = vadd.f32 %v4414, %v4622
      %v4624 = vpop.f32.mrf.mxu0
      %v4625 = vadd.f32 %v4416, %v4624
      %4626 = vmatmul.bf16.gmra.mxu0 %v4276
      %v4627 = vpop.f32.mrf.mxu0
      %v4628 = vadd.f32 %v4419, %v4627
      %v4629 = vpop.f32.mrf.mxu0
      %v4630 = vadd.f32 %v4421, %v4629
      %4631 = vmatmul.bf16.gmra.mxu0 %v4279
      %v4632 = vpop.f32.mrf.mxu0
      %v4633 = vadd.f32 %v4424, %v4632
      %v4634 = vpop.f32.mrf.mxu0
      %v4635 = vadd.f32 %v4426, %v4634
      %4636 = vmatmul.bf16.gmra.mxu0 %v4282
      %v4637 = vpop.f32.mrf.mxu0
      %v4638 = vadd.f32 %v4429, %v4637
      %v4639 = vpop.f32.mrf.mxu0
      %v4640 = vadd.f32 %v4431, %v4639
      %4641 = vmatmul.bf16.gmra.mxu0 %v4285
      %v4642 = vpop.f32.mrf.mxu0
      %v4643 = vadd.f32 %v4434, %v4642
      %v4644 = vpop.f32.mrf.mxu0
      %v4645 = vadd.f32 %v4436, %v4644
      %4646 = vmatmul.bf16.gmra.mxu0 %v4288
      %v4647 = vpop.f32.mrf.mxu0
      %v4648 = vadd.f32 %v4439, %v4647
      %v4649 = vpop.f32.mrf.mxu0
      %v4650 = vadd.f32 %v4441, %v4649
      %4651 = vmatmul.bf16.gmra.mxu0 %v4291
      %v4652 = vpop.f32.mrf.mxu0
      %v4653 = vadd.f32 %v4444, %v4652
      %v4654 = vpop.f32.mrf.mxu0
      %v4655 = vadd.f32 %v4446, %v4654
      %4656 = vmatmul.bf16.gmra.mxu0 %v4294
      %v4657 = vpop.f32.mrf.mxu0
      %v4658 = vadd.f32 %v4449, %v4657
      %v4659 = vpop.f32.mrf.mxu0
      %v4660 = vadd.f32 %v4451, %v4659
      %4661 = vmatmul.bf16.gmra.mxu0 %v4297
      %v4662 = vpop.f32.mrf.mxu0
      %v4663 = vadd.f32 %v4454, %v4662
      %v4664 = vpop.f32.mrf.mxu0
      %v4665 = vadd.f32 %v4456, %v4664
      %4666 = vmatmul.bf16.gmra.mxu0 %v4300
      %v4667 = vpop.f32.mrf.mxu0
      %v4668 = vadd.f32 %v4459, %v4667
      %v4669 = vpop.f32.mrf.mxu0
      %v4670 = vadd.f32 %v4461, %v4669
      %4671 = vmatmul.bf16.gmra.mxu0 %v4303
      %v4672 = vpop.f32.mrf.mxu0
      %v4673 = vadd.f32 %v4464, %v4672
      %v4674 = vpop.f32.mrf.mxu0
      %v4675 = vadd.f32 %v4466, %v4674
      %4676 = vmatmul.bf16.gmra.mxu0 %v4306
      %v4677 = vpop.f32.mrf.mxu0
      %v4678 = vadd.f32 %v4469, %v4677
      %v4679 = vpop.f32.mrf.mxu0
      %v4680 = vadd.f32 %v4471, %v4679
      %4681 = vmatmul.bf16.gmra.mxu0 %v4309
      %v4682 = vpop.f32.mrf.mxu0
      %v4683 = vadd.f32 %v4474, %v4682
      %v4684 = vpop.f32.mrf.mxu0
      %v4685 = vadd.f32 %v4476, %v4684
      %4686 = vmatmul.bf16.gmra.mxu0 %v4312
      %v4687 = vpop.f32.mrf.mxu0
      %v4688 = vadd.f32 %v4479, %v4687
      %v4689 = vpop.f32.mrf.mxu0
      %v4690 = vadd.f32 %v4481, %v4689
      %4691 = vmatmul.bf16.gmra.mxu0 %v4315
      %v4692 = vpop.f32.mrf.mxu0
      %v4693 = vadd.f32 %v4484, %v4692
      %v4694 = vpop.f32.mrf.mxu0
      %v4695 = vadd.f32 %v4486, %v4694
      %4696 = vmatmul.bf16.gmra.mxu0 %v4318
      %v4697 = vpop.f32.mrf.mxu0
      %v4698 = vadd.f32 %v4489, %v4697
      %v4699 = vpop.f32.mrf.mxu0
      %v4700 = vadd.f32 %v4491, %v4699
      %4701 = vmatmul.bf16.gmra.mxu0 %v4321
      %v4702 = vpop.f32.mrf.mxu0
      %v4703 = vadd.f32 %v4494, %v4702
      %v4704 = vpop.f32.mrf.mxu0
      %v4705 = vadd.f32 %v4496, %v4704
      %4706 = vmatmul.bf16.gmra.mxu0 %v4324
      %v4707 = vpop.f32.mrf.mxu0
      %v4708 = vadd.f32 %v4499, %v4707
      %v4709 = vpop.f32.mrf.mxu0
      %v4710 = vadd.f32 %v4501, %v4709
      %4711 = vmatmul.bf16.gmra.mxu0 %v4327
      %v4712 = vpop.f32.mrf.mxu0
      %v4713 = vadd.f32 %v4504, %v4712
      %v4714 = vpop.f32.mrf.mxu0
      %v4715 = vadd.f32 %v4506, %v4714
      %4716 = vmatmul.bf16.gmra.mxu0 %v4330
      %v4717 = vpop.f32.mrf.mxu0
      %v4718 = vadd.f32 %v4509, %v4717
      %v4719 = vpop.f32.mrf.mxu0
      %v4720 = vadd.f32 %v4511, %v4719
      %4721 = vmatmul.bf16.gmra.mxu0 %v4333
      %v4722 = vpop.f32.mrf.mxu0
      %v4723 = vadd.f32 %v4514, %v4722
      %v4724 = vpop.f32.mrf.mxu0
      %v4725 = vadd.f32 %v4516, %v4724
      %4726 = vmatmul.bf16.gmra.mxu0 %v4336
      %v4727 = vpop.f32.mrf.mxu0
      %v4728 = vadd.f32 %v4519, %v4727
      %v4729 = vpop.f32.mrf.mxu0
      %v4730 = vadd.f32 %v4521, %v4729
      %4731 = vmatmul.bf16.gmra.mxu0 %v4339
      %v4732 = vpop.f32.mrf.mxu0
      %v4733 = vadd.f32 %v4524, %v4732
      %v4734 = vpop.f32.mrf.mxu0
      %v4735 = vadd.f32 %v4526, %v4734
      %4736 = vmatmul.bf16.gmra.mxu0 %v4342
      %v4737 = vpop.f32.mrf.mxu0
      %v4738 = vadd.f32 %v4529, %v4737
      %v4739 = vpop.f32.mrf.mxu0
      %v4740 = vadd.f32 %v4531, %v4739
      %4741 = vmatmul.bf16.gmra.mxu0 %v4345
      %v4742 = vpop.f32.mrf.mxu0
      %v4743 = vadd.f32 %v4534, %v4742
      %v4744 = vpop.f32.mrf.mxu0
      %v4745 = vadd.f32 %v4536, %v4744
      %4746 = vmatmul.bf16.gmra.mxu0 %v4348
      %v4747 = vpop.f32.mrf.mxu0
      %v4748 = vadd.f32 %v4539, %v4747
      %v4749 = vpop.f32.mrf.mxu0
      %v4750 = vadd.f32 %v4541, %v4749
      %4751 = vmatmul.bf16.gmra.mxu0 %v4351
      %v4752 = vpop.f32.mrf.mxu0
      %v4753 = vadd.f32 %v4544, %v4752
      %v4754 = vpop.f32.mrf.mxu0
      %v4755 = vadd.f32 %v4546, %v4754
      %4756 = vmatmul.bf16.gmra.mxu0 %v4354
      %v4757 = vpop.f32.mrf.mxu0
      %v4758 = vadd.f32 %v4549, %v4757
      %v4759 = vpop.f32.mrf.mxu0
      %v4760 = vadd.f32 %v4551, %v4759
      %4761 = vmatmul.bf16.gmra.mxu0 %v4357
      %v4762 = vpop.f32.mrf.mxu0
      %v4763 = vadd.f32 %v4554, %v4762
      %v4764 = vpop.f32.mrf.mxu0
      %v4765 = vadd.f32 %v4556, %v4764
      %4766 = vmatmul.bf16.gmra.mxu0 %v4360
      %v4767 = vpop.f32.mrf.mxu0
      %v4768 = vadd.f32 %v4559, %v4767
      %v4769 = vpop.f32.mrf.mxu0
      %v4770 = vadd.f32 %v4561, %v4769
      %4771 = vmatmul.bf16.gmra.mxu0 %v4363
      %v4772 = vpop.f32.mrf.mxu0
      %v4773 = vadd.f32 %v4564, %v4772
      %v4774 = vpop.f32.mrf.mxu0
      %v4775 = vadd.f32 %v4566, %v4774
      %4776 = vmatmul.bf16.gmra.mxu0 %v4366
      %v4777 = vpop.f32.mrf.mxu0
      %v4778 = vadd.f32 %v4569, %v4777
      %v4779 = vpop.f32.mrf.mxu0
      %v4780 = vadd.f32 %v4571, %v4779
      %4781 = vmatmul.bf16.gmra.mxu0 %v4369
      %v4782 = vpop.f32.mrf.mxu0
      %v4783 = vadd.f32 %v4574, %v4782
      %v4784 = vpop.f32.mrf.mxu0
      %v4785 = vadd.f32 %v4576, %v4784
      %4786 = vmatmul.bf16.gmra.mxu0 %v4372
      %v4787 = vpop.f32.mrf.mxu0
      %v4788 = vadd.f32 %v4579, %v4787
      %v4789 = vpop.f32.mrf.mxu0
      %v4790 = vadd.f32 %v4581, %v4789
      %4791 = vdwg.mxu0
      %v4792 = vmax.f32 %v4593, 0.0
      %v4793 = vmax.f32 %v4595, 0.0
      %v4794 = vmax.f32 %v4598, 0.0
      %v4795 = vmax.f32 %v4600, 0.0
      %v4796 = vmax.f32 %v4603, 0.0
      %v4797 = vmax.f32 %v4605, 0.0
      %v4798 = vmax.f32 %v4608, 0.0
      %v4799 = vmax.f32 %v4610, 0.0
      %v4800 = vmax.f32 %v4613, 0.0
      %v4801 = vmax.f32 %v4615, 0.0
      %v4802 = vmax.f32 %v4618, 0.0
      %v4803 = vmax.f32 %v4620, 0.0
      %v4804 = vmax.f32 %v4623, 0.0
      %v4805 = vmax.f32 %v4625, 0.0
      %v4806 = vmax.f32 %v4628, 0.0
      %v4807 = vmax.f32 %v4630, 0.0
      %v4808 = vmax.f32 %v4633, 0.0
      %v4809 = vmax.f32 %v4635, 0.0
      %v4810 = vmax.f32 %v4638, 0.0
      %v4811 = vmax.f32 %v4640, 0.0
      %v4812 = vmax.f32 %v4643, 0.0
      %v4813 = vmax.f32 %v4645, 0.0
      %v4814 = vmax.f32 %v4648, 0.0
      %v4815 = vmax.f32 %v4650, 0.0
      %v4816 = vmax.f32 %v4653, 0.0
      %v4817 = vmax.f32 %v4655, 0.0
      %v4818 = vmax.f32 %v4658, 0.0
      %v4819 = vmax.f32 %v4660, 0.0
      %v4820 = vmax.f32 %v4663, 0.0
      %v4821 = vmax.f32 %v4665, 0.0
      %v4822 = vmax.f32 %v4668, 0.0
      %v4823 = vmax.f32 %v4670, 0.0
      %v4824 = vmax.f32 %v4673, 0.0
      %v4825 = vmax.f32 %v4675, 0.0
      %v4826 = vmax.f32 %v4678, 0.0
      %v4827 = vmax.f32 %v4680, 0.0
      %v4828 = vmax.f32 %v4683, 0.0
      %v4829 = vmax.f32 %v4685, 0.0
      %v4830 = vmax.f32 %v4688, 0.0
      %v4831 = vmax.f32 %v4690, 0.0
      %v4832 = vmax.f32 %v4693, 0.0
      %v4833 = vmax.f32 %v4695, 0.0
      %v4834 = vmax.f32 %v4698, 0.0
      %v4835 = vmax.f32 %v4700, 0.0
      %v4836 = vmax.f32 %v4703, 0.0
      %v4837 = vmax.f32 %v4705, 0.0
      %v4838 = vmax.f32 %v4708, 0.0
      %v4839 = vmax.f32 %v4710, 0.0
      %v4840 = vmax.f32 %v4713, 0.0
      %v4841 = vmax.f32 %v4715, 0.0
      %v4842 = vmax.f32 %v4718, 0.0
      %v4843 = vmax.f32 %v4720, 0.0
      %v4844 = vmax.f32 %v4723, 0.0
      %v4845 = vmax.f32 %v4725, 0.0
      %v4846 = vmax.f32 %v4728, 0.0
      %v4847 = vmax.f32 %v4730, 0.0
      %v4848 = vmax.f32 %v4733, 0.0
      %v4849 = vmax.f32 %v4735, 0.0
      %v4850 = vmax.f32 %v4738, 0.0
      %v4851 = vmax.f32 %v4740, 0.0
      %v4852 = vmax.f32 %v4743, 0.0
      %v4853 = vmax.f32 %v4745, 0.0
      %v4854 = vmax.f32 %v4748, 0.0
      %v4855 = vmax.f32 %v4750, 0.0
      %v4856 = vmax.f32 %v4753, 0.0
      %v4857 = vmax.f32 %v4755, 0.0
      %v4858 = vmax.f32 %v4758, 0.0
      %v4859 = vmax.f32 %v4760, 0.0
      %v4860 = vmax.f32 %v4763, 0.0
      %v4861 = vmax.f32 %v4765, 0.0
      %v4862 = vmax.f32 %v4768, 0.0
      %v4863 = vmax.f32 %v4770, 0.0
      %v4864 = vmax.f32 %v4773, 0.0
      %v4865 = vmax.f32 %v4775, 0.0
      %v4866 = vmax.f32 %v4778, 0.0
      %v4867 = vmax.f32 %v4780, 0.0
      %v4868 = vmax.f32 %v4783, 0.0
      %v4869 = vmax.f32 %v4785, 0.0
      %v4870 = vmax.f32 %v4788, 0.0
      %v4871 = vmax.f32 %v4790, 0.0
      %v4872 = vpack.c.bf16 %v4792, %v4792
      %v4873 = vpack.c.bf16 %v4793, %v4793
      %v4874 = vpack.c.bf16 %v4794, %v4794
      %v4875 = vpack.c.bf16 %v4795, %v4795
      %v4876 = vpack.c.bf16 %v4796, %v4796
      %v4877 = vpack.c.bf16 %v4797, %v4797
      %v4878 = vpack.c.bf16 %v4798, %v4798
      %v4879 = vpack.c.bf16 %v4799, %v4799
      %v4880 = vpack.c.bf16 %v4800, %v4800
      %v4881 = vpack.c.bf16 %v4801, %v4801
      %v4882 = vpack.c.bf16 %v4802, %v4802
      %v4883 = vpack.c.bf16 %v4803, %v4803
      %v4884 = vpack.c.bf16 %v4804, %v4804
      %v4885 = vpack.c.bf16 %v4805, %v4805
      %v4886 = vpack.c.bf16 %v4806, %v4806
      %v4887 = vpack.c.bf16 %v4807, %v4807
      %v4888 = vpack.c.bf16 %v4808, %v4808
      %v4889 = vpack.c.bf16 %v4809, %v4809
      %v4890 = vpack.c.bf16 %v4810, %v4810
      %v4891 = vpack.c.bf16 %v4811, %v4811
      %v4892 = vpack.c.bf16 %v4812, %v4812
      %v4893 = vpack.c.bf16 %v4813, %v4813
      %v4894 = vpack.c.bf16 %v4814, %v4814
      %v4895 = vpack.c.bf16 %v4815, %v4815
      %v4896 = vpack.c.bf16 %v4816, %v4816
      %v4897 = vpack.c.bf16 %v4817, %v4817
      %v4898 = vpack.c.bf16 %v4818, %v4818
      %v4899 = vpack.c.bf16 %v4819, %v4819
      %v4900 = vpack.c.bf16 %v4820, %v4820
      %v4901 = vpack.c.bf16 %v4821, %v4821
      %v4902 = vpack.c.bf16 %v4822, %v4822
      %v4903 = vpack.c.bf16 %v4823, %v4823
      %v4904 = vpack.c.bf16 %v4824, %v4824
      %v4905 = vpack.c.bf16 %v4825, %v4825
      %v4906 = vpack.c.bf16 %v4826, %v4826
      %v4907 = vpack.c.bf16 %v4827, %v4827
      %v4908 = vpack.c.bf16 %v4828, %v4828
      %v4909 = vpack.c.bf16 %v4829, %v4829
      %v4910 = vpack.c.bf16 %v4830, %v4830
      %v4911 = vpack.c.bf16 %v4831, %v4831
      %v4912 = vpack.c.bf16 %v4832, %v4832
      %v4913 = vpack.c.bf16 %v4833, %v4833
      %v4914 = vpack.c.bf16 %v4834, %v4834
      %v4915 = vpack.c.bf16 %v4835, %v4835
      %v4916 = vpack.c.bf16 %v4836, %v4836
      %v4917 = vpack.c.bf16 %v4837, %v4837
      %v4918 = vpack.c.bf16 %v4838, %v4838
      %v4919 = vpack.c.bf16 %v4839, %v4839
      %v4920 = vpack.c.bf16 %v4840, %v4840
      %v4921 = vpack.c.bf16 %v4841, %v4841
      %v4922 = vpack.c.bf16 %v4842, %v4842
      %v4923 = vpack.c.bf16 %v4843, %v4843
      %v4924 = vpack.c.bf16 %v4844, %v4844
      %v4925 = vpack.c.bf16 %v4845, %v4845
      %v4926 = vpack.c.bf16 %v4846, %v4846
      %v4927 = vpack.c.bf16 %v4847, %v4847
      %v4928 = vpack.c.bf16 %v4848, %v4848
      %v4929 = vpack.c.bf16 %v4849, %v4849
      %v4930 = vpack.c.bf16 %v4850, %v4850
      %v4931 = vpack.c.bf16 %v4851, %v4851
      %v4932 = vpack.c.bf16 %v4852, %v4852
      %v4933 = vpack.c.bf16 %v4853, %v4853
      %v4934 = vpack.c.bf16 %v4854, %v4854
      %v4935 = vpack.c.bf16 %v4855, %v4855
      %v4936 = vpack.c.bf16 %v4856, %v4856
      %v4937 = vpack.c.bf16 %v4857, %v4857
      %v4938 = vpack.c.bf16 %v4858, %v4858
      %v4939 = vpack.c.bf16 %v4859, %v4859
      %v4940 = vpack.c.bf16 %v4860, %v4860
      %v4941 = vpack.c.bf16 %v4861, %v4861
      %v4942 = vpack.c.bf16 %v4862, %v4862
      %v4943 = vpack.c.bf16 %v4863, %v4863
      %v4944 = vpack.c.bf16 %v4864, %v4864
      %v4945 = vpack.c.bf16 %v4865, %v4865
      %v4946 = vpack.c.bf16 %v4866, %v4866
      %v4947 = vpack.c.bf16 %v4867, %v4867
      %v4948 = vpack.c.bf16 %v4868, %v4868
      %v4949 = vpack.c.bf16 %v4869, %v4869
      %v4950 = vpack.c.bf16 %v4870, %v4870
      %v4951 = vpack.c.bf16 %v4871, %v4871
      %vm4952 = vcmask 257024
      %4953 = vst.msk [vmem:[%s441] sm:$0xf] %vm4952, %v4872
      %4954 = vst.msk [vmem:[%s441 + $0x4] sm:$0xf] %vm4952, %v4873
      %4955 = vst.msk [vmem:[%s441 + $0x8] sm:$0xf] %vm4952, %v4874
      %4956 = vst.msk [vmem:[%s441 + $0xc] sm:$0xf] %vm4952, %v4875
      %4957 = vst.msk [vmem:[%s441 + $0x10] sm:$0xf] %vm4952, %v4876
      %4958 = vst.msk [vmem:[%s441 + $0x14] sm:$0xf] %vm4952, %v4877
      %4959 = vst.msk [vmem:[%s441 + $0x18] sm:$0xf] %vm4952, %v4878
      %4960 = vst.msk [vmem:[%s441 + $0x1c] sm:$0xf] %vm4952, %v4879
      %4961 = vst.msk [vmem:[%s441 + $0x20] sm:$0xf] %vm4952, %v4880
      %4962 = vst.msk [vmem:[%s441 + $0x24] sm:$0xf] %vm4952, %v4881
      %4963 = vst.msk [vmem:[%s441 + $0x28] sm:$0xf] %vm4952, %v4882
      %4964 = vst.msk [vmem:[%s441 + $0x2c] sm:$0xf] %vm4952, %v4883
      %4965 = vst.msk [vmem:[%s441 + $0x30] sm:$0xf] %vm4952, %v4884
      %4966 = vst.msk [vmem:[%s441 + $0x34] sm:$0xf] %vm4952, %v4885
      %4967 = vst.msk [vmem:[%s441 + $0x38] sm:$0xf] %vm4952, %v4886
      %4968 = vst.msk [vmem:[%s441 + $0x3c] sm:$0xf] %vm4952, %v4887
      %4969 = vst.msk [vmem:[%s441 + $0x40] sm:$0xf] %vm4952, %v4888
      %4970 = vst.msk [vmem:[%s441 + $0x44] sm:$0xf] %vm4952, %v4889
      %4971 = vst.msk [vmem:[%s441 + $0x48] sm:$0xf] %vm4952, %v4890
      %4972 = vst.msk [vmem:[%s441 + $0x4c] sm:$0xf] %vm4952, %v4891
      %4973 = vst.msk [vmem:[%s441 + $0x50] sm:$0xf] %vm4952, %v4892
      %4974 = vst.msk [vmem:[%s441 + $0x54] sm:$0xf] %vm4952, %v4893
      %4975 = vst.msk [vmem:[%s441 + $0x58] sm:$0xf] %vm4952, %v4894
      %4976 = vst.msk [vmem:[%s441 + $0x5c] sm:$0xf] %vm4952, %v4895
      %4977 = vst.msk [vmem:[%s441 + $0x60] sm:$0xf] %vm4952, %v4896
      %4978 = vst.msk [vmem:[%s441 + $0x64] sm:$0xf] %vm4952, %v4897
      %4979 = vst.msk [vmem:[%s441 + $0x68] sm:$0xf] %vm4952, %v4898
      %4980 = vst.msk [vmem:[%s441 + $0x6c] sm:$0xf] %vm4952, %v4899
      %4981 = vst.msk [vmem:[%s441 + $0x70] sm:$0xf] %vm4952, %v4900
      %4982 = vst.msk [vmem:[%s441 + $0x74] sm:$0xf] %vm4952, %v4901
      %4983 = vst.msk [vmem:[%s441 + $0x78] sm:$0xf] %vm4952, %v4902
      %4984 = vst.msk [vmem:[%s441 + $0x7c] sm:$0xf] %vm4952, %v4903
      %4985 = vst.msk [vmem:[%s441 + $0x80] sm:$0xf] %vm4952, %v4904
      %4986 = vst.msk [vmem:[%s441 + $0x84] sm:$0xf] %vm4952, %v4905
      %4987 = vst.msk [vmem:[%s441 + $0x88] sm:$0xf] %vm4952, %v4906
      %4988 = vst.msk [vmem:[%s441 + $0x8c] sm:$0xf] %vm4952, %v4907
      %4989 = vst.msk [vmem:[%s441 + $0x90] sm:$0xf] %vm4952, %v4908
      %4990 = vst.msk [vmem:[%s441 + $0x94] sm:$0xf] %vm4952, %v4909
      %4991 = vst.msk [vmem:[%s441 + $0x98] sm:$0xf] %vm4952, %v4910
      %4992 = vst.msk [vmem:[%s441 + $0x9c] sm:$0xf] %vm4952, %v4911
      %4993 = vst.msk [vmem:[%s441 + $0xa0] sm:$0xf] %vm4952, %v4912
      %4994 = vst.msk [vmem:[%s441 + $0xa4] sm:$0xf] %vm4952, %v4913
      %4995 = vst.msk [vmem:[%s441 + $0xa8] sm:$0xf] %vm4952, %v4914
      %4996 = vst.msk [vmem:[%s441 + $0xac] sm:$0xf] %vm4952, %v4915
      %4997 = vst.msk [vmem:[%s441 + $0xb0] sm:$0xf] %vm4952, %v4916
      %4998 = vst.msk [vmem:[%s441 + $0xb4] sm:$0xf] %vm4952, %v4917
      %4999 = vst.msk [vmem:[%s441 + $0xb8] sm:$0xf] %vm4952, %v4918
      %5000 = vst.msk [vmem:[%s441 + $0xbc] sm:$0xf] %vm4952, %v4919
      %5001 = vst.msk [vmem:[%s441 + $0xc0] sm:$0xf] %vm4952, %v4920
      %5002 = vst.msk [vmem:[%s441 + $0xc4] sm:$0xf] %vm4952, %v4921
      %5003 = vst.msk [vmem:[%s441 + $0xc8] sm:$0xf] %vm4952, %v4922
      %5004 = vst.msk [vmem:[%s441 + $0xcc] sm:$0xf] %vm4952, %v4923
      %5005 = vst.msk [vmem:[%s441 + $0xd0] sm:$0xf] %vm4952, %v4924
      %5006 = vst.msk [vmem:[%s441 + $0xd4] sm:$0xf] %vm4952, %v4925
      %5007 = vst.msk [vmem:[%s441 + $0xd8] sm:$0xf] %vm4952, %v4926
      %5008 = vst.msk [vmem:[%s441 + $0xdc] sm:$0xf] %vm4952, %v4927
      %5009 = vst.msk [vmem:[%s441 + $0xe0] sm:$0xf] %vm4952, %v4928
      %5010 = vst.msk [vmem:[%s441 + $0xe4] sm:$0xf] %vm4952, %v4929
      %5011 = vst.msk [vmem:[%s441 + $0xe8] sm:$0xf] %vm4952, %v4930
      %5012 = vst.msk [vmem:[%s441 + $0xec] sm:$0xf] %vm4952, %v4931
      %5013 = vst.msk [vmem:[%s441 + $0xf0] sm:$0xf] %vm4952, %v4932
      %5014 = vst.msk [vmem:[%s441 + $0xf4] sm:$0xf] %vm4952, %v4933
      %5015 = vst.msk [vmem:[%s441 + $0xf8] sm:$0xf] %vm4952, %v4934
      %5016 = vst.msk [vmem:[%s441 + $0xfc] sm:$0xf] %vm4952, %v4935
      %5017 = vst.msk [vmem:[%s441 + $0x100] sm:$0xf] %vm4952, %v4936
      %5018 = vst.msk [vmem:[%s441 + $0x104] sm:$0xf] %vm4952, %v4937
      %5019 = vst.msk [vmem:[%s441 + $0x108] sm:$0xf] %vm4952, %v4938
      %5020 = vst.msk [vmem:[%s441 + $0x10c] sm:$0xf] %vm4952, %v4939
      %5021 = vst.msk [vmem:[%s441 + $0x110] sm:$0xf] %vm4952, %v4940
      %5022 = vst.msk [vmem:[%s441 + $0x114] sm:$0xf] %vm4952, %v4941
      %5023 = vst.msk [vmem:[%s441 + $0x118] sm:$0xf] %vm4952, %v4942
      %5024 = vst.msk [vmem:[%s441 + $0x11c] sm:$0xf] %vm4952, %v4943
      %5025 = vst.msk [vmem:[%s441 + $0x120] sm:$0xf] %vm4952, %v4944
      %5026 = vst.msk [vmem:[%s441 + $0x124] sm:$0xf] %vm4952, %v4945
      %5027 = vst.msk [vmem:[%s441 + $0x128] sm:$0xf] %vm4952, %v4946
      %5028 = vst.msk [vmem:[%s441 + $0x12c] sm:$0xf] %vm4952, %v4947
      %5029 = vst.msk [vmem:[%s441 + $0x130] sm:$0xf] %vm4952, %v4948
      %5030 = vst.msk [vmem:[%s441 + $0x134] sm:$0xf] %vm4952, %v4949
      %5031 = vst.msk [vmem:[%s441 + $0x138] sm:$0xf] %vm4952, %v4950
      %5032 = vst.msk [vmem:[%s441 + $0x13c] sm:$0xf] %vm4952, %v4951
      %s5033 = smul.u32 80, %s19
      %p5034 = scmp.lt.s32.totalorder %s5033, 399
      %s5035 = scalar_select %p5034, %s5033, 399
      %s5036 = smul.addr %s5035, 4
      %s5037 = scalar_lea.vmem %s8, %s5036
      // Predicated region
      $region53: #{_lambda_.2} parent=51 // pred_check
        %p5038 = pneg %p233
      $region54: #{_lambda_.2} parent=51 // pred_check_branch
        %5040 = sbr.rel (%p5038) target = $region56
      $region55: #{_lambda_.2} parent=51 // pred_region
        %s5041 = smul.u32 80, %s19
      $region56: #{_lambda_.2} parent=51 // pred_fallthru
        _
    $region52: #{_lambda_.2} parent=5 // pred_fallthru
      _
    %p5042 = scmp.le.s32.totalorder 2, %s14
    // Predicated region
    $region57: #{_lambda_.2} parent=5 // pred_check
      %p5043 = pneg %p5042
    $region58: #{_lambda_.2} parent=5 // pred_check_branch
      %5045 = sbr.rel (%p5043) target = $region60
    $region59: #{_lambda_.2} parent=5 // pred_region
      %s5046 = ssub.s32 %s14, 2
      // Predicated region
      $region61: #{_lambda_.2} parent=59 // pred_check
        %p5047 = pneg %p239
      $region62: #{_lambda_.2} parent=59 // pred_check_branch
        %5049 = sbr.rel (%p5047) target = $region64
      $region63: #{_lambda_.2} parent=59 // pred_region
        %s5050 = smul.u32 80, %s20
        %p5051 = scmp.lt.s32.totalorder %s5050, 399
        %s5052 = scalar_select %p5051, %s5050, 399
        %s5053 = smul.addr %s5052, 4
        %s5054 = scalar_lea.vmem %s8, %s5053
      $region64: #{_lambda_.2} parent=59 // pred_fallthru
        _
    $region60: #{_lambda_.2} parent=5 // pred_fallthru
      _
  $region6: #{_lambda_.2} parent=0 // loop_footer
    %s18 = sadd.s32 1, %s14
  $region7: #{_lambda_.2} parent=0 // loop_footer_branch
    %13 = sbr.rel target = $region3
  $region8: #{_lambda_.2} parent=0 // loop_exit
    _

</llo_original>
